<compile_context>
chip_gen: v6e
topology: v6e:2x2x1
jax: 0.10.0
libtpu: 0.0.40
codegen_flags: <defaults>
</compile_context>

<pallas_src>
import random

import jax
import jax.numpy as jnp
import numpy as np
from jax.experimental import pallas as pl
from jax.experimental.pallas import tpu as pltpu

B = 2          # batch
H = W = 16     # spatial
CIN = 1        # input channels
C1 = 8         # conv1 out channels (per sub-model)
C2 = 16        # conv2 out channels (per sub-model)
NCLS = 4       # logits per CnnModel
NMODELS = 3    # circle, curve, line

C1F = NMODELS * C1       # 24 fused conv1 channels
C2F = NMODELS * C2       # 48 fused conv2 channels
NLOG = NMODELS * NCLS    # 12 fused logits
H1, W1 = H - 2, W - 2    # 14, 14
H2, W2 = H - 4, W - 4    # 12, 12

OUT_ROWS, OUT_LANES = 8, 128   # lane-dense padded logits slab


def _fused_kernel(x_ref, w1_ref, b1_ref, w2_ref, b2_ref, wf_ref, bf_ref,
                  logits_ref, am_ref):
    x = x_ref[...]                                          # [B, 16, 16, 1]

    # ---- conv1: 3x3 valid, Cin=1 -> 24 fused channels; pure VPU FMA ----
    h1 = jnp.zeros((B, H1, W1, C1F), jnp.float32)
    for dy in range(3):
        for dx in range(3):
            xs = x[:, dy:dy + H1, dx:dx + W1, :]            # [B,14,14,1]
            w_tap = w1_ref[dy * 3 + dx:dy * 3 + dx + 1, :]  # [1, 24]
            h1 = h1 + xs * w_tap                            # lane-broadcast FMA
    h1 = jnp.maximum(h1 + b1_ref[...], 0.0)                 # [B,14,14,24]

    # ---- conv2: im2col -> ONE MXU matmul with block-diagonal weights ----
    cols = []
    for dy in range(3):
        for dx in range(3):
            cols.append(h1[:, dy:dy + H2, dx:dx + W2, :])   # [B,12,12,24]
    patches = jnp.concatenate(cols, axis=-1)                # [B,12,12,216]
    patches = patches.reshape(B * H2 * W2, 9 * C1F)         # [288, 216]
    h2 = jnp.dot(patches, w2_ref[...],
                 preferred_element_type=jnp.float32)        # [288, 48]
    h2 = jnp.maximum(h2 + b2_ref[...], 0.0)

    # ---- global average pool + fused (block-diagonal) linear head ----
    pooled = jnp.mean(h2.reshape(B, H2 * W2, C2F), axis=1)  # [B, 48]
    logits = jnp.dot(pooled, wf_ref[...],
                     preferred_element_type=jnp.float32) + bf_ref[...]  # [B,12]

    # ---- per-model argmax in-kernel (host only needs 3*B ints) ----
    idx4 = jax.lax.broadcasted_iota(jnp.int32, (B, NCLS), 1)
    ams = []
    for m in range(NMODELS):
        sub = logits[:, m * NCLS:(m + 1) * NCLS]            # [B, 4]
        mx = jnp.max(sub, axis=-1, keepdims=True)
        am = jnp.min(jnp.where(sub >= mx, idx4, NCLS),
                     axis=-1, keepdims=True)                # first-max index
        ams.append(am)
    am_mat = jnp.concatenate(ams, axis=-1).astype(jnp.int32)  # [B, 3]

    # ---- lane-dense padded logits slab + tiny argmax output ----
    logits_ref[...] = jnp.zeros_like(logits_ref)
    logits_ref[0:B, 0:NLOG] = logits
    am_ref[...] = am_mat


def _run_fused(x_nhwc, fused):
    w1f, b1f, w2f, b2f, wff, bff = fused
    vmem = pl.BlockSpec(memory_space=pltpu.MemorySpace.VMEM)
    return pl.pallas_call(
        _fused_kernel,
        out_shape=(
            jax.ShapeDtypeStruct((OUT_ROWS, OUT_LANES), jnp.float32),
            jax.ShapeDtypeStruct((B, NMODELS), jnp.int32),
        ),
        in_specs=[vmem] * 7,
        out_specs=(vmem, vmem),
    )(x_nhwc, w1f, b1f, w2f, b2f, wff, bff)


@jax.jit
def device_forward(x_nchw, fused):
    """NCHW input -> (logits [3, B, 4], per-model argmax [B, 3])."""
    x_nhwc = jnp.transpose(x_nchw, (0, 2, 3, 1)).astype(jnp.float32)
    slab, am = _run_fused(x_nhwc, fused)
    logits = slab[:B, :NLOG].reshape(B, NMODELS, NCLS).transpose(1, 0, 2)
    return logits, am


def fuse_params(params):
    """Stack / block-diagonalize the 3 sub-models' weights (trace-time only)."""
    w1, b1, w2, b2, wf, bf = params
    # conv1 taps: [9, 24], column = m*C1 + c
    w1f = jnp.transpose(w1[:, :, :, 0, :], (1, 2, 0, 3)).reshape(9, C1F)
    b1f = b1.reshape(1, C1F)
    # conv2: block-diagonal [3,3,24,48] -> im2col weight [216, 48]
    w2bd = jnp.zeros((3, 3, C1F, C2F), jnp.float32)
    for m in range(NMODELS):
        w2bd = w2bd.at[:, :, m * C1:(m + 1) * C1,
                       m * C2:(m + 1) * C2].set(w2[m])
    w2f = w2bd.reshape(9 * C1F, C2F)
    b2f = b2.reshape(1, C2F)
    # head: block-diagonal [48, 12]
    wff = jnp.zeros((C2F, NLOG), jnp.float32)
    for m in range(NMODELS):
        wff = wff.at[m * C2:(m + 1) * C2,
                     m * NCLS:(m + 1) * NCLS].set(wf[m])
    bff = bf.reshape(1, NLOG)
    return (w1f, b1f, w2f, b2f, wff, bff)


def end_to_end_forward(x_nchw, fused):
    """Replicates EndToEndModel.forward exactly (including its quirks)."""
    logits, am = device_forward(x_nchw, fused)
    am_host = np.asarray(jax.block_until_ready(am))   # pulls only 3*B int32

    # TODO(synk): random.randint is a deterministic stand-in; not bit-compatible
    # with torch.randint in the original fallback branch.
    random.seed(0)
    y_pred = []
    for i in range(x_nchw.shape[0]):
        c = int(am_host[i, 0])   # circle
        u = int(am_host[i, 1])   # curve
        l = int(am_host[i, 2])   # line
        # First `if` is NOT part of the elif chain in the original -> kept.
        if c == 1 and u == 0 and l == 0:
            y_pred.append(float(0))
        if c == 0 and u == 0 and l == 1:
            y_pred.append(float(1))
        elif c == 1 and u == 0 and l == 2:
            y_pred.append(float(2))
        elif c == 0 and u == 2 and l == 0:
            y_pred.append(float(3))
        elif c == 0 and u == 0 and l == 3:
            y_pred.append(float(4))
        elif c == 0 and u == 1 and l == 2:
            y_pred.append(float(5))
        elif c == 1 and u == 1 and l == 0:
            y_pred.append(float(6))
        elif c == 0 and u == 0 and l == 2:
            y_pred.append(float(7))
        elif c == 2 and u == 0 and l == 0:
            y_pred.append(float(8))
        elif c == 1 and u == 0 and l == 1:
            y_pred.append(float(9))
        else:
            y_pred.append(float(random.randint(0, 9)))
    return jnp.asarray(y_pred, dtype=jnp.float32), logits


def make_params(key):
    """Deterministic parameter init, stacked over the 3 sub-models."""
    ks = jax.random.split(key, 6)
    w1 = 0.3 * jax.random.normal(ks[0], (NMODELS, 3, 3, CIN, C1), jnp.float32)
    b1 = 0.1 * jax.random.normal(ks[1], (NMODELS, 1, C1), jnp.float32)
    w2 = 0.1 * jax.random.normal(ks[2], (NMODELS, 3, 3, C1, C2), jnp.float32)
    b2 = 0.1 * jax.random.normal(ks[3], (NMODELS, 1, C2), jnp.float32)
    wf = 0.5 * jax.random.normal(ks[4], (NMODELS, C2, NCLS), jnp.float32)
    bf = 0.1 * jax.random.normal(ks[5], (NMODELS, 1, NCLS), jnp.float32)
    return (w1, b1, w2, b2, wf, bf)


def ref_logits(x_nhwc, params):
    """Pure-JAX reference of the 3 un-fused CNNs, for a numeric cross-check."""
    w1, b1, w2, b2, wf, bf = params
    outs = []
    for m in range(NMODELS):
        acc1 = jnp.zeros((B, H1, W1, C1), jnp.float32)
        for dy in range(3):
            for dx in range(3):
                acc1 = acc1 + jnp.einsum(
                    'bhwi,io->bhwo',
                    x_nhwc[:, dy:dy + H1, dx:dx + W1, :], w1[m, dy, dx])
        h1 = jnp.maximum(acc1 + b1[m, 0], 0.0)
        acc2 = jnp.zeros((B, H2, W2, C2), jnp.float32)
        for dy in range(3):
            for dx in range(3):
                acc2 = acc2 + jnp.einsum(
                    'bhwi,io->bhwo',
                    h1[:, dy:dy + H2, dx:dx + W2, :], w2[m, dy, dx])
        h2 = jnp.maximum(acc2 + b2[m, 0], 0.0)
        pooled = jnp.mean(h2, axis=(1, 2))
        outs.append(pooled @ wf[m] + bf[m, 0])
    return jnp.stack(outs)   # [3, B, 4]


if __name__ == "__main__":
    key = jax.random.PRNGKey(0)
    kx, kp = jax.random.split(key)
    # PyTorch-convention NCHW input.
    x = jax.random.normal(kx, (B, CIN, H, W), jnp.float32)
    params = make_params(kp)
    fused = fuse_params(params)

    y_pred, logits = end_to_end_forward(x, fused)
    y_pred = jax.block_until_ready(y_pred)
    logits = jax.block_until_ready(logits)

    # Cross-check the fused Pallas kernel against the un-fused JAX reference.
    x_nhwc = jnp.transpose(x, (0, 2, 3, 1)).astype(jnp.float32)
    ref = ref_logits(x_nhwc, params)
    np.testing.assert_allclose(np.asarray(logits), np.asarray(ref),
                               rtol=1e-3, atol=1e-3)

    assert logits.shape == (NMODELS, B, NCLS)
    assert y_pred.ndim == 1 and y_pred.dtype == jnp.float32
    print("KERNEL_OK")
</pallas_src>

<mosaic_0001>
module attributes {stable_mosaic.version = 11 : i64} {
  func.func @_fused_kernel(%arg0: memref<2x16x16x1xf32, #tpu.memory_space<vmem>>, %arg1: memref<9x24xf32, #tpu.memory_space<vmem>>, %arg2: memref<1x24xf32, #tpu.memory_space<vmem>>, %arg3: memref<216x48xf32, #tpu.memory_space<vmem>>, %arg4: memref<1x48xf32, #tpu.memory_space<vmem>>, %arg5: memref<48x12xf32, #tpu.memory_space<vmem>>, %arg6: memref<1x12xf32, #tpu.memory_space<vmem>>, %arg7: memref<8x128xf32, #tpu.memory_space<vmem>>, %arg8: memref<2x3xi32, #tpu.memory_space<vmem>>) attributes {dimension_semantics = [], scalar_prefetch = 0 : i64, scratch_operands = 0 : i64, tpu.core_type = #tpu.core_type<tc>} {
    %c0 = arith.constant 0 : index
    %c0_0 = arith.constant 0 : index
    %c0_1 = arith.constant 0 : index
    %c0_2 = arith.constant 0 : index
    %0 = vector.load %arg0[%c0, %c0_0, %c0_1, %c0_2] : memref<2x16x16x1xf32, #tpu.memory_space<vmem>>, vector<2x16x16x1xf32>
    %cst = arith.constant 0.000000e+00 : f32
    %1 = vector.broadcast %cst : f32 to vector<2x14x14x24xf32>
    %2 = vector.extract_strided_slice %0 {offsets = [0, 0, 0, 0], sizes = [2, 14, 14, 1], strides = [1, 1, 1, 1]} : vector<2x16x16x1xf32> to vector<2x14x14x1xf32>
    %c0_3 = arith.constant 0 : index
    %c0_4 = arith.constant 0 : index
    %3 = vector.load %arg1[%c0_3, %c0_4] : memref<9x24xf32, #tpu.memory_space<vmem>>, vector<1x24xf32>
    %4 = vector.shape_cast %3 : vector<1x24xf32> to vector<1x1x1x24xf32>
    %5 = vector.broadcast %2 : vector<2x14x14x1xf32> to vector<2x14x14x24xf32>
    %6 = vector.broadcast %4 : vector<1x1x1x24xf32> to vector<2x14x14x24xf32>
    %7 = arith.mulf %5, %6 : vector<2x14x14x24xf32>
    %8 = arith.addf %1, %7 : vector<2x14x14x24xf32>
    %9 = vector.extract_strided_slice %0 {offsets = [0, 0, 1, 0], sizes = [2, 14, 14, 1], strides = [1, 1, 1, 1]} : vector<2x16x16x1xf32> to vector<2x14x14x1xf32>
    %c1 = arith.constant 1 : index
    %c0_5 = arith.constant 0 : index
    %10 = vector.load %arg1[%c1, %c0_5] : memref<9x24xf32, #tpu.memory_space<vmem>>, vector<1x24xf32>
    %11 = vector.shape_cast %10 : vector<1x24xf32> to vector<1x1x1x24xf32>
    %12 = vector.broadcast %9 : vector<2x14x14x1xf32> to vector<2x14x14x24xf32>
    %13 = vector.broadcast %11 : vector<1x1x1x24xf32> to vector<2x14x14x24xf32>
    %14 = arith.mulf %12, %13 : vector<2x14x14x24xf32>
    %15 = arith.addf %8, %14 : vector<2x14x14x24xf32>
    %16 = vector.extract_strided_slice %0 {offsets = [0, 0, 2, 0], sizes = [2, 14, 14, 1], strides = [1, 1, 1, 1]} : vector<2x16x16x1xf32> to vector<2x14x14x1xf32>
    %c2 = arith.constant 2 : index
    %c0_6 = arith.constant 0 : index
    %17 = vector.load %arg1[%c2, %c0_6] : memref<9x24xf32, #tpu.memory_space<vmem>>, vector<1x24xf32>
    %18 = vector.shape_cast %17 : vector<1x24xf32> to vector<1x1x1x24xf32>
    %19 = vector.broadcast %16 : vector<2x14x14x1xf32> to vector<2x14x14x24xf32>
    %20 = vector.broadcast %18 : vector<1x1x1x24xf32> to vector<2x14x14x24xf32>
    %21 = arith.mulf %19, %20 : vector<2x14x14x24xf32>
    %22 = arith.addf %15, %21 : vector<2x14x14x24xf32>
    %23 = vector.extract_strided_slice %0 {offsets = [0, 1, 0, 0], sizes = [2, 14, 14, 1], strides = [1, 1, 1, 1]} : vector<2x16x16x1xf32> to vector<2x14x14x1xf32>
    %c3 = arith.constant 3 : index
    %c0_7 = arith.constant 0 : index
    %24 = vector.load %arg1[%c3, %c0_7] : memref<9x24xf32, #tpu.memory_space<vmem>>, vector<1x24xf32>
    %25 = vector.shape_cast %24 : vector<1x24xf32> to vector<1x1x1x24xf32>
    %26 = vector.broadcast %23 : vector<2x14x14x1xf32> to vector<2x14x14x24xf32>
    %27 = vector.broadcast %25 : vector<1x1x1x24xf32> to vector<2x14x14x24xf32>
    %28 = arith.mulf %26, %27 : vector<2x14x14x24xf32>
    %29 = arith.addf %22, %28 : vector<2x14x14x24xf32>
    %30 = vector.extract_strided_slice %0 {offsets = [0, 1, 1, 0], sizes = [2, 14, 14, 1], strides = [1, 1, 1, 1]} : vector<2x16x16x1xf32> to vector<2x14x14x1xf32>
    %c4 = arith.constant 4 : index
    %c0_8 = arith.constant 0 : index
    %31 = vector.load %arg1[%c4, %c0_8] : memref<9x24xf32, #tpu.memory_space<vmem>>, vector<1x24xf32>
    %32 = vector.shape_cast %31 : vector<1x24xf32> to vector<1x1x1x24xf32>
    %33 = vector.broadcast %30 : vector<2x14x14x1xf32> to vector<2x14x14x24xf32>
    %34 = vector.broadcast %32 : vector<1x1x1x24xf32> to vector<2x14x14x24xf32>
    %35 = arith.mulf %33, %34 : vector<2x14x14x24xf32>
    %36 = arith.addf %29, %35 : vector<2x14x14x24xf32>
    %37 = vector.extract_strided_slice %0 {offsets = [0, 1, 2, 0], sizes = [2, 14, 14, 1], strides = [1, 1, 1, 1]} : vector<2x16x16x1xf32> to vector<2x14x14x1xf32>
    %c5 = arith.constant 5 : index
    %c0_9 = arith.constant 0 : index
    %38 = vector.load %arg1[%c5, %c0_9] : memref<9x24xf32, #tpu.memory_space<vmem>>, vector<1x24xf32>
    %39 = vector.shape_cast %38 : vector<1x24xf32> to vector<1x1x1x24xf32>
    %40 = vector.broadcast %37 : vector<2x14x14x1xf32> to vector<2x14x14x24xf32>
    %41 = vector.broadcast %39 : vector<1x1x1x24xf32> to vector<2x14x14x24xf32>
    %42 = arith.mulf %40, %41 : vector<2x14x14x24xf32>
    %43 = arith.addf %36, %42 : vector<2x14x14x24xf32>
    %44 = vector.extract_strided_slice %0 {offsets = [0, 2, 0, 0], sizes = [2, 14, 14, 1], strides = [1, 1, 1, 1]} : vector<2x16x16x1xf32> to vector<2x14x14x1xf32>
    %c6 = arith.constant 6 : index
    %c0_10 = arith.constant 0 : index
    %45 = vector.load %arg1[%c6, %c0_10] : memref<9x24xf32, #tpu.memory_space<vmem>>, vector<1x24xf32>
    %46 = vector.shape_cast %45 : vector<1x24xf32> to vector<1x1x1x24xf32>
    %47 = vector.broadcast %44 : vector<2x14x14x1xf32> to vector<2x14x14x24xf32>
    %48 = vector.broadcast %46 : vector<1x1x1x24xf32> to vector<2x14x14x24xf32>
    %49 = arith.mulf %47, %48 : vector<2x14x14x24xf32>
    %50 = arith.addf %43, %49 : vector<2x14x14x24xf32>
    %51 = vector.extract_strided_slice %0 {offsets = [0, 2, 1, 0], sizes = [2, 14, 14, 1], strides = [1, 1, 1, 1]} : vector<2x16x16x1xf32> to vector<2x14x14x1xf32>
    %c7 = arith.constant 7 : index
    %c0_11 = arith.constant 0 : index
    %52 = vector.load %arg1[%c7, %c0_11] : memref<9x24xf32, #tpu.memory_space<vmem>>, vector<1x24xf32>
    %53 = vector.shape_cast %52 : vector<1x24xf32> to vector<1x1x1x24xf32>
    %54 = vector.broadcast %51 : vector<2x14x14x1xf32> to vector<2x14x14x24xf32>
    %55 = vector.broadcast %53 : vector<1x1x1x24xf32> to vector<2x14x14x24xf32>
    %56 = arith.mulf %54, %55 : vector<2x14x14x24xf32>
    %57 = arith.addf %50, %56 : vector<2x14x14x24xf32>
    %58 = vector.extract_strided_slice %0 {offsets = [0, 2, 2, 0], sizes = [2, 14, 14, 1], strides = [1, 1, 1, 1]} : vector<2x16x16x1xf32> to vector<2x14x14x1xf32>
    %c8 = arith.constant 8 : index
    %c0_12 = arith.constant 0 : index
    %59 = vector.load %arg1[%c8, %c0_12] : memref<9x24xf32, #tpu.memory_space<vmem>>, vector<1x24xf32>
    %60 = vector.shape_cast %59 : vector<1x24xf32> to vector<1x1x1x24xf32>
    %61 = vector.broadcast %58 : vector<2x14x14x1xf32> to vector<2x14x14x24xf32>
    %62 = vector.broadcast %60 : vector<1x1x1x24xf32> to vector<2x14x14x24xf32>
    %63 = arith.mulf %61, %62 : vector<2x14x14x24xf32>
    %64 = arith.addf %57, %63 : vector<2x14x14x24xf32>
    %c0_13 = arith.constant 0 : index
    %c0_14 = arith.constant 0 : index
    %65 = vector.load %arg2[%c0_13, %c0_14] : memref<1x24xf32, #tpu.memory_space<vmem>>, vector<1x24xf32>
    %66 = vector.shape_cast %65 : vector<1x24xf32> to vector<1x1x1x24xf32>
    %67 = vector.broadcast %66 : vector<1x1x1x24xf32> to vector<2x14x14x24xf32>
    %68 = arith.addf %64, %67 : vector<2x14x14x24xf32>
    %cst_15 = arith.constant 0.000000e+00 : f32
    %69 = vector.broadcast %cst_15 : f32 to vector<2x14x14x24xf32>
    %70 = arith.maximumf %68, %69 : vector<2x14x14x24xf32>
    %71 = vector.extract_strided_slice %70 {offsets = [0, 0, 0, 0], sizes = [2, 12, 12, 24], strides = [1, 1, 1, 1]} : vector<2x14x14x24xf32> to vector<2x12x12x24xf32>
    %72 = vector.extract_strided_slice %70 {offsets = [0, 0, 1, 0], sizes = [2, 12, 12, 24], strides = [1, 1, 1, 1]} : vector<2x14x14x24xf32> to vector<2x12x12x24xf32>
    %73 = vector.extract_strided_slice %70 {offsets = [0, 0, 2, 0], sizes = [2, 12, 12, 24], strides = [1, 1, 1, 1]} : vector<2x14x14x24xf32> to vector<2x12x12x24xf32>
    %74 = vector.extract_strided_slice %70 {offsets = [0, 1, 0, 0], sizes = [2, 12, 12, 24], strides = [1, 1, 1, 1]} : vector<2x14x14x24xf32> to vector<2x12x12x24xf32>
    %75 = vector.extract_strided_slice %70 {offsets = [0, 1, 1, 0], sizes = [2, 12, 12, 24], strides = [1, 1, 1, 1]} : vector<2x14x14x24xf32> to vector<2x12x12x24xf32>
    %76 = vector.extract_strided_slice %70 {offsets = [0, 1, 2, 0], sizes = [2, 12, 12, 24], strides = [1, 1, 1, 1]} : vector<2x14x14x24xf32> to vector<2x12x12x24xf32>
    %77 = vector.extract_strided_slice %70 {offsets = [0, 2, 0, 0], sizes = [2, 12, 12, 24], strides = [1, 1, 1, 1]} : vector<2x14x14x24xf32> to vector<2x12x12x24xf32>
    %78 = vector.extract_strided_slice %70 {offsets = [0, 2, 1, 0], sizes = [2, 12, 12, 24], strides = [1, 1, 1, 1]} : vector<2x14x14x24xf32> to vector<2x12x12x24xf32>
    %79 = vector.extract_strided_slice %70 {offsets = [0, 2, 2, 0], sizes = [2, 12, 12, 24], strides = [1, 1, 1, 1]} : vector<2x14x14x24xf32> to vector<2x12x12x24xf32>
    %80 = tpu.concatenate %71, %72, %73, %74, %75, %76, %77, %78, %79 in 3 : vector<2x12x12x24xf32>, vector<2x12x12x24xf32>, vector<2x12x12x24xf32>, vector<2x12x12x24xf32>, vector<2x12x12x24xf32>, vector<2x12x12x24xf32>, vector<2x12x12x24xf32>, vector<2x12x12x24xf32>, vector<2x12x12x24xf32> -> vector<2x12x12x216xf32>
    %81 = vector.shape_cast %80 : vector<2x12x12x216xf32> to vector<288x216xf32>
    %c0_16 = arith.constant 0 : index
    %c0_17 = arith.constant 0 : index
    %82 = vector.load %arg3[%c0_16, %c0_17] : memref<216x48xf32, #tpu.memory_space<vmem>>, vector<216x48xf32>
    %cst_18 = arith.constant dense<0.000000e+00> : vector<288x48xf32>
    %83 = tpu.matmul %81, %82, %cst_18 {dimension_numbers = #tpu.dot_dimension_numbers<[1], [0], [0], [1], [0, 0, 1, 1], [], []>} : vector<288x216xf32>, vector<216x48xf32>, vector<288x48xf32> -> vector<288x48xf32>
    %c0_19 = arith.constant 0 : index
    %c0_20 = arith.constant 0 : index
    %84 = vector.load %arg4[%c0_19, %c0_20] : memref<1x48xf32, #tpu.memory_space<vmem>>, vector<1x48xf32>
    %85 = vector.broadcast %84 : vector<1x48xf32> to vector<288x48xf32>
    %86 = arith.addf %83, %85 : vector<288x48xf32>
    %cst_21 = arith.constant 0.000000e+00 : f32
    %87 = vector.broadcast %cst_21 : f32 to vector<288x48xf32>
    %88 = arith.maximumf %86, %87 : vector<288x48xf32>
    %89 = vector.shape_cast %88 : vector<288x48xf32> to vector<2x144x48xf32>
    %cst_22 = arith.constant dense<0.000000e+00> : vector<2x48xf32>
    %90 = vector.multi_reduction <add>, %89, %cst_22 [1] : vector<2x144x48xf32> to vector<2x48xf32>
    %cst_23 = arith.constant 1.440000e+02 : f32
    %91 = vector.broadcast %cst_23 : f32 to vector<2x48xf32>
    %92 = arith.divf %90, %91 : vector<2x48xf32>
    %c0_24 = arith.constant 0 : index
    %c0_25 = arith.constant 0 : index
    %93 = vector.load %arg5[%c0_24, %c0_25] : memref<48x12xf32, #tpu.memory_space<vmem>>, vector<48x12xf32>
    %cst_26 = arith.constant dense<0.000000e+00> : vector<2x12xf32>
    %94 = tpu.matmul %92, %93, %cst_26 {dimension_numbers = #tpu.dot_dimension_numbers<[1], [0], [0], [1], [0, 0, 1, 1], [], []>} : vector<2x48xf32>, vector<48x12xf32>, vector<2x12xf32> -> vector<2x12xf32>
    %c0_27 = arith.constant 0 : index
    %c0_28 = arith.constant 0 : index
    %95 = vector.load %arg6[%c0_27, %c0_28] : memref<1x12xf32, #tpu.memory_space<vmem>>, vector<1x12xf32>
    %96 = vector.broadcast %95 : vector<1x12xf32> to vector<2x12xf32>
    %97 = arith.addf %94, %96 : vector<2x12xf32>
    %98 = tpu.iota {dimensions = array<i32: 1>} : vector<2x4xi32>
    %99 = vector.extract_strided_slice %97 {offsets = [0, 0], sizes = [2, 4], strides = [1, 1]} : vector<2x12xf32> to vector<2x4xf32>
    %cst_29 = arith.constant dense<0xFF800000> : vector<2xf32>
    %100 = vector.multi_reduction <maximumf>, %99, %cst_29 [1] : vector<2x4xf32> to vector<2xf32>
    %101 = vector.shape_cast %100 : vector<2xf32> to vector<2x1xf32>
    %102 = vector.broadcast %101 : vector<2x1xf32> to vector<2x4xf32>
    %103 = arith.cmpf oge, %99, %102 : vector<2x4xf32>
    %c4_i32 = arith.constant 4 : i32
    %104 = vector.broadcast %c4_i32 : i32 to vector<2x4xi32>
    %105 = arith.select %103, %98, %104 : vector<2x4xi1>, vector<2x4xi32>
    %cst_30 = arith.constant dense<2147483647> : vector<2xi32>
    %106 = vector.multi_reduction <minsi>, %105, %cst_30 [1] : vector<2x4xi32> to vector<2xi32>
    %107 = vector.shape_cast %106 : vector<2xi32> to vector<2x1xi32>
    %108 = vector.extract_strided_slice %97 {offsets = [0, 4], sizes = [2, 4], strides = [1, 1]} : vector<2x12xf32> to vector<2x4xf32>
    %cst_31 = arith.constant dense<0xFF800000> : vector<2xf32>
    %109 = vector.multi_reduction <maximumf>, %108, %cst_31 [1] : vector<2x4xf32> to vector<2xf32>
    %110 = vector.shape_cast %109 : vector<2xf32> to vector<2x1xf32>
    %111 = vector.broadcast %110 : vector<2x1xf32> to vector<2x4xf32>
    %112 = arith.cmpf oge, %108, %111 : vector<2x4xf32>
    %c4_i32_32 = arith.constant 4 : i32
    %113 = vector.broadcast %c4_i32_32 : i32 to vector<2x4xi32>
    %114 = arith.select %112, %98, %113 : vector<2x4xi1>, vector<2x4xi32>
    %cst_33 = arith.constant dense<2147483647> : vector<2xi32>
    %115 = vector.multi_reduction <minsi>, %114, %cst_33 [1] : vector<2x4xi32> to vector<2xi32>
    %116 = vector.shape_cast %115 : vector<2xi32> to vector<2x1xi32>
    %117 = vector.extract_strided_slice %97 {offsets = [0, 8], sizes = [2, 4], strides = [1, 1]} : vector<2x12xf32> to vector<2x4xf32>
    %cst_34 = arith.constant dense<0xFF800000> : vector<2xf32>
    %118 = vector.multi_reduction <maximumf>, %117, %cst_34 [1] : vector<2x4xf32> to vector<2xf32>
    %119 = vector.shape_cast %118 : vector<2xf32> to vector<2x1xf32>
    %120 = vector.broadcast %119 : vector<2x1xf32> to vector<2x4xf32>
    %121 = arith.cmpf oge, %117, %120 : vector<2x4xf32>
    %c4_i32_35 = arith.constant 4 : i32
    %122 = vector.broadcast %c4_i32_35 : i32 to vector<2x4xi32>
    %123 = arith.select %121, %98, %122 : vector<2x4xi1>, vector<2x4xi32>
    %cst_36 = arith.constant dense<2147483647> : vector<2xi32>
    %124 = vector.multi_reduction <minsi>, %123, %cst_36 [1] : vector<2x4xi32> to vector<2xi32>
    %125 = vector.shape_cast %124 : vector<2xi32> to vector<2x1xi32>
    %126 = tpu.concatenate %107, %116, %125 in 1 : vector<2x1xi32>, vector<2x1xi32>, vector<2x1xi32> -> vector<2x3xi32>
    %cst_37 = arith.constant 0.000000e+00 : f32
    %127 = vector.broadcast %cst_37 : f32 to vector<8x128xf32>
    %c0_38 = arith.constant 0 : index
    %c0_39 = arith.constant 0 : index
    %128 = vector.load %arg7[%c0_38, %c0_39] : memref<8x128xf32, #tpu.memory_space<vmem>>, vector<8x128xf32>
    tpu.vector_store %arg7[%c0_38, %c0_39], %127 {strides = array<i32>} : memref<8x128xf32, #tpu.memory_space<vmem>>, vector<8x128xf32>,
    %c0_40 = arith.constant 0 : index
    %c0_41 = arith.constant 0 : index
    %129 = vector.load %arg7[%c0_40, %c0_41] : memref<8x128xf32, #tpu.memory_space<vmem>>, vector<2x12xf32>
    tpu.vector_store %arg7[%c0_40, %c0_41], %97 {strides = array<i32>} : memref<8x128xf32, #tpu.memory_space<vmem>>, vector<2x12xf32>,
    %c0_42 = arith.constant 0 : index
    %c0_43 = arith.constant 0 : index
    %130 = vector.load %arg8[%c0_42, %c0_43] : memref<2x3xi32, #tpu.memory_space<vmem>>, vector<2x3xi32>
    tpu.vector_store %arg8[%c0_42, %c0_43], %126 {strides = array<i32>} : memref<2x3xi32, #tpu.memory_space<vmem>>, vector<2x3xi32>,
    return
  }
}

</mosaic_0001>

<llo_original>
// kernel: device_forward.1
$region0: #{device_forward.1}
  #allocation0 [shape = 'u32[]', space=smem, size = 0x4, offset = 0x4, fixed_abs, tag = 'smem constant byte address 0x4 - core index']
  #allocation1 [shape = 'u32[144,128]{1,0:T(1,128)}', space=vmem, size = 0x12000, scoped, tag = 'internal scratch']
  %s0 = inlined_call_operand.vmem [shape: f32[2,16,16,1], index: 0, kind: input, shape index: {}]
  %s1 = inlined_call_operand.vmem [shape: f32[9,24], index: 1, kind: input, shape index: {}]
  %s2 = inlined_call_operand.vmem [shape: f32[1,24], index: 2, kind: input, shape index: {}]
  %s3 = inlined_call_operand.vmem [shape: f32[216,48], index: 3, kind: input, shape index: {}]
  %s4 = inlined_call_operand.vmem [shape: f32[1,48], index: 4, kind: input, shape index: {}]
  %s5 = inlined_call_operand.vmem [shape: f32[48,12], index: 5, kind: input, shape index: {}]
  %s6 = inlined_call_operand.vmem [shape: f32[1,12], index: 6, kind: input, shape index: {}]
  %s7 = inlined_call_operand.vmem [shape: f32[8,128], index: 7, kind: output, shape index: {0}]
  %s8 = inlined_call_operand.hbm [shape: s32[2,3], index: 8, kind: output, shape index: {1}]
  %9 = xla_tuple %s7, %s8
  %s10 = sld [smem:[#allocation0]]
  $region46: #{device_forward.1} parent=0
    _
  %s12 = ssub.s32 1, %s10
  %s13 = scalar_select 0, %s12, %s10
  $region1: #{device_forward.1} parent=0
    #allocation2 [shape = 'u8[1024]{0}', space=vmem, size = 0x400, scoped, tag = 'output window, operand 1, single buffered']
    #allocation3 [shape = 's32[1]{0}', space=sflag, size = 0x4, scoped, tag = 'scoped memory for device_forward.1']
    %14 = vsyncpa [#allocation3], 0
    // Predicated region
    $region2: #{device_forward.1} parent=1 // pred_check
      _
    $region3: #{device_forward.1} parent=1 // pred_check_branch
      %16 = sbr.rel (0) target = $region5
    $region4: #{device_forward.1} parent=1 // pred_region
      _
    $region5: #{device_forward.1} parent=1 // pred_fallthru
      _
    // Predicated region
    $region6: #{device_forward.1} parent=1 // pred_check
      _
    $region7: #{device_forward.1} parent=1 // pred_check_branch
      %18 = sbr.rel (0) target = $region9
    $region8: #{device_forward.1} parent=1 // pred_region
      _
    $region9: #{device_forward.1} parent=1 // pred_fallthru
      _
    // Predicated region
    $region10: #{device_forward.1} parent=1 // pred_check
      _
    $region11: #{device_forward.1} parent=1 // pred_check_branch
      %20 = sbr.rel (0) target = $region13
    $region12: #{device_forward.1} parent=1 // pred_region
      _
    $region13: #{device_forward.1} parent=1 // pred_fallthru
      _
    // Predicated region
    $region14: #{device_forward.1} parent=1 // pred_check
      _
    $region15: #{device_forward.1} parent=1 // pred_check_branch
      %22 = sbr.rel (0) target = $region17
    $region16: #{device_forward.1} parent=1 // pred_region
      _
    $region17: #{device_forward.1} parent=1 // pred_fallthru
      _
    // Predicated region
    $region18: #{device_forward.1} parent=1 // pred_check
      _
    $region19: #{device_forward.1} parent=1 // pred_check_branch
      %24 = sbr.rel (0) target = $region21
    $region20: #{device_forward.1} parent=1 // pred_region
      _
    $region21: #{device_forward.1} parent=1 // pred_fallthru
      _
    // Predicated region
    $region22: #{device_forward.1} parent=1 // pred_check
      _
    $region23: #{device_forward.1} parent=1 // pred_check_branch
      %26 = sbr.rel (0) target = $region25
    $region24: #{device_forward.1} parent=1 // pred_region
      _
    $region25: #{device_forward.1} parent=1 // pred_fallthru
      _
    // Predicated region
    $region26: #{device_forward.1} parent=1 // pred_check
      _
    $region27: #{device_forward.1} parent=1 // pred_check_branch
      %28 = sbr.rel (0) target = $region29
    $region28: #{device_forward.1} parent=1 // pred_region
      _
    $region29: #{device_forward.1} parent=1 // pred_fallthru
      _
    %v29 = vld [vmem:[%s0] sm:$0xff]
    %v30 = vld [vmem:[%s0 + $0x8] sm:$0xff]
    %v31 = vld [vmem:[%s0 + $0x10] sm:$0xff]
    %v32 = vld [vmem:[%s0 + $0x18] sm:$0xff]
    %v33 = vld [vmem:[%s0 + $0x20] sm:$0xff]
    %v34 = vld [vmem:[%s0 + $0x28] sm:$0xff]
    %v35 = vld [vmem:[%s0 + $0x30] sm:$0xff]
    %v36 = vld [vmem:[%s0 + $0x38] sm:$0xff]
    %v37 = vld [vmem:[%s0 + $0x40] sm:$0xff]
    %v38 = vld [vmem:[%s0 + $0x48] sm:$0xff]
    %v39 = vld [vmem:[%s0 + $0x50] sm:$0xff]
    %v40 = vld [vmem:[%s0 + $0x58] sm:$0xff]
    %v41 = vld [vmem:[%s0 + $0x60] sm:$0xff]
    %v42 = vld [vmem:[%s0 + $0x68] sm:$0xff]
    %v43 = vld [vmem:[%s0 + $0x70] sm:$0xff]
    %v44 = vld [vmem:[%s0 + $0x78] sm:$0xff]
    %v45 = vld [vmem:[%s0 + $0x80] sm:$0xff]
    %v46 = vld [vmem:[%s0 + $0x88] sm:$0xff]
    %v47 = vld [vmem:[%s0 + $0x90] sm:$0xff]
    %v48 = vld [vmem:[%s0 + $0x98] sm:$0xff]
    %v49 = vld [vmem:[%s0 + $0xa0] sm:$0xff]
    %v50 = vld [vmem:[%s0 + $0xa8] sm:$0xff]
    %v51 = vld [vmem:[%s0 + $0xb0] sm:$0xff]
    %v52 = vld [vmem:[%s0 + $0xb8] sm:$0xff]
    %v53 = vld [vmem:[%s0 + $0xc0] sm:$0xff]
    %v54 = vld [vmem:[%s0 + $0xc8] sm:$0xff]
    %v55 = vld [vmem:[%s0 + $0xd0] sm:$0xff]
    %v56 = vld [vmem:[%s0 + $0xd8] sm:$0xff]
    %v57 = vld [vmem:[%s0 + $0xe0] sm:$0xff]
    %v58 = vld [vmem:[%s0 + $0xe8] sm:$0xff]
    %v59 = vld [vmem:[%s0 + $0xf0] sm:$0xff]
    %v60 = vld [vmem:[%s0 + $0xf8] sm:$0xff]
    %v61 = vld [vmem:[%s0 + $0x100] sm:$0xff]
    %v62 = vld [vmem:[%s0 + $0x108] sm:$0xff]
    %v63 = vld [vmem:[%s0 + $0x110] sm:$0xff]
    %v64 = vld [vmem:[%s0 + $0x118] sm:$0xff]
    %v65 = vld [vmem:[%s0 + $0x120] sm:$0xff]
    %v66 = vld [vmem:[%s0 + $0x128] sm:$0xff]
    %v67 = vld [vmem:[%s0 + $0x130] sm:$0xff]
    %v68 = vld [vmem:[%s0 + $0x138] sm:$0xff]
    %v69 = vld [vmem:[%s0 + $0x140] sm:$0xff]
    %v70 = vld [vmem:[%s0 + $0x148] sm:$0xff]
    %v71 = vld [vmem:[%s0 + $0x150] sm:$0xff]
    %v72 = vld [vmem:[%s0 + $0x158] sm:$0xff]
    %v73 = vld [vmem:[%s0 + $0x160] sm:$0xff]
    %v74 = vld [vmem:[%s0 + $0x168] sm:$0xff]
    %v75 = vld [vmem:[%s0 + $0x170] sm:$0xff]
    %v76 = vld [vmem:[%s0 + $0x178] sm:$0xff]
    %v77 = vld [vmem:[%s0 + $0x180] sm:$0xff]
    %v78 = vld [vmem:[%s0 + $0x188] sm:$0xff]
    %v79 = vld [vmem:[%s0 + $0x190] sm:$0xff]
    %v80 = vld [vmem:[%s0 + $0x198] sm:$0xff]
    %v81 = vld [vmem:[%s0 + $0x1a0] sm:$0xff]
    %v82 = vld [vmem:[%s0 + $0x1a8] sm:$0xff]
    %v83 = vld [vmem:[%s0 + $0x1b0] sm:$0xff]
    %v84 = vld [vmem:[%s0 + $0x1b8] sm:$0xff]
    %v85 = vld [vmem:[%s0 + $0x1c0] sm:$0xff]
    %v86 = vld [vmem:[%s0 + $0x1c8] sm:$0xff]
    %v87 = vld [vmem:[%s0 + $0x1d0] sm:$0xff]
    %v88 = vld [vmem:[%s0 + $0x1d8] sm:$0xff]
    %v89 = vld [vmem:[%s0 + $0x1e0] sm:$0xff]
    %v90 = vld [vmem:[%s0 + $0x1e8] sm:$0xff]
    %v91 = vld [vmem:[%s0 + $0x1f0] sm:$0xff]
    %v92 = vld [vmem:[%s0 + $0x1f8] sm:$0xff]
    %v93 = vld [vmem:[%s1] sm:$0x1]
    %95 = vset.pattern.permute.xlu0 0
    %96 = vperm.xlu0 %95, %v29
    %v97 = vpop.permute.xlu0 %96
    %100 = vset.pattern.permute.xlu0 0
    %101 = vperm.xlu0 %100, %v30
    %v102 = vpop.permute.xlu0 %101
    %105 = vset.pattern.permute.xlu0 0
    %106 = vperm.xlu0 %105, %v31
    %v107 = vpop.permute.xlu0 %106
    %110 = vset.pattern.permute.xlu0 0
    %111 = vperm.xlu0 %110, %v32
    %v112 = vpop.permute.xlu0 %111
    %115 = vset.pattern.permute.xlu0 0
    %116 = vperm.xlu0 %115, %v33
    %v117 = vpop.permute.xlu0 %116
    %120 = vset.pattern.permute.xlu0 0
    %121 = vperm.xlu0 %120, %v34
    %v122 = vpop.permute.xlu0 %121
    %125 = vset.pattern.permute.xlu0 0
    %126 = vperm.xlu0 %125, %v35
    %v127 = vpop.permute.xlu0 %126
    %130 = vset.pattern.permute.xlu0 0
    %131 = vperm.xlu0 %130, %v36
    %v132 = vpop.permute.xlu0 %131
    %135 = vset.pattern.permute.xlu0 0
    %136 = vperm.xlu0 %135, %v37
    %v137 = vpop.permute.xlu0 %136
    %140 = vset.pattern.permute.xlu0 0
    %141 = vperm.xlu0 %140, %v38
    %v142 = vpop.permute.xlu0 %141
    %145 = vset.pattern.permute.xlu0 0
    %146 = vperm.xlu0 %145, %v39
    %v147 = vpop.permute.xlu0 %146
    %150 = vset.pattern.permute.xlu0 0
    %151 = vperm.xlu0 %150, %v40
    %v152 = vpop.permute.xlu0 %151
    %155 = vset.pattern.permute.xlu0 0
    %156 = vperm.xlu0 %155, %v41
    %v157 = vpop.permute.xlu0 %156
    %160 = vset.pattern.permute.xlu0 0
    %161 = vperm.xlu0 %160, %v42
    %v162 = vpop.permute.xlu0 %161
    %165 = vset.pattern.permute.xlu0 0
    %166 = vperm.xlu0 %165, %v43
    %v167 = vpop.permute.xlu0 %166
    %170 = vset.pattern.permute.xlu0 0
    %171 = vperm.xlu0 %170, %v44
    %v172 = vpop.permute.xlu0 %171
    %175 = vset.pattern.permute.xlu0 0
    %176 = vperm.xlu0 %175, %v45
    %v177 = vpop.permute.xlu0 %176
    %180 = vset.pattern.permute.xlu0 0
    %181 = vperm.xlu0 %180, %v46
    %v182 = vpop.permute.xlu0 %181
    %185 = vset.pattern.permute.xlu0 0
    %186 = vperm.xlu0 %185, %v47
    %v187 = vpop.permute.xlu0 %186
    %190 = vset.pattern.permute.xlu0 0
    %191 = vperm.xlu0 %190, %v48
    %v192 = vpop.permute.xlu0 %191
    %195 = vset.pattern.permute.xlu0 0
    %196 = vperm.xlu0 %195, %v49
    %v197 = vpop.permute.xlu0 %196
    %200 = vset.pattern.permute.xlu0 0
    %201 = vperm.xlu0 %200, %v50
    %v202 = vpop.permute.xlu0 %201
    %205 = vset.pattern.permute.xlu0 0
    %206 = vperm.xlu0 %205, %v51
    %v207 = vpop.permute.xlu0 %206
    %210 = vset.pattern.permute.xlu0 0
    %211 = vperm.xlu0 %210, %v52
    %v212 = vpop.permute.xlu0 %211
    %215 = vset.pattern.permute.xlu0 0
    %216 = vperm.xlu0 %215, %v53
    %v217 = vpop.permute.xlu0 %216
    %220 = vset.pattern.permute.xlu0 0
    %221 = vperm.xlu0 %220, %v54
    %v222 = vpop.permute.xlu0 %221
    %225 = vset.pattern.permute.xlu0 0
    %226 = vperm.xlu0 %225, %v55
    %v227 = vpop.permute.xlu0 %226
    %230 = vset.pattern.permute.xlu0 0
    %231 = vperm.xlu0 %230, %v56
    %v232 = vpop.permute.xlu0 %231
    %235 = vset.pattern.permute.xlu0 0
    %236 = vperm.xlu0 %235, %v61
    %v237 = vpop.permute.xlu0 %236
    %240 = vset.pattern.permute.xlu0 0
    %241 = vperm.xlu0 %240, %v62
    %v242 = vpop.permute.xlu0 %241
    %245 = vset.pattern.permute.xlu0 0
    %246 = vperm.xlu0 %245, %v63
    %v247 = vpop.permute.xlu0 %246
    %250 = vset.pattern.permute.xlu0 0
    %251 = vperm.xlu0 %250, %v64
    %v252 = vpop.permute.xlu0 %251
    %255 = vset.pattern.permute.xlu0 0
    %256 = vperm.xlu0 %255, %v65
    %v257 = vpop.permute.xlu0 %256
    %260 = vset.pattern.permute.xlu0 0
    %261 = vperm.xlu0 %260, %v66
    %v262 = vpop.permute.xlu0 %261
    %265 = vset.pattern.permute.xlu0 0
    %266 = vperm.xlu0 %265, %v67
    %v267 = vpop.permute.xlu0 %266
    %270 = vset.pattern.permute.xlu0 0
    %271 = vperm.xlu0 %270, %v68
    %v272 = vpop.permute.xlu0 %271
    %275 = vset.pattern.permute.xlu0 0
    %276 = vperm.xlu0 %275, %v69
    %v277 = vpop.permute.xlu0 %276
    %280 = vset.pattern.permute.xlu0 0
    %281 = vperm.xlu0 %280, %v70
    %v282 = vpop.permute.xlu0 %281
    %285 = vset.pattern.permute.xlu0 0
    %286 = vperm.xlu0 %285, %v71
    %v287 = vpop.permute.xlu0 %286
    %290 = vset.pattern.permute.xlu0 0
    %291 = vperm.xlu0 %290, %v72
    %v292 = vpop.permute.xlu0 %291
    %295 = vset.pattern.permute.xlu0 0
    %296 = vperm.xlu0 %295, %v73
    %v297 = vpop.permute.xlu0 %296
    %300 = vset.pattern.permute.xlu0 0
    %301 = vperm.xlu0 %300, %v74
    %v302 = vpop.permute.xlu0 %301
    %305 = vset.pattern.permute.xlu0 0
    %306 = vperm.xlu0 %305, %v75
    %v307 = vpop.permute.xlu0 %306
    %310 = vset.pattern.permute.xlu0 0
    %311 = vperm.xlu0 %310, %v76
    %v312 = vpop.permute.xlu0 %311
    %315 = vset.pattern.permute.xlu0 0
    %316 = vperm.xlu0 %315, %v77
    %v317 = vpop.permute.xlu0 %316
    %320 = vset.pattern.permute.xlu0 0
    %321 = vperm.xlu0 %320, %v78
    %v322 = vpop.permute.xlu0 %321
    %325 = vset.pattern.permute.xlu0 0
    %326 = vperm.xlu0 %325, %v79
    %v327 = vpop.permute.xlu0 %326
    %330 = vset.pattern.permute.xlu0 0
    %331 = vperm.xlu0 %330, %v80
    %v332 = vpop.permute.xlu0 %331
    %335 = vset.pattern.permute.xlu0 0
    %336 = vperm.xlu0 %335, %v81
    %v337 = vpop.permute.xlu0 %336
    %340 = vset.pattern.permute.xlu0 0
    %341 = vperm.xlu0 %340, %v82
    %v342 = vpop.permute.xlu0 %341
    %345 = vset.pattern.permute.xlu0 0
    %346 = vperm.xlu0 %345, %v83
    %v347 = vpop.permute.xlu0 %346
    %350 = vset.pattern.permute.xlu0 0
    %351 = vperm.xlu0 %350, %v84
    %v352 = vpop.permute.xlu0 %351
    %355 = vset.pattern.permute.xlu0 0
    %356 = vperm.xlu0 %355, %v85
    %v357 = vpop.permute.xlu0 %356
    %360 = vset.pattern.permute.xlu0 0
    %361 = vperm.xlu0 %360, %v86
    %v362 = vpop.permute.xlu0 %361
    %365 = vset.pattern.permute.xlu0 0
    %366 = vperm.xlu0 %365, %v87
    %v367 = vpop.permute.xlu0 %366
    %370 = vset.pattern.permute.xlu0 0
    %371 = vperm.xlu0 %370, %v88
    %v372 = vpop.permute.xlu0 %371
    %v374 = vlaneseq
    %v375 = vshrl.u32 %v374, 7
    %v376 = vsub.s32 0, %v375
    %v377 = vrot.slane %v93, %v376
    %v378 = vmul.f32 %v97, %v377
    %v379 = vmul.f32 %v102, %v377
    %v380 = vmul.f32 %v107, %v377
    %v381 = vmul.f32 %v112, %v377
    %v382 = vmul.f32 %v117, %v377
    %v383 = vmul.f32 %v122, %v377
    %v384 = vmul.f32 %v127, %v377
    %v385 = vmul.f32 %v132, %v377
    %v386 = vmul.f32 %v137, %v377
    %v387 = vmul.f32 %v142, %v377
    %v388 = vmul.f32 %v147, %v377
    %v389 = vmul.f32 %v152, %v377
    %v390 = vmul.f32 %v157, %v377
    %v391 = vmul.f32 %v162, %v377
    %v392 = vmul.f32 %v167, %v377
    %v393 = vmul.f32 %v172, %v377
    %v394 = vmul.f32 %v177, %v377
    %v395 = vmul.f32 %v182, %v377
    %v396 = vmul.f32 %v187, %v377
    %v397 = vmul.f32 %v192, %v377
    %v398 = vmul.f32 %v197, %v377
    %v399 = vmul.f32 %v202, %v377
    %v400 = vmul.f32 %v207, %v377
    %v401 = vmul.f32 %v212, %v377
    %v402 = vmul.f32 %v217, %v377
    %v403 = vmul.f32 %v222, %v377
    %v404 = vmul.f32 %v227, %v377
    %v405 = vmul.f32 %v232, %v377
    %v406 = vmul.f32 %v237, %v377
    %v407 = vmul.f32 %v242, %v377
    %v408 = vmul.f32 %v247, %v377
    %v409 = vmul.f32 %v252, %v377
    %v410 = vmul.f32 %v257, %v377
    %v411 = vmul.f32 %v262, %v377
    %v412 = vmul.f32 %v267, %v377
    %v413 = vmul.f32 %v272, %v377
    %v414 = vmul.f32 %v277, %v377
    %v415 = vmul.f32 %v282, %v377
    %v416 = vmul.f32 %v287, %v377
    %v417 = vmul.f32 %v292, %v377
    %v418 = vmul.f32 %v297, %v377
    %v419 = vmul.f32 %v302, %v377
    %v420 = vmul.f32 %v307, %v377
    %v421 = vmul.f32 %v312, %v377
    %v422 = vmul.f32 %v317, %v377
    %v423 = vmul.f32 %v322, %v377
    %v424 = vmul.f32 %v327, %v377
    %v425 = vmul.f32 %v332, %v377
    %v426 = vmul.f32 %v337, %v377
    %v427 = vmul.f32 %v342, %v377
    %v428 = vmul.f32 %v347, %v377
    %v429 = vmul.f32 %v352, %v377
    %v430 = vmul.f32 %v357, %v377
    %v431 = vmul.f32 %v362, %v377
    %v432 = vmul.f32 %v367, %v377
    %v433 = vmul.f32 %v372, %v377
    %v434 = vadd.f32 %v378, 0.0
    %v435 = vadd.f32 %v379, 0.0
    %v436 = vadd.f32 %v380, 0.0
    %v437 = vadd.f32 %v381, 0.0
    %v438 = vadd.f32 %v382, 0.0
    %v439 = vadd.f32 %v383, 0.0
    %v440 = vadd.f32 %v384, 0.0
    %v441 = vadd.f32 %v385, 0.0
    %v442 = vadd.f32 %v386, 0.0
    %v443 = vadd.f32 %v387, 0.0
    %v444 = vadd.f32 %v388, 0.0
    %v445 = vadd.f32 %v389, 0.0
    %v446 = vadd.f32 %v390, 0.0
    %v447 = vadd.f32 %v391, 0.0
    %v448 = vadd.f32 %v392, 0.0
    %v449 = vadd.f32 %v393, 0.0
    %v450 = vadd.f32 %v394, 0.0
    %v451 = vadd.f32 %v395, 0.0
    %v452 = vadd.f32 %v396, 0.0
    %v453 = vadd.f32 %v397, 0.0
    %v454 = vadd.f32 %v398, 0.0
    %v455 = vadd.f32 %v399, 0.0
    %v456 = vadd.f32 %v400, 0.0
    %v457 = vadd.f32 %v401, 0.0
    %v458 = vadd.f32 %v402, 0.0
    %v459 = vadd.f32 %v403, 0.0
    %v460 = vadd.f32 %v404, 0.0
    %v461 = vadd.f32 %v405, 0.0
    %v462 = vadd.f32 %v406, 0.0
    %v463 = vadd.f32 %v407, 0.0
    %v464 = vadd.f32 %v408, 0.0
    %v465 = vadd.f32 %v409, 0.0
    %v466 = vadd.f32 %v410, 0.0
    %v467 = vadd.f32 %v411, 0.0
    %v468 = vadd.f32 %v412, 0.0
    %v469 = vadd.f32 %v413, 0.0
    %v470 = vadd.f32 %v414, 0.0
    %v471 = vadd.f32 %v415, 0.0
    %v472 = vadd.f32 %v416, 0.0
    %v473 = vadd.f32 %v417, 0.0
    %v474 = vadd.f32 %v418, 0.0
    %v475 = vadd.f32 %v419, 0.0
    %v476 = vadd.f32 %v420, 0.0
    %v477 = vadd.f32 %v421, 0.0
    %v478 = vadd.f32 %v422, 0.0
    %v479 = vadd.f32 %v423, 0.0
    %v480 = vadd.f32 %v424, 0.0
    %v481 = vadd.f32 %v425, 0.0
    %v482 = vadd.f32 %v426, 0.0
    %v483 = vadd.f32 %v427, 0.0
    %v484 = vadd.f32 %v428, 0.0
    %v485 = vadd.f32 %v429, 0.0
    %v486 = vadd.f32 %v430, 0.0
    %v487 = vadd.f32 %v431, 0.0
    %v488 = vadd.f32 %v432, 0.0
    %v489 = vadd.f32 %v433, 0.0
    %v490 = vld [vmem:[%s1 + $0x1] sm:$0x1]
    %v491 = vlaneseq
    %v492 = vshrl.u32 %v491, 7
    %v493 = vsub.s32 0, %v492
    %v494 = vrot.slane %v490, %v493
    %v495 = vmul.f32 %v97, %v494
    %v496 = vmul.f32 %v102, %v494
    %v497 = vmul.f32 %v107, %v494
    %v498 = vmul.f32 %v112, %v494
    %v499 = vmul.f32 %v117, %v494
    %v500 = vmul.f32 %v122, %v494
    %v501 = vmul.f32 %v127, %v494
    %v502 = vmul.f32 %v132, %v494
    %v503 = vmul.f32 %v137, %v494
    %v504 = vmul.f32 %v142, %v494
    %v505 = vmul.f32 %v147, %v494
    %v506 = vmul.f32 %v152, %v494
    %v507 = vmul.f32 %v157, %v494
    %v508 = vmul.f32 %v162, %v494
    %v509 = vmul.f32 %v167, %v494
    %v510 = vmul.f32 %v172, %v494
    %v511 = vmul.f32 %v177, %v494
    %v512 = vmul.f32 %v182, %v494
    %v513 = vmul.f32 %v187, %v494
    %v514 = vmul.f32 %v192, %v494
    %v515 = vmul.f32 %v197, %v494
    %v516 = vmul.f32 %v202, %v494
    %v517 = vmul.f32 %v207, %v494
    %v518 = vmul.f32 %v212, %v494
    %v519 = vmul.f32 %v217, %v494
    %v520 = vmul.f32 %v222, %v494
    %v521 = vmul.f32 %v227, %v494
    %v522 = vmul.f32 %v232, %v494
    %v523 = vmul.f32 %v237, %v494
    %v524 = vmul.f32 %v242, %v494
    %v525 = vmul.f32 %v247, %v494
    %v526 = vmul.f32 %v252, %v494
    %v527 = vmul.f32 %v257, %v494
    %v528 = vmul.f32 %v262, %v494
    %v529 = vmul.f32 %v267, %v494
    %v530 = vmul.f32 %v272, %v494
    %v531 = vmul.f32 %v277, %v494
    %v532 = vmul.f32 %v282, %v494
    %v533 = vmul.f32 %v287, %v494
    %v534 = vmul.f32 %v292, %v494
    %v535 = vmul.f32 %v297, %v494
    %v536 = vmul.f32 %v302, %v494
    %v537 = vmul.f32 %v307, %v494
    %v538 = vmul.f32 %v312, %v494
    %v539 = vmul.f32 %v317, %v494
    %v540 = vmul.f32 %v322, %v494
    %v541 = vmul.f32 %v327, %v494
    %v542 = vmul.f32 %v332, %v494
    %v543 = vmul.f32 %v337, %v494
    %v544 = vmul.f32 %v342, %v494
    %v545 = vmul.f32 %v347, %v494
    %v546 = vmul.f32 %v352, %v494
    %v547 = vmul.f32 %v357, %v494
    %v548 = vmul.f32 %v362, %v494
    %v549 = vmul.f32 %v367, %v494
    %v550 = vmul.f32 %v372, %v494
    %vm607 = vcmask 1046528
    %v608 = vrot.slane %v495, 1
    %v609 = vrot.slane %v496, 1
    %v610 = vsel %vm607, %v608, %v609
    %v611 = vrot.slane %v497, 1
    %v612 = vrot.slane %v498, 1
    %v613 = vsel %vm607, %v611, %v612
    %v614 = vrot.slane %v499, 1
    %v615 = vrot.slane %v500, 1
    %v616 = vsel %vm607, %v614, %v615
    %v617 = vrot.slane %v501, 1
    %v618 = vrot.slane %v502, 1
    %v619 = vsel %vm607, %v617, %v618
    %v620 = vrot.slane %v503, 1
    %v621 = vrot.slane %v504, 1
    %v622 = vsel %vm607, %v620, %v621
    %v623 = vrot.slane %v505, 1
    %v624 = vrot.slane %v506, 1
    %v625 = vsel %vm607, %v623, %v624
    %v626 = vrot.slane %v507, 1
    %v627 = vrot.slane %v508, 1
    %v628 = vsel %vm607, %v626, %v627
    %v629 = vrot.slane %v509, 1
    %v630 = vrot.slane %v510, 1
    %v631 = vsel %vm607, %v629, %v630
    %v632 = vrot.slane %v511, 1
    %v633 = vrot.slane %v512, 1
    %v634 = vsel %vm607, %v632, %v633
    %v635 = vrot.slane %v513, 1
    %v636 = vrot.slane %v514, 1
    %v637 = vsel %vm607, %v635, %v636
    %v638 = vrot.slane %v515, 1
    %v639 = vrot.slane %v516, 1
    %v640 = vsel %vm607, %v638, %v639
    %v641 = vrot.slane %v517, 1
    %v642 = vrot.slane %v518, 1
    %v643 = vsel %vm607, %v641, %v642
    %v644 = vrot.slane %v519, 1
    %v645 = vrot.slane %v520, 1
    %v646 = vsel %vm607, %v644, %v645
    %v647 = vrot.slane %v521, 1
    %v648 = vrot.slane %v522, 1
    %v649 = vsel %vm607, %v647, %v648
    %v650 = vrot.slane %v523, 1
    %v651 = vrot.slane %v524, 1
    %v652 = vsel %vm607, %v650, %v651
    %v653 = vrot.slane %v525, 1
    %v654 = vrot.slane %v526, 1
    %v655 = vsel %vm607, %v653, %v654
    %v656 = vrot.slane %v527, 1
    %v657 = vrot.slane %v528, 1
    %v658 = vsel %vm607, %v656, %v657
    %v659 = vrot.slane %v529, 1
    %v660 = vrot.slane %v530, 1
    %v661 = vsel %vm607, %v659, %v660
    %v662 = vrot.slane %v531, 1
    %v663 = vrot.slane %v532, 1
    %v664 = vsel %vm607, %v662, %v663
    %v665 = vrot.slane %v533, 1
    %v666 = vrot.slane %v534, 1
    %v667 = vsel %vm607, %v665, %v666
    %v668 = vrot.slane %v535, 1
    %v669 = vrot.slane %v536, 1
    %v670 = vsel %vm607, %v668, %v669
    %v671 = vrot.slane %v537, 1
    %v672 = vrot.slane %v538, 1
    %v673 = vsel %vm607, %v671, %v672
    %v674 = vrot.slane %v539, 1
    %v675 = vrot.slane %v540, 1
    %v676 = vsel %vm607, %v674, %v675
    %v677 = vrot.slane %v541, 1
    %v678 = vrot.slane %v542, 1
    %v679 = vsel %vm607, %v677, %v678
    %v680 = vrot.slane %v543, 1
    %v681 = vrot.slane %v544, 1
    %v682 = vsel %vm607, %v680, %v681
    %v683 = vrot.slane %v545, 1
    %v684 = vrot.slane %v546, 1
    %v685 = vsel %vm607, %v683, %v684
    %v686 = vrot.slane %v547, 1
    %v687 = vrot.slane %v548, 1
    %v688 = vsel %vm607, %v686, %v687
    %v689 = vrot.slane %v549, 1
    %v690 = vrot.slane %v550, 1
    %v691 = vsel %vm607, %v689, %v690
    %v748 = vadd.f32 %v434, %v610
    %v749 = vadd.f32 %v435, %v609
    %v750 = vadd.f32 %v436, %v613
    %v751 = vadd.f32 %v437, %v612
    %v752 = vadd.f32 %v438, %v616
    %v753 = vadd.f32 %v439, %v615
    %v754 = vadd.f32 %v440, %v619
    %v755 = vadd.f32 %v441, %v618
    %v756 = vadd.f32 %v442, %v622
    %v757 = vadd.f32 %v443, %v621
    %v758 = vadd.f32 %v444, %v625
    %v759 = vadd.f32 %v445, %v624
    %v760 = vadd.f32 %v446, %v628
    %v761 = vadd.f32 %v447, %v627
    %v762 = vadd.f32 %v448, %v631
    %v763 = vadd.f32 %v449, %v630
    %v764 = vadd.f32 %v450, %v634
    %v765 = vadd.f32 %v451, %v633
    %v766 = vadd.f32 %v452, %v637
    %v767 = vadd.f32 %v453, %v636
    %v768 = vadd.f32 %v454, %v640
    %v769 = vadd.f32 %v455, %v639
    %v770 = vadd.f32 %v456, %v643
    %v771 = vadd.f32 %v457, %v642
    %v772 = vadd.f32 %v458, %v646
    %v773 = vadd.f32 %v459, %v645
    %v774 = vadd.f32 %v460, %v649
    %v775 = vadd.f32 %v461, %v648
    %v776 = vadd.f32 %v462, %v652
    %v777 = vadd.f32 %v463, %v651
    %v778 = vadd.f32 %v464, %v655
    %v779 = vadd.f32 %v465, %v654
    %v780 = vadd.f32 %v466, %v658
    %v781 = vadd.f32 %v467, %v657
    %v782 = vadd.f32 %v468, %v661
    %v783 = vadd.f32 %v469, %v660
    %v784 = vadd.f32 %v470, %v664
    %v785 = vadd.f32 %v471, %v663
    %v786 = vadd.f32 %v472, %v667
    %v787 = vadd.f32 %v473, %v666
    %v788 = vadd.f32 %v474, %v670
    %v789 = vadd.f32 %v475, %v669
    %v790 = vadd.f32 %v476, %v673
    %v791 = vadd.f32 %v477, %v672
    %v792 = vadd.f32 %v478, %v676
    %v793 = vadd.f32 %v479, %v675
    %v794 = vadd.f32 %v480, %v679
    %v795 = vadd.f32 %v481, %v678
    %v796 = vadd.f32 %v482, %v682
    %v797 = vadd.f32 %v483, %v681
    %v798 = vadd.f32 %v484, %v685
    %v799 = vadd.f32 %v485, %v684
    %v800 = vadd.f32 %v486, %v688
    %v801 = vadd.f32 %v487, %v687
    %v802 = vadd.f32 %v488, %v691
    %v803 = vadd.f32 %v489, %v690
    %v804 = vld [vmem:[%s1 + $0x2] sm:$0x1]
    %v805 = vlaneseq
    %v806 = vshrl.u32 %v805, 7
    %v807 = vsub.s32 0, %v806
    %v808 = vrot.slane %v804, %v807
    %v809 = vmul.f32 %v97, %v808
    %v810 = vmul.f32 %v102, %v808
    %v811 = vmul.f32 %v107, %v808
    %v812 = vmul.f32 %v112, %v808
    %v813 = vmul.f32 %v117, %v808
    %v814 = vmul.f32 %v122, %v808
    %v815 = vmul.f32 %v127, %v808
    %v816 = vmul.f32 %v132, %v808
    %v817 = vmul.f32 %v137, %v808
    %v818 = vmul.f32 %v142, %v808
    %v819 = vmul.f32 %v147, %v808
    %v820 = vmul.f32 %v152, %v808
    %v821 = vmul.f32 %v157, %v808
    %v822 = vmul.f32 %v162, %v808
    %v823 = vmul.f32 %v167, %v808
    %v824 = vmul.f32 %v172, %v808
    %v825 = vmul.f32 %v177, %v808
    %v826 = vmul.f32 %v182, %v808
    %v827 = vmul.f32 %v187, %v808
    %v828 = vmul.f32 %v192, %v808
    %v829 = vmul.f32 %v197, %v808
    %v830 = vmul.f32 %v202, %v808
    %v831 = vmul.f32 %v207, %v808
    %v832 = vmul.f32 %v212, %v808
    %v833 = vmul.f32 %v217, %v808
    %v834 = vmul.f32 %v222, %v808
    %v835 = vmul.f32 %v227, %v808
    %v836 = vmul.f32 %v232, %v808
    %v837 = vmul.f32 %v237, %v808
    %v838 = vmul.f32 %v242, %v808
    %v839 = vmul.f32 %v247, %v808
    %v840 = vmul.f32 %v252, %v808
    %v841 = vmul.f32 %v257, %v808
    %v842 = vmul.f32 %v262, %v808
    %v843 = vmul.f32 %v267, %v808
    %v844 = vmul.f32 %v272, %v808
    %v845 = vmul.f32 %v277, %v808
    %v846 = vmul.f32 %v282, %v808
    %v847 = vmul.f32 %v287, %v808
    %v848 = vmul.f32 %v292, %v808
    %v849 = vmul.f32 %v297, %v808
    %v850 = vmul.f32 %v302, %v808
    %v851 = vmul.f32 %v307, %v808
    %v852 = vmul.f32 %v312, %v808
    %v853 = vmul.f32 %v317, %v808
    %v854 = vmul.f32 %v322, %v808
    %v855 = vmul.f32 %v327, %v808
    %v856 = vmul.f32 %v332, %v808
    %v857 = vmul.f32 %v337, %v808
    %v858 = vmul.f32 %v342, %v808
    %v859 = vmul.f32 %v347, %v808
    %v860 = vmul.f32 %v352, %v808
    %v861 = vmul.f32 %v357, %v808
    %v862 = vmul.f32 %v362, %v808
    %v863 = vmul.f32 %v367, %v808
    %v864 = vmul.f32 %v372, %v808
    %vm921 = vcmask 1045504
    %v922 = vrot.slane %v809, 2
    %v923 = vrot.slane %v810, 2
    %v924 = vsel %vm921, %v922, %v923
    %v925 = vrot.slane %v811, 2
    %v926 = vrot.slane %v812, 2
    %v927 = vsel %vm921, %v925, %v926
    %v928 = vrot.slane %v813, 2
    %v929 = vrot.slane %v814, 2
    %v930 = vsel %vm921, %v928, %v929
    %v931 = vrot.slane %v815, 2
    %v932 = vrot.slane %v816, 2
    %v933 = vsel %vm921, %v931, %v932
    %v934 = vrot.slane %v817, 2
    %v935 = vrot.slane %v818, 2
    %v936 = vsel %vm921, %v934, %v935
    %v937 = vrot.slane %v819, 2
    %v938 = vrot.slane %v820, 2
    %v939 = vsel %vm921, %v937, %v938
    %v940 = vrot.slane %v821, 2
    %v941 = vrot.slane %v822, 2
    %v942 = vsel %vm921, %v940, %v941
    %v943 = vrot.slane %v823, 2
    %v944 = vrot.slane %v824, 2
    %v945 = vsel %vm921, %v943, %v944
    %v946 = vrot.slane %v825, 2
    %v947 = vrot.slane %v826, 2
    %v948 = vsel %vm921, %v946, %v947
    %v949 = vrot.slane %v827, 2
    %v950 = vrot.slane %v828, 2
    %v951 = vsel %vm921, %v949, %v950
    %v952 = vrot.slane %v829, 2
    %v953 = vrot.slane %v830, 2
    %v954 = vsel %vm921, %v952, %v953
    %v955 = vrot.slane %v831, 2
    %v956 = vrot.slane %v832, 2
    %v957 = vsel %vm921, %v955, %v956
    %v958 = vrot.slane %v833, 2
    %v959 = vrot.slane %v834, 2
    %v960 = vsel %vm921, %v958, %v959
    %v961 = vrot.slane %v835, 2
    %v962 = vrot.slane %v836, 2
    %v963 = vsel %vm921, %v961, %v962
    %v964 = vrot.slane %v837, 2
    %v965 = vrot.slane %v838, 2
    %v966 = vsel %vm921, %v964, %v965
    %v967 = vrot.slane %v839, 2
    %v968 = vrot.slane %v840, 2
    %v969 = vsel %vm921, %v967, %v968
    %v970 = vrot.slane %v841, 2
    %v971 = vrot.slane %v842, 2
    %v972 = vsel %vm921, %v970, %v971
    %v973 = vrot.slane %v843, 2
    %v974 = vrot.slane %v844, 2
    %v975 = vsel %vm921, %v973, %v974
    %v976 = vrot.slane %v845, 2
    %v977 = vrot.slane %v846, 2
    %v978 = vsel %vm921, %v976, %v977
    %v979 = vrot.slane %v847, 2
    %v980 = vrot.slane %v848, 2
    %v981 = vsel %vm921, %v979, %v980
    %v982 = vrot.slane %v849, 2
    %v983 = vrot.slane %v850, 2
    %v984 = vsel %vm921, %v982, %v983
    %v985 = vrot.slane %v851, 2
    %v986 = vrot.slane %v852, 2
    %v987 = vsel %vm921, %v985, %v986
    %v988 = vrot.slane %v853, 2
    %v989 = vrot.slane %v854, 2
    %v990 = vsel %vm921, %v988, %v989
    %v991 = vrot.slane %v855, 2
    %v992 = vrot.slane %v856, 2
    %v993 = vsel %vm921, %v991, %v992
    %v994 = vrot.slane %v857, 2
    %v995 = vrot.slane %v858, 2
    %v996 = vsel %vm921, %v994, %v995
    %v997 = vrot.slane %v859, 2
    %v998 = vrot.slane %v860, 2
    %v999 = vsel %vm921, %v997, %v998
    %v1000 = vrot.slane %v861, 2
    %v1001 = vrot.slane %v862, 2
    %v1002 = vsel %vm921, %v1000, %v1001
    %v1003 = vrot.slane %v863, 2
    %v1004 = vrot.slane %v864, 2
    %v1005 = vsel %vm921, %v1003, %v1004
    %v1062 = vadd.f32 %v748, %v924
    %v1063 = vadd.f32 %v749, %v923
    %v1064 = vadd.f32 %v750, %v927
    %v1065 = vadd.f32 %v751, %v926
    %v1066 = vadd.f32 %v752, %v930
    %v1067 = vadd.f32 %v753, %v929
    %v1068 = vadd.f32 %v754, %v933
    %v1069 = vadd.f32 %v755, %v932
    %v1070 = vadd.f32 %v756, %v936
    %v1071 = vadd.f32 %v757, %v935
    %v1072 = vadd.f32 %v758, %v939
    %v1073 = vadd.f32 %v759, %v938
    %v1074 = vadd.f32 %v760, %v942
    %v1075 = vadd.f32 %v761, %v941
    %v1076 = vadd.f32 %v762, %v945
    %v1077 = vadd.f32 %v763, %v944
    %v1078 = vadd.f32 %v764, %v948
    %v1079 = vadd.f32 %v765, %v947
    %v1080 = vadd.f32 %v766, %v951
    %v1081 = vadd.f32 %v767, %v950
    %v1082 = vadd.f32 %v768, %v954
    %v1083 = vadd.f32 %v769, %v953
    %v1084 = vadd.f32 %v770, %v957
    %v1085 = vadd.f32 %v771, %v956
    %v1086 = vadd.f32 %v772, %v960
    %v1087 = vadd.f32 %v773, %v959
    %v1088 = vadd.f32 %v774, %v963
    %v1089 = vadd.f32 %v775, %v962
    %v1090 = vadd.f32 %v776, %v966
    %v1091 = vadd.f32 %v777, %v965
    %v1092 = vadd.f32 %v778, %v969
    %v1093 = vadd.f32 %v779, %v968
    %v1094 = vadd.f32 %v780, %v972
    %v1095 = vadd.f32 %v781, %v971
    %v1096 = vadd.f32 %v782, %v975
    %v1097 = vadd.f32 %v783, %v974
    %v1098 = vadd.f32 %v784, %v978
    %v1099 = vadd.f32 %v785, %v977
    %v1100 = vadd.f32 %v786, %v981
    %v1101 = vadd.f32 %v787, %v980
    %v1102 = vadd.f32 %v788, %v984
    %v1103 = vadd.f32 %v789, %v983
    %v1104 = vadd.f32 %v790, %v987
    %v1105 = vadd.f32 %v791, %v986
    %v1106 = vadd.f32 %v792, %v990
    %v1107 = vadd.f32 %v793, %v989
    %v1108 = vadd.f32 %v794, %v993
    %v1109 = vadd.f32 %v795, %v992
    %v1110 = vadd.f32 %v796, %v996
    %v1111 = vadd.f32 %v797, %v995
    %v1112 = vadd.f32 %v798, %v999
    %v1113 = vadd.f32 %v799, %v998
    %v1114 = vadd.f32 %v800, %v1002
    %v1115 = vadd.f32 %v801, %v1001
    %v1116 = vadd.f32 %v802, %v1005
    %v1117 = vadd.f32 %v803, %v1004
    %v1118 = vld [vmem:[%s1 + $0x3] sm:$0x1]
    %1120 = vset.pattern.permute.xlu0 0
    %1121 = vperm.xlu0 %1120, %v57
    %v1122 = vpop.permute.xlu0 %1121
    %1125 = vset.pattern.permute.xlu0 0
    %1126 = vperm.xlu0 %1125, %v58
    %v1127 = vpop.permute.xlu0 %1126
    %1130 = vset.pattern.permute.xlu0 0
    %1131 = vperm.xlu0 %1130, %v89
    %v1132 = vpop.permute.xlu0 %1131
    %1135 = vset.pattern.permute.xlu0 0
    %1136 = vperm.xlu0 %1135, %v90
    %v1137 = vpop.permute.xlu0 %1136
    %v1139 = vlaneseq
    %v1140 = vshrl.u32 %v1139, 7
    %v1141 = vsub.s32 0, %v1140
    %v1142 = vrot.slane %v1118, %v1141
    %v1143 = vmul.f32 %v107, %v1142
    %v1144 = vmul.f32 %v112, %v1142
    %v1145 = vmul.f32 %v117, %v1142
    %v1146 = vmul.f32 %v122, %v1142
    %v1147 = vmul.f32 %v127, %v1142
    %v1148 = vmul.f32 %v132, %v1142
    %v1149 = vmul.f32 %v137, %v1142
    %v1150 = vmul.f32 %v142, %v1142
    %v1151 = vmul.f32 %v147, %v1142
    %v1152 = vmul.f32 %v152, %v1142
    %v1153 = vmul.f32 %v157, %v1142
    %v1154 = vmul.f32 %v162, %v1142
    %v1155 = vmul.f32 %v167, %v1142
    %v1156 = vmul.f32 %v172, %v1142
    %v1157 = vmul.f32 %v177, %v1142
    %v1158 = vmul.f32 %v182, %v1142
    %v1159 = vmul.f32 %v187, %v1142
    %v1160 = vmul.f32 %v192, %v1142
    %v1161 = vmul.f32 %v197, %v1142
    %v1162 = vmul.f32 %v202, %v1142
    %v1163 = vmul.f32 %v207, %v1142
    %v1164 = vmul.f32 %v212, %v1142
    %v1165 = vmul.f32 %v217, %v1142
    %v1166 = vmul.f32 %v222, %v1142
    %v1167 = vmul.f32 %v227, %v1142
    %v1168 = vmul.f32 %v232, %v1142
    %v1169 = vmul.f32 %v1122, %v1142
    %v1170 = vmul.f32 %v1127, %v1142
    %v1171 = vmul.f32 %v247, %v1142
    %v1172 = vmul.f32 %v252, %v1142
    %v1173 = vmul.f32 %v257, %v1142
    %v1174 = vmul.f32 %v262, %v1142
    %v1175 = vmul.f32 %v267, %v1142
    %v1176 = vmul.f32 %v272, %v1142
    %v1177 = vmul.f32 %v277, %v1142
    %v1178 = vmul.f32 %v282, %v1142
    %v1179 = vmul.f32 %v287, %v1142
    %v1180 = vmul.f32 %v292, %v1142
    %v1181 = vmul.f32 %v297, %v1142
    %v1182 = vmul.f32 %v302, %v1142
    %v1183 = vmul.f32 %v307, %v1142
    %v1184 = vmul.f32 %v312, %v1142
    %v1185 = vmul.f32 %v317, %v1142
    %v1186 = vmul.f32 %v322, %v1142
    %v1187 = vmul.f32 %v327, %v1142
    %v1188 = vmul.f32 %v332, %v1142
    %v1189 = vmul.f32 %v337, %v1142
    %v1190 = vmul.f32 %v342, %v1142
    %v1191 = vmul.f32 %v347, %v1142
    %v1192 = vmul.f32 %v352, %v1142
    %v1193 = vmul.f32 %v357, %v1142
    %v1194 = vmul.f32 %v362, %v1142
    %v1195 = vmul.f32 %v367, %v1142
    %v1196 = vmul.f32 %v372, %v1142
    %v1197 = vmul.f32 %v1132, %v1142
    %v1198 = vmul.f32 %v1137, %v1142
    %v1199 = vadd.f32 %v1062, %v1143
    %v1200 = vadd.f32 %v1063, %v1144
    %v1201 = vadd.f32 %v1064, %v1145
    %v1202 = vadd.f32 %v1065, %v1146
    %v1203 = vadd.f32 %v1066, %v1147
    %v1204 = vadd.f32 %v1067, %v1148
    %v1205 = vadd.f32 %v1068, %v1149
    %v1206 = vadd.f32 %v1069, %v1150
    %v1207 = vadd.f32 %v1070, %v1151
    %v1208 = vadd.f32 %v1071, %v1152
    %v1209 = vadd.f32 %v1072, %v1153
    %v1210 = vadd.f32 %v1073, %v1154
    %v1211 = vadd.f32 %v1074, %v1155
    %v1212 = vadd.f32 %v1075, %v1156
    %v1213 = vadd.f32 %v1076, %v1157
    %v1214 = vadd.f32 %v1077, %v1158
    %v1215 = vadd.f32 %v1078, %v1159
    %v1216 = vadd.f32 %v1079, %v1160
    %v1217 = vadd.f32 %v1080, %v1161
    %v1218 = vadd.f32 %v1081, %v1162
    %v1219 = vadd.f32 %v1082, %v1163
    %v1220 = vadd.f32 %v1083, %v1164
    %v1221 = vadd.f32 %v1084, %v1165
    %v1222 = vadd.f32 %v1085, %v1166
    %v1223 = vadd.f32 %v1086, %v1167
    %v1224 = vadd.f32 %v1087, %v1168
    %v1225 = vadd.f32 %v1088, %v1169
    %v1226 = vadd.f32 %v1089, %v1170
    %v1227 = vadd.f32 %v1090, %v1171
    %v1228 = vadd.f32 %v1091, %v1172
    %v1229 = vadd.f32 %v1092, %v1173
    %v1230 = vadd.f32 %v1093, %v1174
    %v1231 = vadd.f32 %v1094, %v1175
    %v1232 = vadd.f32 %v1095, %v1176
    %v1233 = vadd.f32 %v1096, %v1177
    %v1234 = vadd.f32 %v1097, %v1178
    %v1235 = vadd.f32 %v1098, %v1179
    %v1236 = vadd.f32 %v1099, %v1180
    %v1237 = vadd.f32 %v1100, %v1181
    %v1238 = vadd.f32 %v1101, %v1182
    %v1239 = vadd.f32 %v1102, %v1183
    %v1240 = vadd.f32 %v1103, %v1184
    %v1241 = vadd.f32 %v1104, %v1185
    %v1242 = vadd.f32 %v1105, %v1186
    %v1243 = vadd.f32 %v1106, %v1187
    %v1244 = vadd.f32 %v1107, %v1188
    %v1245 = vadd.f32 %v1108, %v1189
    %v1246 = vadd.f32 %v1109, %v1190
    %v1247 = vadd.f32 %v1110, %v1191
    %v1248 = vadd.f32 %v1111, %v1192
    %v1249 = vadd.f32 %v1112, %v1193
    %v1250 = vadd.f32 %v1113, %v1194
    %v1251 = vadd.f32 %v1114, %v1195
    %v1252 = vadd.f32 %v1115, %v1196
    %v1253 = vadd.f32 %v1116, %v1197
    %v1254 = vadd.f32 %v1117, %v1198
    %v1255 = vld [vmem:[%s1 + $0x4] sm:$0x1]
    %v1256 = vlaneseq
    %v1257 = vshrl.u32 %v1256, 7
    %v1258 = vsub.s32 0, %v1257
    %v1259 = vrot.slane %v1255, %v1258
    %v1260 = vmul.f32 %v107, %v1259
    %v1261 = vmul.f32 %v112, %v1259
    %v1262 = vmul.f32 %v117, %v1259
    %v1263 = vmul.f32 %v122, %v1259
    %v1264 = vmul.f32 %v127, %v1259
    %v1265 = vmul.f32 %v132, %v1259
    %v1266 = vmul.f32 %v137, %v1259
    %v1267 = vmul.f32 %v142, %v1259
    %v1268 = vmul.f32 %v147, %v1259
    %v1269 = vmul.f32 %v152, %v1259
    %v1270 = vmul.f32 %v157, %v1259
    %v1271 = vmul.f32 %v162, %v1259
    %v1272 = vmul.f32 %v167, %v1259
    %v1273 = vmul.f32 %v172, %v1259
    %v1274 = vmul.f32 %v177, %v1259
    %v1275 = vmul.f32 %v182, %v1259
    %v1276 = vmul.f32 %v187, %v1259
    %v1277 = vmul.f32 %v192, %v1259
    %v1278 = vmul.f32 %v197, %v1259
    %v1279 = vmul.f32 %v202, %v1259
    %v1280 = vmul.f32 %v207, %v1259
    %v1281 = vmul.f32 %v212, %v1259
    %v1282 = vmul.f32 %v217, %v1259
    %v1283 = vmul.f32 %v222, %v1259
    %v1284 = vmul.f32 %v227, %v1259
    %v1285 = vmul.f32 %v232, %v1259
    %v1286 = vmul.f32 %v1122, %v1259
    %v1287 = vmul.f32 %v1127, %v1259
    %v1288 = vmul.f32 %v247, %v1259
    %v1289 = vmul.f32 %v252, %v1259
    %v1290 = vmul.f32 %v257, %v1259
    %v1291 = vmul.f32 %v262, %v1259
    %v1292 = vmul.f32 %v267, %v1259
    %v1293 = vmul.f32 %v272, %v1259
    %v1294 = vmul.f32 %v277, %v1259
    %v1295 = vmul.f32 %v282, %v1259
    %v1296 = vmul.f32 %v287, %v1259
    %v1297 = vmul.f32 %v292, %v1259
    %v1298 = vmul.f32 %v297, %v1259
    %v1299 = vmul.f32 %v302, %v1259
    %v1300 = vmul.f32 %v307, %v1259
    %v1301 = vmul.f32 %v312, %v1259
    %v1302 = vmul.f32 %v317, %v1259
    %v1303 = vmul.f32 %v322, %v1259
    %v1304 = vmul.f32 %v327, %v1259
    %v1305 = vmul.f32 %v332, %v1259
    %v1306 = vmul.f32 %v337, %v1259
    %v1307 = vmul.f32 %v342, %v1259
    %v1308 = vmul.f32 %v347, %v1259
    %v1309 = vmul.f32 %v352, %v1259
    %v1310 = vmul.f32 %v357, %v1259
    %v1311 = vmul.f32 %v362, %v1259
    %v1312 = vmul.f32 %v367, %v1259
    %v1313 = vmul.f32 %v372, %v1259
    %v1314 = vmul.f32 %v1132, %v1259
    %v1315 = vmul.f32 %v1137, %v1259
    %v1372 = vrot.slane %v1260, 1
    %v1373 = vrot.slane %v1261, 1
    %v1374 = vsel %vm607, %v1372, %v1373
    %v1375 = vrot.slane %v1262, 1
    %v1376 = vrot.slane %v1263, 1
    %v1377 = vsel %vm607, %v1375, %v1376
    %v1378 = vrot.slane %v1264, 1
    %v1379 = vrot.slane %v1265, 1
    %v1380 = vsel %vm607, %v1378, %v1379
    %v1381 = vrot.slane %v1266, 1
    %v1382 = vrot.slane %v1267, 1
    %v1383 = vsel %vm607, %v1381, %v1382
    %v1384 = vrot.slane %v1268, 1
    %v1385 = vrot.slane %v1269, 1
    %v1386 = vsel %vm607, %v1384, %v1385
    %v1387 = vrot.slane %v1270, 1
    %v1388 = vrot.slane %v1271, 1
    %v1389 = vsel %vm607, %v1387, %v1388
    %v1390 = vrot.slane %v1272, 1
    %v1391 = vrot.slane %v1273, 1
    %v1392 = vsel %vm607, %v1390, %v1391
    %v1393 = vrot.slane %v1274, 1
    %v1394 = vrot.slane %v1275, 1
    %v1395 = vsel %vm607, %v1393, %v1394
    %v1396 = vrot.slane %v1276, 1
    %v1397 = vrot.slane %v1277, 1
    %v1398 = vsel %vm607, %v1396, %v1397
    %v1399 = vrot.slane %v1278, 1
    %v1400 = vrot.slane %v1279, 1
    %v1401 = vsel %vm607, %v1399, %v1400
    %v1402 = vrot.slane %v1280, 1
    %v1403 = vrot.slane %v1281, 1
    %v1404 = vsel %vm607, %v1402, %v1403
    %v1405 = vrot.slane %v1282, 1
    %v1406 = vrot.slane %v1283, 1
    %v1407 = vsel %vm607, %v1405, %v1406
    %v1408 = vrot.slane %v1284, 1
    %v1409 = vrot.slane %v1285, 1
    %v1410 = vsel %vm607, %v1408, %v1409
    %v1411 = vrot.slane %v1286, 1
    %v1412 = vrot.slane %v1287, 1
    %v1413 = vsel %vm607, %v1411, %v1412
    %v1414 = vrot.slane %v1288, 1
    %v1415 = vrot.slane %v1289, 1
    %v1416 = vsel %vm607, %v1414, %v1415
    %v1417 = vrot.slane %v1290, 1
    %v1418 = vrot.slane %v1291, 1
    %v1419 = vsel %vm607, %v1417, %v1418
    %v1420 = vrot.slane %v1292, 1
    %v1421 = vrot.slane %v1293, 1
    %v1422 = vsel %vm607, %v1420, %v1421
    %v1423 = vrot.slane %v1294, 1
    %v1424 = vrot.slane %v1295, 1
    %v1425 = vsel %vm607, %v1423, %v1424
    %v1426 = vrot.slane %v1296, 1
    %v1427 = vrot.slane %v1297, 1
    %v1428 = vsel %vm607, %v1426, %v1427
    %v1429 = vrot.slane %v1298, 1
    %v1430 = vrot.slane %v1299, 1
    %v1431 = vsel %vm607, %v1429, %v1430
    %v1432 = vrot.slane %v1300, 1
    %v1433 = vrot.slane %v1301, 1
    %v1434 = vsel %vm607, %v1432, %v1433
    %v1435 = vrot.slane %v1302, 1
    %v1436 = vrot.slane %v1303, 1
    %v1437 = vsel %vm607, %v1435, %v1436
    %v1438 = vrot.slane %v1304, 1
    %v1439 = vrot.slane %v1305, 1
    %v1440 = vsel %vm607, %v1438, %v1439
    %v1441 = vrot.slane %v1306, 1
    %v1442 = vrot.slane %v1307, 1
    %v1443 = vsel %vm607, %v1441, %v1442
    %v1444 = vrot.slane %v1308, 1
    %v1445 = vrot.slane %v1309, 1
    %v1446 = vsel %vm607, %v1444, %v1445
    %v1447 = vrot.slane %v1310, 1
    %v1448 = vrot.slane %v1311, 1
    %v1449 = vsel %vm607, %v1447, %v1448
    %v1450 = vrot.slane %v1312, 1
    %v1451 = vrot.slane %v1313, 1
    %v1452 = vsel %vm607, %v1450, %v1451
    %v1453 = vrot.slane %v1314, 1
    %v1454 = vrot.slane %v1315, 1
    %v1455 = vsel %vm607, %v1453, %v1454
    %v1512 = vadd.f32 %v1199, %v1374
    %v1513 = vadd.f32 %v1200, %v1373
    %v1514 = vadd.f32 %v1201, %v1377
    %v1515 = vadd.f32 %v1202, %v1376
    %v1516 = vadd.f32 %v1203, %v1380
    %v1517 = vadd.f32 %v1204, %v1379
    %v1518 = vadd.f32 %v1205, %v1383
    %v1519 = vadd.f32 %v1206, %v1382
    %v1520 = vadd.f32 %v1207, %v1386
    %v1521 = vadd.f32 %v1208, %v1385
    %v1522 = vadd.f32 %v1209, %v1389
    %v1523 = vadd.f32 %v1210, %v1388
    %v1524 = vadd.f32 %v1211, %v1392
    %v1525 = vadd.f32 %v1212, %v1391
    %v1526 = vadd.f32 %v1213, %v1395
    %v1527 = vadd.f32 %v1214, %v1394
    %v1528 = vadd.f32 %v1215, %v1398
    %v1529 = vadd.f32 %v1216, %v1397
    %v1530 = vadd.f32 %v1217, %v1401
    %v1531 = vadd.f32 %v1218, %v1400
    %v1532 = vadd.f32 %v1219, %v1404
    %v1533 = vadd.f32 %v1220, %v1403
    %v1534 = vadd.f32 %v1221, %v1407
    %v1535 = vadd.f32 %v1222, %v1406
    %v1536 = vadd.f32 %v1223, %v1410
    %v1537 = vadd.f32 %v1224, %v1409
    %v1538 = vadd.f32 %v1225, %v1413
    %v1539 = vadd.f32 %v1226, %v1412
    %v1540 = vadd.f32 %v1227, %v1416
    %v1541 = vadd.f32 %v1228, %v1415
    %v1542 = vadd.f32 %v1229, %v1419
    %v1543 = vadd.f32 %v1230, %v1418
    %v1544 = vadd.f32 %v1231, %v1422
    %v1545 = vadd.f32 %v1232, %v1421
    %v1546 = vadd.f32 %v1233, %v1425
    %v1547 = vadd.f32 %v1234, %v1424
    %v1548 = vadd.f32 %v1235, %v1428
    %v1549 = vadd.f32 %v1236, %v1427
    %v1550 = vadd.f32 %v1237, %v1431
    %v1551 = vadd.f32 %v1238, %v1430
    %v1552 = vadd.f32 %v1239, %v1434
    %v1553 = vadd.f32 %v1240, %v1433
    %v1554 = vadd.f32 %v1241, %v1437
    %v1555 = vadd.f32 %v1242, %v1436
    %v1556 = vadd.f32 %v1243, %v1440
    %v1557 = vadd.f32 %v1244, %v1439
    %v1558 = vadd.f32 %v1245, %v1443
    %v1559 = vadd.f32 %v1246, %v1442
    %v1560 = vadd.f32 %v1247, %v1446
    %v1561 = vadd.f32 %v1248, %v1445
    %v1562 = vadd.f32 %v1249, %v1449
    %v1563 = vadd.f32 %v1250, %v1448
    %v1564 = vadd.f32 %v1251, %v1452
    %v1565 = vadd.f32 %v1252, %v1451
    %v1566 = vadd.f32 %v1253, %v1455
    %v1567 = vadd.f32 %v1254, %v1454
    %v1568 = vld [vmem:[%s1 + $0x5] sm:$0x1]
    %v1569 = vlaneseq
    %v1570 = vshrl.u32 %v1569, 7
    %v1571 = vsub.s32 0, %v1570
    %v1572 = vrot.slane %v1568, %v1571
    %v1573 = vmul.f32 %v107, %v1572
    %v1574 = vmul.f32 %v112, %v1572
    %v1575 = vmul.f32 %v117, %v1572
    %v1576 = vmul.f32 %v122, %v1572
    %v1577 = vmul.f32 %v127, %v1572
    %v1578 = vmul.f32 %v132, %v1572
    %v1579 = vmul.f32 %v137, %v1572
    %v1580 = vmul.f32 %v142, %v1572
    %v1581 = vmul.f32 %v147, %v1572
    %v1582 = vmul.f32 %v152, %v1572
    %v1583 = vmul.f32 %v157, %v1572
    %v1584 = vmul.f32 %v162, %v1572
    %v1585 = vmul.f32 %v167, %v1572
    %v1586 = vmul.f32 %v172, %v1572
    %v1587 = vmul.f32 %v177, %v1572
    %v1588 = vmul.f32 %v182, %v1572
    %v1589 = vmul.f32 %v187, %v1572
    %v1590 = vmul.f32 %v192, %v1572
    %v1591 = vmul.f32 %v197, %v1572
    %v1592 = vmul.f32 %v202, %v1572
    %v1593 = vmul.f32 %v207, %v1572
    %v1594 = vmul.f32 %v212, %v1572
    %v1595 = vmul.f32 %v217, %v1572
    %v1596 = vmul.f32 %v222, %v1572
    %v1597 = vmul.f32 %v227, %v1572
    %v1598 = vmul.f32 %v232, %v1572
    %v1599 = vmul.f32 %v1122, %v1572
    %v1600 = vmul.f32 %v1127, %v1572
    %v1601 = vmul.f32 %v247, %v1572
    %v1602 = vmul.f32 %v252, %v1572
    %v1603 = vmul.f32 %v257, %v1572
    %v1604 = vmul.f32 %v262, %v1572
    %v1605 = vmul.f32 %v267, %v1572
    %v1606 = vmul.f32 %v272, %v1572
    %v1607 = vmul.f32 %v277, %v1572
    %v1608 = vmul.f32 %v282, %v1572
    %v1609 = vmul.f32 %v287, %v1572
    %v1610 = vmul.f32 %v292, %v1572
    %v1611 = vmul.f32 %v297, %v1572
    %v1612 = vmul.f32 %v302, %v1572
    %v1613 = vmul.f32 %v307, %v1572
    %v1614 = vmul.f32 %v312, %v1572
    %v1615 = vmul.f32 %v317, %v1572
    %v1616 = vmul.f32 %v322, %v1572
    %v1617 = vmul.f32 %v327, %v1572
    %v1618 = vmul.f32 %v332, %v1572
    %v1619 = vmul.f32 %v337, %v1572
    %v1620 = vmul.f32 %v342, %v1572
    %v1621 = vmul.f32 %v347, %v1572
    %v1622 = vmul.f32 %v352, %v1572
    %v1623 = vmul.f32 %v357, %v1572
    %v1624 = vmul.f32 %v362, %v1572
    %v1625 = vmul.f32 %v367, %v1572
    %v1626 = vmul.f32 %v372, %v1572
    %v1627 = vmul.f32 %v1132, %v1572
    %v1628 = vmul.f32 %v1137, %v1572
    %v1685 = vrot.slane %v1573, 2
    %v1686 = vrot.slane %v1574, 2
    %v1687 = vsel %vm921, %v1685, %v1686
    %v1688 = vrot.slane %v1575, 2
    %v1689 = vrot.slane %v1576, 2
    %v1690 = vsel %vm921, %v1688, %v1689
    %v1691 = vrot.slane %v1577, 2
    %v1692 = vrot.slane %v1578, 2
    %v1693 = vsel %vm921, %v1691, %v1692
    %v1694 = vrot.slane %v1579, 2
    %v1695 = vrot.slane %v1580, 2
    %v1696 = vsel %vm921, %v1694, %v1695
    %v1697 = vrot.slane %v1581, 2
    %v1698 = vrot.slane %v1582, 2
    %v1699 = vsel %vm921, %v1697, %v1698
    %v1700 = vrot.slane %v1583, 2
    %v1701 = vrot.slane %v1584, 2
    %v1702 = vsel %vm921, %v1700, %v1701
    %v1703 = vrot.slane %v1585, 2
    %v1704 = vrot.slane %v1586, 2
    %v1705 = vsel %vm921, %v1703, %v1704
    %v1706 = vrot.slane %v1587, 2
    %v1707 = vrot.slane %v1588, 2
    %v1708 = vsel %vm921, %v1706, %v1707
    %v1709 = vrot.slane %v1589, 2
    %v1710 = vrot.slane %v1590, 2
    %v1711 = vsel %vm921, %v1709, %v1710
    %v1712 = vrot.slane %v1591, 2
    %v1713 = vrot.slane %v1592, 2
    %v1714 = vsel %vm921, %v1712, %v1713
    %v1715 = vrot.slane %v1593, 2
    %v1716 = vrot.slane %v1594, 2
    %v1717 = vsel %vm921, %v1715, %v1716
    %v1718 = vrot.slane %v1595, 2
    %v1719 = vrot.slane %v1596, 2
    %v1720 = vsel %vm921, %v1718, %v1719
    %v1721 = vrot.slane %v1597, 2
    %v1722 = vrot.slane %v1598, 2
    %v1723 = vsel %vm921, %v1721, %v1722
    %v1724 = vrot.slane %v1599, 2
    %v1725 = vrot.slane %v1600, 2
    %v1726 = vsel %vm921, %v1724, %v1725
    %v1727 = vrot.slane %v1601, 2
    %v1728 = vrot.slane %v1602, 2
    %v1729 = vsel %vm921, %v1727, %v1728
    %v1730 = vrot.slane %v1603, 2
    %v1731 = vrot.slane %v1604, 2
    %v1732 = vsel %vm921, %v1730, %v1731
    %v1733 = vrot.slane %v1605, 2
    %v1734 = vrot.slane %v1606, 2
    %v1735 = vsel %vm921, %v1733, %v1734
    %v1736 = vrot.slane %v1607, 2
    %v1737 = vrot.slane %v1608, 2
    %v1738 = vsel %vm921, %v1736, %v1737
    %v1739 = vrot.slane %v1609, 2
    %v1740 = vrot.slane %v1610, 2
    %v1741 = vsel %vm921, %v1739, %v1740
    %v1742 = vrot.slane %v1611, 2
    %v1743 = vrot.slane %v1612, 2
    %v1744 = vsel %vm921, %v1742, %v1743
    %v1745 = vrot.slane %v1613, 2
    %v1746 = vrot.slane %v1614, 2
    %v1747 = vsel %vm921, %v1745, %v1746
    %v1748 = vrot.slane %v1615, 2
    %v1749 = vrot.slane %v1616, 2
    %v1750 = vsel %vm921, %v1748, %v1749
    %v1751 = vrot.slane %v1617, 2
    %v1752 = vrot.slane %v1618, 2
    %v1753 = vsel %vm921, %v1751, %v1752
    %v1754 = vrot.slane %v1619, 2
    %v1755 = vrot.slane %v1620, 2
    %v1756 = vsel %vm921, %v1754, %v1755
    %v1757 = vrot.slane %v1621, 2
    %v1758 = vrot.slane %v1622, 2
    %v1759 = vsel %vm921, %v1757, %v1758
    %v1760 = vrot.slane %v1623, 2
    %v1761 = vrot.slane %v1624, 2
    %v1762 = vsel %vm921, %v1760, %v1761
    %v1763 = vrot.slane %v1625, 2
    %v1764 = vrot.slane %v1626, 2
    %v1765 = vsel %vm921, %v1763, %v1764
    %v1766 = vrot.slane %v1627, 2
    %v1767 = vrot.slane %v1628, 2
    %v1768 = vsel %vm921, %v1766, %v1767
    %v1825 = vadd.f32 %v1512, %v1687
    %v1826 = vadd.f32 %v1513, %v1686
    %v1827 = vadd.f32 %v1514, %v1690
    %v1828 = vadd.f32 %v1515, %v1689
    %v1829 = vadd.f32 %v1516, %v1693
    %v1830 = vadd.f32 %v1517, %v1692
    %v1831 = vadd.f32 %v1518, %v1696
    %v1832 = vadd.f32 %v1519, %v1695
    %v1833 = vadd.f32 %v1520, %v1699
    %v1834 = vadd.f32 %v1521, %v1698
    %v1835 = vadd.f32 %v1522, %v1702
    %v1836 = vadd.f32 %v1523, %v1701
    %v1837 = vadd.f32 %v1524, %v1705
    %v1838 = vadd.f32 %v1525, %v1704
    %v1839 = vadd.f32 %v1526, %v1708
    %v1840 = vadd.f32 %v1527, %v1707
    %v1841 = vadd.f32 %v1528, %v1711
    %v1842 = vadd.f32 %v1529, %v1710
    %v1843 = vadd.f32 %v1530, %v1714
    %v1844 = vadd.f32 %v1531, %v1713
    %v1845 = vadd.f32 %v1532, %v1717
    %v1846 = vadd.f32 %v1533, %v1716
    %v1847 = vadd.f32 %v1534, %v1720
    %v1848 = vadd.f32 %v1535, %v1719
    %v1849 = vadd.f32 %v1536, %v1723
    %v1850 = vadd.f32 %v1537, %v1722
    %v1851 = vadd.f32 %v1538, %v1726
    %v1852 = vadd.f32 %v1539, %v1725
    %v1853 = vadd.f32 %v1540, %v1729
    %v1854 = vadd.f32 %v1541, %v1728
    %v1855 = vadd.f32 %v1542, %v1732
    %v1856 = vadd.f32 %v1543, %v1731
    %v1857 = vadd.f32 %v1544, %v1735
    %v1858 = vadd.f32 %v1545, %v1734
    %v1859 = vadd.f32 %v1546, %v1738
    %v1860 = vadd.f32 %v1547, %v1737
    %v1861 = vadd.f32 %v1548, %v1741
    %v1862 = vadd.f32 %v1549, %v1740
    %v1863 = vadd.f32 %v1550, %v1744
    %v1864 = vadd.f32 %v1551, %v1743
    %v1865 = vadd.f32 %v1552, %v1747
    %v1866 = vadd.f32 %v1553, %v1746
    %v1867 = vadd.f32 %v1554, %v1750
    %v1868 = vadd.f32 %v1555, %v1749
    %v1869 = vadd.f32 %v1556, %v1753
    %v1870 = vadd.f32 %v1557, %v1752
    %v1871 = vadd.f32 %v1558, %v1756
    %v1872 = vadd.f32 %v1559, %v1755
    %v1873 = vadd.f32 %v1560, %v1759
    %v1874 = vadd.f32 %v1561, %v1758
    %v1875 = vadd.f32 %v1562, %v1762
    %v1876 = vadd.f32 %v1563, %v1761
    %v1877 = vadd.f32 %v1564, %v1765
    %v1878 = vadd.f32 %v1565, %v1764
    %v1879 = vadd.f32 %v1566, %v1768
    %v1880 = vadd.f32 %v1567, %v1767
    %v1881 = vld [vmem:[%s1 + $0x6] sm:$0x1]
    %1883 = vset.pattern.permute.xlu0 0
    %1884 = vperm.xlu0 %1883, %v59
    %v1885 = vpop.permute.xlu0 %1884
    %1888 = vset.pattern.permute.xlu0 0
    %1889 = vperm.xlu0 %1888, %v60
    %v1890 = vpop.permute.xlu0 %1889
    %1893 = vset.pattern.permute.xlu0 0
    %1894 = vperm.xlu0 %1893, %v91
    %v1895 = vpop.permute.xlu0 %1894
    %1898 = vset.pattern.permute.xlu0 0
    %1899 = vperm.xlu0 %1898, %v92
    %v1900 = vpop.permute.xlu0 %1899
    %v1902 = vlaneseq
    %v1903 = vshrl.u32 %v1902, 7
    %v1904 = vsub.s32 0, %v1903
    %v1905 = vrot.slane %v1881, %v1904
    %v1906 = vmul.f32 %v117, %v1905
    %v1907 = vmul.f32 %v122, %v1905
    %v1908 = vmul.f32 %v127, %v1905
    %v1909 = vmul.f32 %v132, %v1905
    %v1910 = vmul.f32 %v137, %v1905
    %v1911 = vmul.f32 %v142, %v1905
    %v1912 = vmul.f32 %v147, %v1905
    %v1913 = vmul.f32 %v152, %v1905
    %v1914 = vmul.f32 %v157, %v1905
    %v1915 = vmul.f32 %v162, %v1905
    %v1916 = vmul.f32 %v167, %v1905
    %v1917 = vmul.f32 %v172, %v1905
    %v1918 = vmul.f32 %v177, %v1905
    %v1919 = vmul.f32 %v182, %v1905
    %v1920 = vmul.f32 %v187, %v1905
    %v1921 = vmul.f32 %v192, %v1905
    %v1922 = vmul.f32 %v197, %v1905
    %v1923 = vmul.f32 %v202, %v1905
    %v1924 = vmul.f32 %v207, %v1905
    %v1925 = vmul.f32 %v212, %v1905
    %v1926 = vmul.f32 %v217, %v1905
    %v1927 = vmul.f32 %v222, %v1905
    %v1928 = vmul.f32 %v227, %v1905
    %v1929 = vmul.f32 %v232, %v1905
    %v1930 = vmul.f32 %v1122, %v1905
    %v1931 = vmul.f32 %v1127, %v1905
    %v1932 = vmul.f32 %v1885, %v1905
    %v1933 = vmul.f32 %v1890, %v1905
    %v1934 = vmul.f32 %v257, %v1905
    %v1935 = vmul.f32 %v262, %v1905
    %v1936 = vmul.f32 %v267, %v1905
    %v1937 = vmul.f32 %v272, %v1905
    %v1938 = vmul.f32 %v277, %v1905
    %v1939 = vmul.f32 %v282, %v1905
    %v1940 = vmul.f32 %v287, %v1905
    %v1941 = vmul.f32 %v292, %v1905
    %v1942 = vmul.f32 %v297, %v1905
    %v1943 = vmul.f32 %v302, %v1905
    %v1944 = vmul.f32 %v307, %v1905
    %v1945 = vmul.f32 %v312, %v1905
    %v1946 = vmul.f32 %v317, %v1905
    %v1947 = vmul.f32 %v322, %v1905
    %v1948 = vmul.f32 %v327, %v1905
    %v1949 = vmul.f32 %v332, %v1905
    %v1950 = vmul.f32 %v337, %v1905
    %v1951 = vmul.f32 %v342, %v1905
    %v1952 = vmul.f32 %v347, %v1905
    %v1953 = vmul.f32 %v352, %v1905
    %v1954 = vmul.f32 %v357, %v1905
    %v1955 = vmul.f32 %v362, %v1905
    %v1956 = vmul.f32 %v367, %v1905
    %v1957 = vmul.f32 %v372, %v1905
    %v1958 = vmul.f32 %v1132, %v1905
    %v1959 = vmul.f32 %v1137, %v1905
    %v1960 = vmul.f32 %v1895, %v1905
    %v1961 = vmul.f32 %v1900, %v1905
    %v1962 = vadd.f32 %v1825, %v1906
    %v1963 = vadd.f32 %v1826, %v1907
    %v1964 = vadd.f32 %v1827, %v1908
    %v1965 = vadd.f32 %v1828, %v1909
    %v1966 = vadd.f32 %v1829, %v1910
    %v1967 = vadd.f32 %v1830, %v1911
    %v1968 = vadd.f32 %v1831, %v1912
    %v1969 = vadd.f32 %v1832, %v1913
    %v1970 = vadd.f32 %v1833, %v1914
    %v1971 = vadd.f32 %v1834, %v1915
    %v1972 = vadd.f32 %v1835, %v1916
    %v1973 = vadd.f32 %v1836, %v1917
    %v1974 = vadd.f32 %v1837, %v1918
    %v1975 = vadd.f32 %v1838, %v1919
    %v1976 = vadd.f32 %v1839, %v1920
    %v1977 = vadd.f32 %v1840, %v1921
    %v1978 = vadd.f32 %v1841, %v1922
    %v1979 = vadd.f32 %v1842, %v1923
    %v1980 = vadd.f32 %v1843, %v1924
    %v1981 = vadd.f32 %v1844, %v1925
    %v1982 = vadd.f32 %v1845, %v1926
    %v1983 = vadd.f32 %v1846, %v1927
    %v1984 = vadd.f32 %v1847, %v1928
    %v1985 = vadd.f32 %v1848, %v1929
    %v1986 = vadd.f32 %v1849, %v1930
    %v1987 = vadd.f32 %v1850, %v1931
    %v1988 = vadd.f32 %v1851, %v1932
    %v1989 = vadd.f32 %v1852, %v1933
    %v1990 = vadd.f32 %v1853, %v1934
    %v1991 = vadd.f32 %v1854, %v1935
    %v1992 = vadd.f32 %v1855, %v1936
    %v1993 = vadd.f32 %v1856, %v1937
    %v1994 = vadd.f32 %v1857, %v1938
    %v1995 = vadd.f32 %v1858, %v1939
    %v1996 = vadd.f32 %v1859, %v1940
    %v1997 = vadd.f32 %v1860, %v1941
    %v1998 = vadd.f32 %v1861, %v1942
    %v1999 = vadd.f32 %v1862, %v1943
    %v2000 = vadd.f32 %v1863, %v1944
    %v2001 = vadd.f32 %v1864, %v1945
    %v2002 = vadd.f32 %v1865, %v1946
    %v2003 = vadd.f32 %v1866, %v1947
    %v2004 = vadd.f32 %v1867, %v1948
    %v2005 = vadd.f32 %v1868, %v1949
    %v2006 = vadd.f32 %v1869, %v1950
    %v2007 = vadd.f32 %v1870, %v1951
    %v2008 = vadd.f32 %v1871, %v1952
    %v2009 = vadd.f32 %v1872, %v1953
    %v2010 = vadd.f32 %v1873, %v1954
    %v2011 = vadd.f32 %v1874, %v1955
    %v2012 = vadd.f32 %v1875, %v1956
    %v2013 = vadd.f32 %v1876, %v1957
    %v2014 = vadd.f32 %v1877, %v1958
    %v2015 = vadd.f32 %v1878, %v1959
    %v2016 = vadd.f32 %v1879, %v1960
    %v2017 = vadd.f32 %v1880, %v1961
    %v2018 = vld [vmem:[%s1 + $0x7] sm:$0x1]
    %v2019 = vlaneseq
    %v2020 = vshrl.u32 %v2019, 7
    %v2021 = vsub.s32 0, %v2020
    %v2022 = vrot.slane %v2018, %v2021
    %v2023 = vmul.f32 %v117, %v2022
    %v2024 = vmul.f32 %v122, %v2022
    %v2025 = vmul.f32 %v127, %v2022
    %v2026 = vmul.f32 %v132, %v2022
    %v2027 = vmul.f32 %v137, %v2022
    %v2028 = vmul.f32 %v142, %v2022
    %v2029 = vmul.f32 %v147, %v2022
    %v2030 = vmul.f32 %v152, %v2022
    %v2031 = vmul.f32 %v157, %v2022
    %v2032 = vmul.f32 %v162, %v2022
    %v2033 = vmul.f32 %v167, %v2022
    %v2034 = vmul.f32 %v172, %v2022
    %v2035 = vmul.f32 %v177, %v2022
    %v2036 = vmul.f32 %v182, %v2022
    %v2037 = vmul.f32 %v187, %v2022
    %v2038 = vmul.f32 %v192, %v2022
    %v2039 = vmul.f32 %v197, %v2022
    %v2040 = vmul.f32 %v202, %v2022
    %v2041 = vmul.f32 %v207, %v2022
    %v2042 = vmul.f32 %v212, %v2022
    %v2043 = vmul.f32 %v217, %v2022
    %v2044 = vmul.f32 %v222, %v2022
    %v2045 = vmul.f32 %v227, %v2022
    %v2046 = vmul.f32 %v232, %v2022
    %v2047 = vmul.f32 %v1122, %v2022
    %v2048 = vmul.f32 %v1127, %v2022
    %v2049 = vmul.f32 %v1885, %v2022
    %v2050 = vmul.f32 %v1890, %v2022
    %v2051 = vmul.f32 %v257, %v2022
    %v2052 = vmul.f32 %v262, %v2022
    %v2053 = vmul.f32 %v267, %v2022
    %v2054 = vmul.f32 %v272, %v2022
    %v2055 = vmul.f32 %v277, %v2022
    %v2056 = vmul.f32 %v282, %v2022
    %v2057 = vmul.f32 %v287, %v2022
    %v2058 = vmul.f32 %v292, %v2022
    %v2059 = vmul.f32 %v297, %v2022
    %v2060 = vmul.f32 %v302, %v2022
    %v2061 = vmul.f32 %v307, %v2022
    %v2062 = vmul.f32 %v312, %v2022
    %v2063 = vmul.f32 %v317, %v2022
    %v2064 = vmul.f32 %v322, %v2022
    %v2065 = vmul.f32 %v327, %v2022
    %v2066 = vmul.f32 %v332, %v2022
    %v2067 = vmul.f32 %v337, %v2022
    %v2068 = vmul.f32 %v342, %v2022
    %v2069 = vmul.f32 %v347, %v2022
    %v2070 = vmul.f32 %v352, %v2022
    %v2071 = vmul.f32 %v357, %v2022
    %v2072 = vmul.f32 %v362, %v2022
    %v2073 = vmul.f32 %v367, %v2022
    %v2074 = vmul.f32 %v372, %v2022
    %v2075 = vmul.f32 %v1132, %v2022
    %v2076 = vmul.f32 %v1137, %v2022
    %v2077 = vmul.f32 %v1895, %v2022
    %v2078 = vmul.f32 %v1900, %v2022
    %v2135 = vrot.slane %v2023, 1
    %v2136 = vrot.slane %v2024, 1
    %v2137 = vsel %vm607, %v2135, %v2136
    %v2138 = vrot.slane %v2025, 1
    %v2139 = vrot.slane %v2026, 1
    %v2140 = vsel %vm607, %v2138, %v2139
    %v2141 = vrot.slane %v2027, 1
    %v2142 = vrot.slane %v2028, 1
    %v2143 = vsel %vm607, %v2141, %v2142
    %v2144 = vrot.slane %v2029, 1
    %v2145 = vrot.slane %v2030, 1
    %v2146 = vsel %vm607, %v2144, %v2145
    %v2147 = vrot.slane %v2031, 1
    %v2148 = vrot.slane %v2032, 1
    %v2149 = vsel %vm607, %v2147, %v2148
    %v2150 = vrot.slane %v2033, 1
    %v2151 = vrot.slane %v2034, 1
    %v2152 = vsel %vm607, %v2150, %v2151
    %v2153 = vrot.slane %v2035, 1
    %v2154 = vrot.slane %v2036, 1
    %v2155 = vsel %vm607, %v2153, %v2154
    %v2156 = vrot.slane %v2037, 1
    %v2157 = vrot.slane %v2038, 1
    %v2158 = vsel %vm607, %v2156, %v2157
    %v2159 = vrot.slane %v2039, 1
    %v2160 = vrot.slane %v2040, 1
    %v2161 = vsel %vm607, %v2159, %v2160
    %v2162 = vrot.slane %v2041, 1
    %v2163 = vrot.slane %v2042, 1
    %v2164 = vsel %vm607, %v2162, %v2163
    %v2165 = vrot.slane %v2043, 1
    %v2166 = vrot.slane %v2044, 1
    %v2167 = vsel %vm607, %v2165, %v2166
    %v2168 = vrot.slane %v2045, 1
    %v2169 = vrot.slane %v2046, 1
    %v2170 = vsel %vm607, %v2168, %v2169
    %v2171 = vrot.slane %v2047, 1
    %v2172 = vrot.slane %v2048, 1
    %v2173 = vsel %vm607, %v2171, %v2172
    %v2174 = vrot.slane %v2049, 1
    %v2175 = vrot.slane %v2050, 1
    %v2176 = vsel %vm607, %v2174, %v2175
    %v2177 = vrot.slane %v2051, 1
    %v2178 = vrot.slane %v2052, 1
    %v2179 = vsel %vm607, %v2177, %v2178
    %v2180 = vrot.slane %v2053, 1
    %v2181 = vrot.slane %v2054, 1
    %v2182 = vsel %vm607, %v2180, %v2181
    %v2183 = vrot.slane %v2055, 1
    %v2184 = vrot.slane %v2056, 1
    %v2185 = vsel %vm607, %v2183, %v2184
    %v2186 = vrot.slane %v2057, 1
    %v2187 = vrot.slane %v2058, 1
    %v2188 = vsel %vm607, %v2186, %v2187
    %v2189 = vrot.slane %v2059, 1
    %v2190 = vrot.slane %v2060, 1
    %v2191 = vsel %vm607, %v2189, %v2190
    %v2192 = vrot.slane %v2061, 1
    %v2193 = vrot.slane %v2062, 1
    %v2194 = vsel %vm607, %v2192, %v2193
    %v2195 = vrot.slane %v2063, 1
    %v2196 = vrot.slane %v2064, 1
    %v2197 = vsel %vm607, %v2195, %v2196
    %v2198 = vrot.slane %v2065, 1
    %v2199 = vrot.slane %v2066, 1
    %v2200 = vsel %vm607, %v2198, %v2199
    %v2201 = vrot.slane %v2067, 1
    %v2202 = vrot.slane %v2068, 1
    %v2203 = vsel %vm607, %v2201, %v2202
    %v2204 = vrot.slane %v2069, 1
    %v2205 = vrot.slane %v2070, 1
    %v2206 = vsel %vm607, %v2204, %v2205
    %v2207 = vrot.slane %v2071, 1
    %v2208 = vrot.slane %v2072, 1
    %v2209 = vsel %vm607, %v2207, %v2208
    %v2210 = vrot.slane %v2073, 1
    %v2211 = vrot.slane %v2074, 1
    %v2212 = vsel %vm607, %v2210, %v2211
    %v2213 = vrot.slane %v2075, 1
    %v2214 = vrot.slane %v2076, 1
    %v2215 = vsel %vm607, %v2213, %v2214
    %v2216 = vrot.slane %v2077, 1
    %v2217 = vrot.slane %v2078, 1
    %v2218 = vsel %vm607, %v2216, %v2217
    %v2275 = vadd.f32 %v1962, %v2137
    %v2276 = vadd.f32 %v1963, %v2136
    %v2277 = vadd.f32 %v1964, %v2140
    %v2278 = vadd.f32 %v1965, %v2139
    %v2279 = vadd.f32 %v1966, %v2143
    %v2280 = vadd.f32 %v1967, %v2142
    %v2281 = vadd.f32 %v1968, %v2146
    %v2282 = vadd.f32 %v1969, %v2145
    %v2283 = vadd.f32 %v1970, %v2149
    %v2284 = vadd.f32 %v1971, %v2148
    %v2285 = vadd.f32 %v1972, %v2152
    %v2286 = vadd.f32 %v1973, %v2151
    %v2287 = vadd.f32 %v1974, %v2155
    %v2288 = vadd.f32 %v1975, %v2154
    %v2289 = vadd.f32 %v1976, %v2158
    %v2290 = vadd.f32 %v1977, %v2157
    %v2291 = vadd.f32 %v1978, %v2161
    %v2292 = vadd.f32 %v1979, %v2160
    %v2293 = vadd.f32 %v1980, %v2164
    %v2294 = vadd.f32 %v1981, %v2163
    %v2295 = vadd.f32 %v1982, %v2167
    %v2296 = vadd.f32 %v1983, %v2166
    %v2297 = vadd.f32 %v1984, %v2170
    %v2298 = vadd.f32 %v1985, %v2169
    %v2299 = vadd.f32 %v1986, %v2173
    %v2300 = vadd.f32 %v1987, %v2172
    %v2301 = vadd.f32 %v1988, %v2176
    %v2302 = vadd.f32 %v1989, %v2175
    %v2303 = vadd.f32 %v1990, %v2179
    %v2304 = vadd.f32 %v1991, %v2178
    %v2305 = vadd.f32 %v1992, %v2182
    %v2306 = vadd.f32 %v1993, %v2181
    %v2307 = vadd.f32 %v1994, %v2185
    %v2308 = vadd.f32 %v1995, %v2184
    %v2309 = vadd.f32 %v1996, %v2188
    %v2310 = vadd.f32 %v1997, %v2187
    %v2311 = vadd.f32 %v1998, %v2191
    %v2312 = vadd.f32 %v1999, %v2190
    %v2313 = vadd.f32 %v2000, %v2194
    %v2314 = vadd.f32 %v2001, %v2193
    %v2315 = vadd.f32 %v2002, %v2197
    %v2316 = vadd.f32 %v2003, %v2196
    %v2317 = vadd.f32 %v2004, %v2200
    %v2318 = vadd.f32 %v2005, %v2199
    %v2319 = vadd.f32 %v2006, %v2203
    %v2320 = vadd.f32 %v2007, %v2202
    %v2321 = vadd.f32 %v2008, %v2206
    %v2322 = vadd.f32 %v2009, %v2205
    %v2323 = vadd.f32 %v2010, %v2209
    %v2324 = vadd.f32 %v2011, %v2208
    %v2325 = vadd.f32 %v2012, %v2212
    %v2326 = vadd.f32 %v2013, %v2211
    %v2327 = vadd.f32 %v2014, %v2215
    %v2328 = vadd.f32 %v2015, %v2214
    %v2329 = vadd.f32 %v2016, %v2218
    %v2330 = vadd.f32 %v2017, %v2217
    %v2331 = vld [vmem:[%s1 + $0x8] sm:$0x1]
    %v2332 = vlaneseq
    %v2333 = vshrl.u32 %v2332, 7
    %v2334 = vsub.s32 0, %v2333
    %v2335 = vrot.slane %v2331, %v2334
    %v2336 = vmul.f32 %v117, %v2335
    %v2337 = vmul.f32 %v122, %v2335
    %v2338 = vmul.f32 %v127, %v2335
    %v2339 = vmul.f32 %v132, %v2335
    %v2340 = vmul.f32 %v137, %v2335
    %v2341 = vmul.f32 %v142, %v2335
    %v2342 = vmul.f32 %v147, %v2335
    %v2343 = vmul.f32 %v152, %v2335
    %v2344 = vmul.f32 %v157, %v2335
    %v2345 = vmul.f32 %v162, %v2335
    %v2346 = vmul.f32 %v167, %v2335
    %v2347 = vmul.f32 %v172, %v2335
    %v2348 = vmul.f32 %v177, %v2335
    %v2349 = vmul.f32 %v182, %v2335
    %v2350 = vmul.f32 %v187, %v2335
    %v2351 = vmul.f32 %v192, %v2335
    %v2352 = vmul.f32 %v197, %v2335
    %v2353 = vmul.f32 %v202, %v2335
    %v2354 = vmul.f32 %v207, %v2335
    %v2355 = vmul.f32 %v212, %v2335
    %v2356 = vmul.f32 %v217, %v2335
    %v2357 = vmul.f32 %v222, %v2335
    %v2358 = vmul.f32 %v227, %v2335
    %v2359 = vmul.f32 %v232, %v2335
    %v2360 = vmul.f32 %v1122, %v2335
    %v2361 = vmul.f32 %v1127, %v2335
    %v2362 = vmul.f32 %v1885, %v2335
    %v2363 = vmul.f32 %v1890, %v2335
    %v2364 = vmul.f32 %v257, %v2335
    %v2365 = vmul.f32 %v262, %v2335
    %v2366 = vmul.f32 %v267, %v2335
    %v2367 = vmul.f32 %v272, %v2335
    %v2368 = vmul.f32 %v277, %v2335
    %v2369 = vmul.f32 %v282, %v2335
    %v2370 = vmul.f32 %v287, %v2335
    %v2371 = vmul.f32 %v292, %v2335
    %v2372 = vmul.f32 %v297, %v2335
    %v2373 = vmul.f32 %v302, %v2335
    %v2374 = vmul.f32 %v307, %v2335
    %v2375 = vmul.f32 %v312, %v2335
    %v2376 = vmul.f32 %v317, %v2335
    %v2377 = vmul.f32 %v322, %v2335
    %v2378 = vmul.f32 %v327, %v2335
    %v2379 = vmul.f32 %v332, %v2335
    %v2380 = vmul.f32 %v337, %v2335
    %v2381 = vmul.f32 %v342, %v2335
    %v2382 = vmul.f32 %v347, %v2335
    %v2383 = vmul.f32 %v352, %v2335
    %v2384 = vmul.f32 %v357, %v2335
    %v2385 = vmul.f32 %v362, %v2335
    %v2386 = vmul.f32 %v367, %v2335
    %v2387 = vmul.f32 %v372, %v2335
    %v2388 = vmul.f32 %v1132, %v2335
    %v2389 = vmul.f32 %v1137, %v2335
    %v2390 = vmul.f32 %v1895, %v2335
    %v2391 = vmul.f32 %v1900, %v2335
    %v2448 = vrot.slane %v2336, 2
    %v2449 = vrot.slane %v2337, 2
    %v2450 = vsel %vm921, %v2448, %v2449
    %v2451 = vrot.slane %v2338, 2
    %v2452 = vrot.slane %v2339, 2
    %v2453 = vsel %vm921, %v2451, %v2452
    %v2454 = vrot.slane %v2340, 2
    %v2455 = vrot.slane %v2341, 2
    %v2456 = vsel %vm921, %v2454, %v2455
    %v2457 = vrot.slane %v2342, 2
    %v2458 = vrot.slane %v2343, 2
    %v2459 = vsel %vm921, %v2457, %v2458
    %v2460 = vrot.slane %v2344, 2
    %v2461 = vrot.slane %v2345, 2
    %v2462 = vsel %vm921, %v2460, %v2461
    %v2463 = vrot.slane %v2346, 2
    %v2464 = vrot.slane %v2347, 2
    %v2465 = vsel %vm921, %v2463, %v2464
    %v2466 = vrot.slane %v2348, 2
    %v2467 = vrot.slane %v2349, 2
    %v2468 = vsel %vm921, %v2466, %v2467
    %v2469 = vrot.slane %v2350, 2
    %v2470 = vrot.slane %v2351, 2
    %v2471 = vsel %vm921, %v2469, %v2470
    %v2472 = vrot.slane %v2352, 2
    %v2473 = vrot.slane %v2353, 2
    %v2474 = vsel %vm921, %v2472, %v2473
    %v2475 = vrot.slane %v2354, 2
    %v2476 = vrot.slane %v2355, 2
    %v2477 = vsel %vm921, %v2475, %v2476
    %v2478 = vrot.slane %v2356, 2
    %v2479 = vrot.slane %v2357, 2
    %v2480 = vsel %vm921, %v2478, %v2479
    %v2481 = vrot.slane %v2358, 2
    %v2482 = vrot.slane %v2359, 2
    %v2483 = vsel %vm921, %v2481, %v2482
    %v2484 = vrot.slane %v2360, 2
    %v2485 = vrot.slane %v2361, 2
    %v2486 = vsel %vm921, %v2484, %v2485
    %v2487 = vrot.slane %v2362, 2
    %v2488 = vrot.slane %v2363, 2
    %v2489 = vsel %vm921, %v2487, %v2488
    %v2490 = vrot.slane %v2364, 2
    %v2491 = vrot.slane %v2365, 2
    %v2492 = vsel %vm921, %v2490, %v2491
    %v2493 = vrot.slane %v2366, 2
    %v2494 = vrot.slane %v2367, 2
    %v2495 = vsel %vm921, %v2493, %v2494
    %v2496 = vrot.slane %v2368, 2
    %v2497 = vrot.slane %v2369, 2
    %v2498 = vsel %vm921, %v2496, %v2497
    %v2499 = vrot.slane %v2370, 2
    %v2500 = vrot.slane %v2371, 2
    %v2501 = vsel %vm921, %v2499, %v2500
    %v2502 = vrot.slane %v2372, 2
    %v2503 = vrot.slane %v2373, 2
    %v2504 = vsel %vm921, %v2502, %v2503
    %v2505 = vrot.slane %v2374, 2
    %v2506 = vrot.slane %v2375, 2
    %v2507 = vsel %vm921, %v2505, %v2506
    %v2508 = vrot.slane %v2376, 2
    %v2509 = vrot.slane %v2377, 2
    %v2510 = vsel %vm921, %v2508, %v2509
    %v2511 = vrot.slane %v2378, 2
    %v2512 = vrot.slane %v2379, 2
    %v2513 = vsel %vm921, %v2511, %v2512
    %v2514 = vrot.slane %v2380, 2
    %v2515 = vrot.slane %v2381, 2
    %v2516 = vsel %vm921, %v2514, %v2515
    %v2517 = vrot.slane %v2382, 2
    %v2518 = vrot.slane %v2383, 2
    %v2519 = vsel %vm921, %v2517, %v2518
    %v2520 = vrot.slane %v2384, 2
    %v2521 = vrot.slane %v2385, 2
    %v2522 = vsel %vm921, %v2520, %v2521
    %v2523 = vrot.slane %v2386, 2
    %v2524 = vrot.slane %v2387, 2
    %v2525 = vsel %vm921, %v2523, %v2524
    %v2526 = vrot.slane %v2388, 2
    %v2527 = vrot.slane %v2389, 2
    %v2528 = vsel %vm921, %v2526, %v2527
    %v2529 = vrot.slane %v2390, 2
    %v2530 = vrot.slane %v2391, 2
    %v2531 = vsel %vm921, %v2529, %v2530
    %v2588 = vadd.f32 %v2275, %v2450
    %v2589 = vadd.f32 %v2276, %v2449
    %v2590 = vadd.f32 %v2277, %v2453
    %v2591 = vadd.f32 %v2278, %v2452
    %v2592 = vadd.f32 %v2279, %v2456
    %v2593 = vadd.f32 %v2280, %v2455
    %v2594 = vadd.f32 %v2281, %v2459
    %v2595 = vadd.f32 %v2282, %v2458
    %v2596 = vadd.f32 %v2283, %v2462
    %v2597 = vadd.f32 %v2284, %v2461
    %v2598 = vadd.f32 %v2285, %v2465
    %v2599 = vadd.f32 %v2286, %v2464
    %v2600 = vadd.f32 %v2287, %v2468
    %v2601 = vadd.f32 %v2288, %v2467
    %v2602 = vadd.f32 %v2289, %v2471
    %v2603 = vadd.f32 %v2290, %v2470
    %v2604 = vadd.f32 %v2291, %v2474
    %v2605 = vadd.f32 %v2292, %v2473
    %v2606 = vadd.f32 %v2293, %v2477
    %v2607 = vadd.f32 %v2294, %v2476
    %v2608 = vadd.f32 %v2295, %v2480
    %v2609 = vadd.f32 %v2296, %v2479
    %v2610 = vadd.f32 %v2297, %v2483
    %v2611 = vadd.f32 %v2298, %v2482
    %v2612 = vadd.f32 %v2299, %v2486
    %v2613 = vadd.f32 %v2300, %v2485
    %v2614 = vadd.f32 %v2301, %v2489
    %v2615 = vadd.f32 %v2302, %v2488
    %v2616 = vadd.f32 %v2303, %v2492
    %v2617 = vadd.f32 %v2304, %v2491
    %v2618 = vadd.f32 %v2305, %v2495
    %v2619 = vadd.f32 %v2306, %v2494
    %v2620 = vadd.f32 %v2307, %v2498
    %v2621 = vadd.f32 %v2308, %v2497
    %v2622 = vadd.f32 %v2309, %v2501
    %v2623 = vadd.f32 %v2310, %v2500
    %v2624 = vadd.f32 %v2311, %v2504
    %v2625 = vadd.f32 %v2312, %v2503
    %v2626 = vadd.f32 %v2313, %v2507
    %v2627 = vadd.f32 %v2314, %v2506
    %v2628 = vadd.f32 %v2315, %v2510
    %v2629 = vadd.f32 %v2316, %v2509
    %v2630 = vadd.f32 %v2317, %v2513
    %v2631 = vadd.f32 %v2318, %v2512
    %v2632 = vadd.f32 %v2319, %v2516
    %v2633 = vadd.f32 %v2320, %v2515
    %v2634 = vadd.f32 %v2321, %v2519
    %v2635 = vadd.f32 %v2322, %v2518
    %v2636 = vadd.f32 %v2323, %v2522
    %v2637 = vadd.f32 %v2324, %v2521
    %v2638 = vadd.f32 %v2325, %v2525
    %v2639 = vadd.f32 %v2326, %v2524
    %v2640 = vadd.f32 %v2327, %v2528
    %v2641 = vadd.f32 %v2328, %v2527
    %v2642 = vadd.f32 %v2329, %v2531
    %v2643 = vadd.f32 %v2330, %v2530
    %v2644 = vld [vmem:[%s2] sm:$0x1]
    %v2646 = vlaneseq
    %v2647 = vshrl.u32 %v2646, 7
    %v2648 = vsub.s32 0, %v2647
    %v2649 = vrot.slane %v2644, %v2648
    %v2651 = vadd.f32 %v2588, %v2649
    %v2652 = vadd.f32 %v2589, %v2649
    %v2653 = vadd.f32 %v2590, %v2649
    %v2654 = vadd.f32 %v2591, %v2649
    %v2655 = vadd.f32 %v2592, %v2649
    %v2656 = vadd.f32 %v2593, %v2649
    %v2657 = vadd.f32 %v2594, %v2649
    %v2658 = vadd.f32 %v2595, %v2649
    %v2659 = vadd.f32 %v2596, %v2649
    %v2660 = vadd.f32 %v2597, %v2649
    %v2661 = vadd.f32 %v2598, %v2649
    %v2662 = vadd.f32 %v2599, %v2649
    %v2663 = vadd.f32 %v2600, %v2649
    %v2664 = vadd.f32 %v2601, %v2649
    %v2665 = vadd.f32 %v2602, %v2649
    %v2666 = vadd.f32 %v2603, %v2649
    %v2667 = vadd.f32 %v2604, %v2649
    %v2668 = vadd.f32 %v2605, %v2649
    %v2669 = vadd.f32 %v2606, %v2649
    %v2670 = vadd.f32 %v2607, %v2649
    %v2671 = vadd.f32 %v2608, %v2649
    %v2672 = vadd.f32 %v2609, %v2649
    %v2673 = vadd.f32 %v2610, %v2649
    %v2674 = vadd.f32 %v2611, %v2649
    %v2675 = vadd.f32 %v2612, %v2649
    %v2676 = vadd.f32 %v2613, %v2649
    %v2677 = vadd.f32 %v2614, %v2649
    %v2678 = vadd.f32 %v2615, %v2649
    %v2679 = vadd.f32 %v2616, %v2649
    %v2680 = vadd.f32 %v2617, %v2649
    %v2681 = vadd.f32 %v2618, %v2649
    %v2682 = vadd.f32 %v2619, %v2649
    %v2683 = vadd.f32 %v2620, %v2649
    %v2684 = vadd.f32 %v2621, %v2649
    %v2685 = vadd.f32 %v2622, %v2649
    %v2686 = vadd.f32 %v2623, %v2649
    %v2687 = vadd.f32 %v2624, %v2649
    %v2688 = vadd.f32 %v2625, %v2649
    %v2689 = vadd.f32 %v2626, %v2649
    %v2690 = vadd.f32 %v2627, %v2649
    %v2691 = vadd.f32 %v2628, %v2649
    %v2692 = vadd.f32 %v2629, %v2649
    %v2693 = vadd.f32 %v2630, %v2649
    %v2694 = vadd.f32 %v2631, %v2649
    %v2695 = vadd.f32 %v2632, %v2649
    %v2696 = vadd.f32 %v2633, %v2649
    %v2697 = vadd.f32 %v2634, %v2649
    %v2698 = vadd.f32 %v2635, %v2649
    %v2699 = vadd.f32 %v2636, %v2649
    %v2700 = vadd.f32 %v2637, %v2649
    %v2701 = vadd.f32 %v2638, %v2649
    %v2702 = vadd.f32 %v2639, %v2649
    %v2703 = vadd.f32 %v2640, %v2649
    %v2704 = vadd.f32 %v2641, %v2649
    %v2705 = vadd.f32 %v2642, %v2649
    %v2706 = vadd.f32 %v2643, %v2649
    %v2707 = vmax.f32 %v2651, 0.0
    %v2708 = vmax.f32 %v2652, 0.0
    %v2709 = vmax.f32 %v2653, 0.0
    %v2710 = vmax.f32 %v2654, 0.0
    %v2711 = vmax.f32 %v2655, 0.0
    %v2712 = vmax.f32 %v2656, 0.0
    %v2713 = vmax.f32 %v2657, 0.0
    %v2714 = vmax.f32 %v2658, 0.0
    %v2715 = vmax.f32 %v2659, 0.0
    %v2716 = vmax.f32 %v2660, 0.0
    %v2717 = vmax.f32 %v2661, 0.0
    %v2718 = vmax.f32 %v2662, 0.0
    %v2719 = vmax.f32 %v2663, 0.0
    %v2720 = vmax.f32 %v2664, 0.0
    %v2721 = vmax.f32 %v2665, 0.0
    %v2722 = vmax.f32 %v2666, 0.0
    %v2723 = vmax.f32 %v2667, 0.0
    %v2724 = vmax.f32 %v2668, 0.0
    %v2725 = vmax.f32 %v2669, 0.0
    %v2726 = vmax.f32 %v2670, 0.0
    %v2727 = vmax.f32 %v2671, 0.0
    %v2728 = vmax.f32 %v2672, 0.0
    %v2729 = vmax.f32 %v2673, 0.0
    %v2730 = vmax.f32 %v2674, 0.0
    %v2731 = vmax.f32 %v2675, 0.0
    %v2732 = vmax.f32 %v2676, 0.0
    %v2733 = vmax.f32 %v2677, 0.0
    %v2734 = vmax.f32 %v2678, 0.0
    %v2735 = vmax.f32 %v2679, 0.0
    %v2736 = vmax.f32 %v2680, 0.0
    %v2737 = vmax.f32 %v2681, 0.0
    %v2738 = vmax.f32 %v2682, 0.0
    %v2739 = vmax.f32 %v2683, 0.0
    %v2740 = vmax.f32 %v2684, 0.0
    %v2741 = vmax.f32 %v2685, 0.0
    %v2742 = vmax.f32 %v2686, 0.0
    %v2743 = vmax.f32 %v2687, 0.0
    %v2744 = vmax.f32 %v2688, 0.0
    %v2745 = vmax.f32 %v2689, 0.0
    %v2746 = vmax.f32 %v2690, 0.0
    %v2747 = vmax.f32 %v2691, 0.0
    %v2748 = vmax.f32 %v2692, 0.0
    %v2749 = vmax.f32 %v2693, 0.0
    %v2750 = vmax.f32 %v2694, 0.0
    %v2751 = vmax.f32 %v2695, 0.0
    %v2752 = vmax.f32 %v2696, 0.0
    %v2753 = vmax.f32 %v2697, 0.0
    %v2754 = vmax.f32 %v2698, 0.0
    %v2755 = vmax.f32 %v2699, 0.0
    %v2756 = vmax.f32 %v2700, 0.0
    %v2757 = vmax.f32 %v2701, 0.0
    %v2758 = vmax.f32 %v2702, 0.0
    %v2759 = vmax.f32 %v2703, 0.0
    %v2760 = vmax.f32 %v2704, 0.0
    %v2761 = vmax.f32 %v2705, 0.0
    %v2762 = vmax.f32 %v2706, 0.0
    %v2811 = vrot.slane %v2707, 1
    %v2812 = vrot.slane %v2708, 1
    %v2813 = vsel %vm607, %v2811, %v2812
    %v2814 = vrot.slane %v2709, 1
    %v2815 = vrot.slane %v2710, 1
    %v2816 = vsel %vm607, %v2814, %v2815
    %v2817 = vrot.slane %v2711, 1
    %v2818 = vrot.slane %v2712, 1
    %v2819 = vsel %vm607, %v2817, %v2818
    %v2820 = vrot.slane %v2713, 1
    %v2821 = vrot.slane %v2714, 1
    %v2822 = vsel %vm607, %v2820, %v2821
    %v2823 = vrot.slane %v2715, 1
    %v2824 = vrot.slane %v2716, 1
    %v2825 = vsel %vm607, %v2823, %v2824
    %v2826 = vrot.slane %v2717, 1
    %v2827 = vrot.slane %v2718, 1
    %v2828 = vsel %vm607, %v2826, %v2827
    %v2829 = vrot.slane %v2719, 1
    %v2830 = vrot.slane %v2720, 1
    %v2831 = vsel %vm607, %v2829, %v2830
    %v2832 = vrot.slane %v2721, 1
    %v2833 = vrot.slane %v2722, 1
    %v2834 = vsel %vm607, %v2832, %v2833
    %v2835 = vrot.slane %v2723, 1
    %v2836 = vrot.slane %v2724, 1
    %v2837 = vsel %vm607, %v2835, %v2836
    %v2838 = vrot.slane %v2725, 1
    %v2839 = vrot.slane %v2726, 1
    %v2840 = vsel %vm607, %v2838, %v2839
    %v2841 = vrot.slane %v2727, 1
    %v2842 = vrot.slane %v2728, 1
    %v2843 = vsel %vm607, %v2841, %v2842
    %v2844 = vrot.slane %v2729, 1
    %v2845 = vrot.slane %v2730, 1
    %v2846 = vsel %vm607, %v2844, %v2845
    %v2847 = vrot.slane %v2735, 1
    %v2848 = vrot.slane %v2736, 1
    %v2849 = vsel %vm607, %v2847, %v2848
    %v2850 = vrot.slane %v2737, 1
    %v2851 = vrot.slane %v2738, 1
    %v2852 = vsel %vm607, %v2850, %v2851
    %v2853 = vrot.slane %v2739, 1
    %v2854 = vrot.slane %v2740, 1
    %v2855 = vsel %vm607, %v2853, %v2854
    %v2856 = vrot.slane %v2741, 1
    %v2857 = vrot.slane %v2742, 1
    %v2858 = vsel %vm607, %v2856, %v2857
    %v2859 = vrot.slane %v2743, 1
    %v2860 = vrot.slane %v2744, 1
    %v2861 = vsel %vm607, %v2859, %v2860
    %v2862 = vrot.slane %v2745, 1
    %v2863 = vrot.slane %v2746, 1
    %v2864 = vsel %vm607, %v2862, %v2863
    %v2865 = vrot.slane %v2747, 1
    %v2866 = vrot.slane %v2748, 1
    %v2867 = vsel %vm607, %v2865, %v2866
    %v2868 = vrot.slane %v2749, 1
    %v2869 = vrot.slane %v2750, 1
    %v2870 = vsel %vm607, %v2868, %v2869
    %v2871 = vrot.slane %v2751, 1
    %v2872 = vrot.slane %v2752, 1
    %v2873 = vsel %vm607, %v2871, %v2872
    %v2874 = vrot.slane %v2753, 1
    %v2875 = vrot.slane %v2754, 1
    %v2876 = vsel %vm607, %v2874, %v2875
    %v2877 = vrot.slane %v2755, 1
    %v2878 = vrot.slane %v2756, 1
    %v2879 = vsel %vm607, %v2877, %v2878
    %v2880 = vrot.slane %v2757, 1
    %v2881 = vrot.slane %v2758, 1
    %v2882 = vsel %vm607, %v2880, %v2881
    %2883 = vrot.lane.b32.xlu0 %v2813, 24
    %v2884 = vpop.permute.xlu0 %2883
    %2885 = vrot.lane.b32.xlu0 %v2812, 24
    %v2886 = vpop.permute.xlu0 %2885
    %2887 = vrot.lane.b32.xlu0 %v2816, 24
    %v2888 = vpop.permute.xlu0 %2887
    %2889 = vrot.lane.b32.xlu0 %v2815, 24
    %v2890 = vpop.permute.xlu0 %2889
    %2891 = vrot.lane.b32.xlu0 %v2819, 24
    %v2892 = vpop.permute.xlu0 %2891
    %2893 = vrot.lane.b32.xlu0 %v2818, 24
    %v2894 = vpop.permute.xlu0 %2893
    %2895 = vrot.lane.b32.xlu0 %v2822, 24
    %v2896 = vpop.permute.xlu0 %2895
    %2897 = vrot.lane.b32.xlu0 %v2821, 24
    %v2898 = vpop.permute.xlu0 %2897
    %2899 = vrot.lane.b32.xlu0 %v2825, 24
    %v2900 = vpop.permute.xlu0 %2899
    %2901 = vrot.lane.b32.xlu0 %v2824, 24
    %v2902 = vpop.permute.xlu0 %2901
    %2903 = vrot.lane.b32.xlu0 %v2828, 24
    %v2904 = vpop.permute.xlu0 %2903
    %2905 = vrot.lane.b32.xlu0 %v2827, 24
    %v2906 = vpop.permute.xlu0 %2905
    %2907 = vrot.lane.b32.xlu0 %v2831, 24
    %v2908 = vpop.permute.xlu0 %2907
    %2909 = vrot.lane.b32.xlu0 %v2830, 24
    %v2910 = vpop.permute.xlu0 %2909
    %2911 = vrot.lane.b32.xlu0 %v2834, 24
    %v2912 = vpop.permute.xlu0 %2911
    %2913 = vrot.lane.b32.xlu0 %v2833, 24
    %v2914 = vpop.permute.xlu0 %2913
    %2915 = vrot.lane.b32.xlu0 %v2837, 24
    %v2916 = vpop.permute.xlu0 %2915
    %2917 = vrot.lane.b32.xlu0 %v2836, 24
    %v2918 = vpop.permute.xlu0 %2917
    %2919 = vrot.lane.b32.xlu0 %v2840, 24
    %v2920 = vpop.permute.xlu0 %2919
    %2921 = vrot.lane.b32.xlu0 %v2839, 24
    %v2922 = vpop.permute.xlu0 %2921
    %2923 = vrot.lane.b32.xlu0 %v2843, 24
    %v2924 = vpop.permute.xlu0 %2923
    %2925 = vrot.lane.b32.xlu0 %v2842, 24
    %v2926 = vpop.permute.xlu0 %2925
    %2927 = vrot.lane.b32.xlu0 %v2846, 24
    %v2928 = vpop.permute.xlu0 %2927
    %2929 = vrot.lane.b32.xlu0 %v2845, 24
    %v2930 = vpop.permute.xlu0 %2929
    %2931 = vrot.lane.b32.xlu0 %v2849, 24
    %v2932 = vpop.permute.xlu0 %2931
    %2933 = vrot.lane.b32.xlu0 %v2848, 24
    %v2934 = vpop.permute.xlu0 %2933
    %2935 = vrot.lane.b32.xlu0 %v2852, 24
    %v2936 = vpop.permute.xlu0 %2935
    %2937 = vrot.lane.b32.xlu0 %v2851, 24
    %v2938 = vpop.permute.xlu0 %2937
    %2939 = vrot.lane.b32.xlu0 %v2855, 24
    %v2940 = vpop.permute.xlu0 %2939
    %2941 = vrot.lane.b32.xlu0 %v2854, 24
    %v2942 = vpop.permute.xlu0 %2941
    %2943 = vrot.lane.b32.xlu0 %v2858, 24
    %v2944 = vpop.permute.xlu0 %2943
    %2945 = vrot.lane.b32.xlu0 %v2857, 24
    %v2946 = vpop.permute.xlu0 %2945
    %2947 = vrot.lane.b32.xlu0 %v2861, 24
    %v2948 = vpop.permute.xlu0 %2947
    %2949 = vrot.lane.b32.xlu0 %v2860, 24
    %v2950 = vpop.permute.xlu0 %2949
    %2951 = vrot.lane.b32.xlu0 %v2864, 24
    %v2952 = vpop.permute.xlu0 %2951
    %2953 = vrot.lane.b32.xlu0 %v2863, 24
    %v2954 = vpop.permute.xlu0 %2953
    %2955 = vrot.lane.b32.xlu0 %v2867, 24
    %v2956 = vpop.permute.xlu0 %2955
    %2957 = vrot.lane.b32.xlu0 %v2866, 24
    %v2958 = vpop.permute.xlu0 %2957
    %2959 = vrot.lane.b32.xlu0 %v2870, 24
    %v2960 = vpop.permute.xlu0 %2959
    %2961 = vrot.lane.b32.xlu0 %v2869, 24
    %v2962 = vpop.permute.xlu0 %2961
    %2963 = vrot.lane.b32.xlu0 %v2873, 24
    %v2964 = vpop.permute.xlu0 %2963
    %2965 = vrot.lane.b32.xlu0 %v2872, 24
    %v2966 = vpop.permute.xlu0 %2965
    %2967 = vrot.lane.b32.xlu0 %v2876, 24
    %v2968 = vpop.permute.xlu0 %2967
    %2969 = vrot.lane.b32.xlu0 %v2875, 24
    %v2970 = vpop.permute.xlu0 %2969
    %2971 = vrot.lane.b32.xlu0 %v2879, 24
    %v2972 = vpop.permute.xlu0 %2971
    %2973 = vrot.lane.b32.xlu0 %v2878, 24
    %v2974 = vpop.permute.xlu0 %2973
    %2975 = vrot.lane.b32.xlu0 %v2882, 24
    %v2976 = vpop.permute.xlu0 %2975
    %2977 = vrot.lane.b32.xlu0 %v2881, 24
    %v2978 = vpop.permute.xlu0 %2977
    %v3027 = vrot.slane %v2707, 2
    %v3028 = vrot.slane %v2708, 2
    %v3029 = vsel %vm921, %v3027, %v3028
    %v3030 = vrot.slane %v2709, 2
    %v3031 = vrot.slane %v2710, 2
    %v3032 = vsel %vm921, %v3030, %v3031
    %v3033 = vrot.slane %v2711, 2
    %v3034 = vrot.slane %v2712, 2
    %v3035 = vsel %vm921, %v3033, %v3034
    %v3036 = vrot.slane %v2713, 2
    %v3037 = vrot.slane %v2714, 2
    %v3038 = vsel %vm921, %v3036, %v3037
    %v3039 = vrot.slane %v2715, 2
    %v3040 = vrot.slane %v2716, 2
    %v3041 = vsel %vm921, %v3039, %v3040
    %v3042 = vrot.slane %v2717, 2
    %v3043 = vrot.slane %v2718, 2
    %v3044 = vsel %vm921, %v3042, %v3043
    %v3045 = vrot.slane %v2719, 2
    %v3046 = vrot.slane %v2720, 2
    %v3047 = vsel %vm921, %v3045, %v3046
    %v3048 = vrot.slane %v2721, 2
    %v3049 = vrot.slane %v2722, 2
    %v3050 = vsel %vm921, %v3048, %v3049
    %v3051 = vrot.slane %v2723, 2
    %v3052 = vrot.slane %v2724, 2
    %v3053 = vsel %vm921, %v3051, %v3052
    %v3054 = vrot.slane %v2725, 2
    %v3055 = vrot.slane %v2726, 2
    %v3056 = vsel %vm921, %v3054, %v3055
    %v3057 = vrot.slane %v2727, 2
    %v3058 = vrot.slane %v2728, 2
    %v3059 = vsel %vm921, %v3057, %v3058
    %v3060 = vrot.slane %v2729, 2
    %v3061 = vrot.slane %v2730, 2
    %v3062 = vsel %vm921, %v3060, %v3061
    %v3063 = vrot.slane %v2735, 2
    %v3064 = vrot.slane %v2736, 2
    %v3065 = vsel %vm921, %v3063, %v3064
    %v3066 = vrot.slane %v2737, 2
    %v3067 = vrot.slane %v2738, 2
    %v3068 = vsel %vm921, %v3066, %v3067
    %v3069 = vrot.slane %v2739, 2
    %v3070 = vrot.slane %v2740, 2
    %v3071 = vsel %vm921, %v3069, %v3070
    %v3072 = vrot.slane %v2741, 2
    %v3073 = vrot.slane %v2742, 2
    %v3074 = vsel %vm921, %v3072, %v3073
    %v3075 = vrot.slane %v2743, 2
    %v3076 = vrot.slane %v2744, 2
    %v3077 = vsel %vm921, %v3075, %v3076
    %v3078 = vrot.slane %v2745, 2
    %v3079 = vrot.slane %v2746, 2
    %v3080 = vsel %vm921, %v3078, %v3079
    %v3081 = vrot.slane %v2747, 2
    %v3082 = vrot.slane %v2748, 2
    %v3083 = vsel %vm921, %v3081, %v3082
    %v3084 = vrot.slane %v2749, 2
    %v3085 = vrot.slane %v2750, 2
    %v3086 = vsel %vm921, %v3084, %v3085
    %v3087 = vrot.slane %v2751, 2
    %v3088 = vrot.slane %v2752, 2
    %v3089 = vsel %vm921, %v3087, %v3088
    %v3090 = vrot.slane %v2753, 2
    %v3091 = vrot.slane %v2754, 2
    %v3092 = vsel %vm921, %v3090, %v3091
    %v3093 = vrot.slane %v2755, 2
    %v3094 = vrot.slane %v2756, 2
    %v3095 = vsel %vm921, %v3093, %v3094
    %v3096 = vrot.slane %v2757, 2
    %v3097 = vrot.slane %v2758, 2
    %v3098 = vsel %vm921, %v3096, %v3097
    %3099 = vrot.lane.b32.xlu0 %v3029, 48
    %v3100 = vpop.permute.xlu0 %3099
    %3101 = vrot.lane.b32.xlu0 %v3028, 48
    %v3102 = vpop.permute.xlu0 %3101
    %3103 = vrot.lane.b32.xlu0 %v3032, 48
    %v3104 = vpop.permute.xlu0 %3103
    %3105 = vrot.lane.b32.xlu0 %v3031, 48
    %v3106 = vpop.permute.xlu0 %3105
    %3107 = vrot.lane.b32.xlu0 %v3035, 48
    %v3108 = vpop.permute.xlu0 %3107
    %3109 = vrot.lane.b32.xlu0 %v3034, 48
    %v3110 = vpop.permute.xlu0 %3109
    %3111 = vrot.lane.b32.xlu0 %v3038, 48
    %v3112 = vpop.permute.xlu0 %3111
    %3113 = vrot.lane.b32.xlu0 %v3037, 48
    %v3114 = vpop.permute.xlu0 %3113
    %3115 = vrot.lane.b32.xlu0 %v3041, 48
    %v3116 = vpop.permute.xlu0 %3115
    %3117 = vrot.lane.b32.xlu0 %v3040, 48
    %v3118 = vpop.permute.xlu0 %3117
    %3119 = vrot.lane.b32.xlu0 %v3044, 48
    %v3120 = vpop.permute.xlu0 %3119
    %3121 = vrot.lane.b32.xlu0 %v3043, 48
    %v3122 = vpop.permute.xlu0 %3121
    %3123 = vrot.lane.b32.xlu0 %v3047, 48
    %v3124 = vpop.permute.xlu0 %3123
    %3125 = vrot.lane.b32.xlu0 %v3046, 48
    %v3126 = vpop.permute.xlu0 %3125
    %3127 = vrot.lane.b32.xlu0 %v3050, 48
    %v3128 = vpop.permute.xlu0 %3127
    %3129 = vrot.lane.b32.xlu0 %v3049, 48
    %v3130 = vpop.permute.xlu0 %3129
    %3131 = vrot.lane.b32.xlu0 %v3053, 48
    %v3132 = vpop.permute.xlu0 %3131
    %3133 = vrot.lane.b32.xlu0 %v3052, 48
    %v3134 = vpop.permute.xlu0 %3133
    %3135 = vrot.lane.b32.xlu0 %v3056, 48
    %v3136 = vpop.permute.xlu0 %3135
    %3137 = vrot.lane.b32.xlu0 %v3055, 48
    %v3138 = vpop.permute.xlu0 %3137
    %3139 = vrot.lane.b32.xlu0 %v3059, 48
    %v3140 = vpop.permute.xlu0 %3139
    %3141 = vrot.lane.b32.xlu0 %v3058, 48
    %v3142 = vpop.permute.xlu0 %3141
    %3143 = vrot.lane.b32.xlu0 %v3062, 48
    %v3144 = vpop.permute.xlu0 %3143
    %3145 = vrot.lane.b32.xlu0 %v3061, 48
    %v3146 = vpop.permute.xlu0 %3145
    %3147 = vrot.lane.b32.xlu0 %v3065, 48
    %v3148 = vpop.permute.xlu0 %3147
    %3149 = vrot.lane.b32.xlu0 %v3064, 48
    %v3150 = vpop.permute.xlu0 %3149
    %3151 = vrot.lane.b32.xlu0 %v3068, 48
    %v3152 = vpop.permute.xlu0 %3151
    %3153 = vrot.lane.b32.xlu0 %v3067, 48
    %v3154 = vpop.permute.xlu0 %3153
    %3155 = vrot.lane.b32.xlu0 %v3071, 48
    %v3156 = vpop.permute.xlu0 %3155
    %3157 = vrot.lane.b32.xlu0 %v3070, 48
    %v3158 = vpop.permute.xlu0 %3157
    %3159 = vrot.lane.b32.xlu0 %v3074, 48
    %v3160 = vpop.permute.xlu0 %3159
    %3161 = vrot.lane.b32.xlu0 %v3073, 48
    %v3162 = vpop.permute.xlu0 %3161
    %3163 = vrot.lane.b32.xlu0 %v3077, 48
    %v3164 = vpop.permute.xlu0 %3163
    %3165 = vrot.lane.b32.xlu0 %v3076, 48
    %v3166 = vpop.permute.xlu0 %3165
    %3167 = vrot.lane.b32.xlu0 %v3080, 48
    %v3168 = vpop.permute.xlu0 %3167
    %3169 = vrot.lane.b32.xlu0 %v3079, 48
    %v3170 = vpop.permute.xlu0 %3169
    %3171 = vrot.lane.b32.xlu0 %v3083, 48
    %v3172 = vpop.permute.xlu0 %3171
    %3173 = vrot.lane.b32.xlu0 %v3082, 48
    %v3174 = vpop.permute.xlu0 %3173
    %3175 = vrot.lane.b32.xlu0 %v3086, 48
    %v3176 = vpop.permute.xlu0 %3175
    %3177 = vrot.lane.b32.xlu0 %v3085, 48
    %v3178 = vpop.permute.xlu0 %3177
    %3179 = vrot.lane.b32.xlu0 %v3089, 48
    %v3180 = vpop.permute.xlu0 %3179
    %3181 = vrot.lane.b32.xlu0 %v3088, 48
    %v3182 = vpop.permute.xlu0 %3181
    %3183 = vrot.lane.b32.xlu0 %v3092, 48
    %v3184 = vpop.permute.xlu0 %3183
    %3185 = vrot.lane.b32.xlu0 %v3091, 48
    %v3186 = vpop.permute.xlu0 %3185
    %3187 = vrot.lane.b32.xlu0 %v3095, 48
    %v3188 = vpop.permute.xlu0 %3187
    %3189 = vrot.lane.b32.xlu0 %v3094, 48
    %v3190 = vpop.permute.xlu0 %3189
    %3191 = vrot.lane.b32.xlu0 %v3098, 48
    %v3192 = vpop.permute.xlu0 %3191
    %3193 = vrot.lane.b32.xlu0 %v3097, 48
    %v3194 = vpop.permute.xlu0 %3193
    %3247 = vrot.lane.b32.xlu0 %v2709, 72
    %v3248 = vpop.permute.xlu0 %3247
    %3249 = vrot.lane.b32.xlu0 %v2710, 72
    %v3250 = vpop.permute.xlu0 %3249
    %3251 = vrot.lane.b32.xlu0 %v2711, 72
    %v3252 = vpop.permute.xlu0 %3251
    %3253 = vrot.lane.b32.xlu0 %v2712, 72
    %v3254 = vpop.permute.xlu0 %3253
    %3255 = vrot.lane.b32.xlu0 %v2713, 72
    %v3256 = vpop.permute.xlu0 %3255
    %3257 = vrot.lane.b32.xlu0 %v2714, 72
    %v3258 = vpop.permute.xlu0 %3257
    %3259 = vrot.lane.b32.xlu0 %v2715, 72
    %v3260 = vpop.permute.xlu0 %3259
    %3261 = vrot.lane.b32.xlu0 %v2716, 72
    %v3262 = vpop.permute.xlu0 %3261
    %3263 = vrot.lane.b32.xlu0 %v2717, 72
    %v3264 = vpop.permute.xlu0 %3263
    %3265 = vrot.lane.b32.xlu0 %v2718, 72
    %v3266 = vpop.permute.xlu0 %3265
    %3267 = vrot.lane.b32.xlu0 %v2719, 72
    %v3268 = vpop.permute.xlu0 %3267
    %3269 = vrot.lane.b32.xlu0 %v2720, 72
    %v3270 = vpop.permute.xlu0 %3269
    %3271 = vrot.lane.b32.xlu0 %v2721, 72
    %v3272 = vpop.permute.xlu0 %3271
    %3273 = vrot.lane.b32.xlu0 %v2722, 72
    %v3274 = vpop.permute.xlu0 %3273
    %3275 = vrot.lane.b32.xlu0 %v2723, 72
    %v3276 = vpop.permute.xlu0 %3275
    %3277 = vrot.lane.b32.xlu0 %v2724, 72
    %v3278 = vpop.permute.xlu0 %3277
    %3279 = vrot.lane.b32.xlu0 %v2725, 72
    %v3280 = vpop.permute.xlu0 %3279
    %3281 = vrot.lane.b32.xlu0 %v2726, 72
    %v3282 = vpop.permute.xlu0 %3281
    %3283 = vrot.lane.b32.xlu0 %v2727, 72
    %v3284 = vpop.permute.xlu0 %3283
    %3285 = vrot.lane.b32.xlu0 %v2728, 72
    %v3286 = vpop.permute.xlu0 %3285
    %3287 = vrot.lane.b32.xlu0 %v2729, 72
    %v3288 = vpop.permute.xlu0 %3287
    %3289 = vrot.lane.b32.xlu0 %v2730, 72
    %v3290 = vpop.permute.xlu0 %3289
    %3291 = vrot.lane.b32.xlu0 %v2731, 72
    %v3292 = vpop.permute.xlu0 %3291
    %3293 = vrot.lane.b32.xlu0 %v2732, 72
    %v3294 = vpop.permute.xlu0 %3293
    %3295 = vrot.lane.b32.xlu0 %v2737, 72
    %v3296 = vpop.permute.xlu0 %3295
    %3297 = vrot.lane.b32.xlu0 %v2738, 72
    %v3298 = vpop.permute.xlu0 %3297
    %3299 = vrot.lane.b32.xlu0 %v2739, 72
    %v3300 = vpop.permute.xlu0 %3299
    %3301 = vrot.lane.b32.xlu0 %v2740, 72
    %v3302 = vpop.permute.xlu0 %3301
    %3303 = vrot.lane.b32.xlu0 %v2741, 72
    %v3304 = vpop.permute.xlu0 %3303
    %3305 = vrot.lane.b32.xlu0 %v2742, 72
    %v3306 = vpop.permute.xlu0 %3305
    %3307 = vrot.lane.b32.xlu0 %v2743, 72
    %v3308 = vpop.permute.xlu0 %3307
    %3309 = vrot.lane.b32.xlu0 %v2744, 72
    %v3310 = vpop.permute.xlu0 %3309
    %3311 = vrot.lane.b32.xlu0 %v2745, 72
    %v3312 = vpop.permute.xlu0 %3311
    %3313 = vrot.lane.b32.xlu0 %v2746, 72
    %v3314 = vpop.permute.xlu0 %3313
    %3315 = vrot.lane.b32.xlu0 %v2747, 72
    %v3316 = vpop.permute.xlu0 %3315
    %3317 = vrot.lane.b32.xlu0 %v2748, 72
    %v3318 = vpop.permute.xlu0 %3317
    %3319 = vrot.lane.b32.xlu0 %v2749, 72
    %v3320 = vpop.permute.xlu0 %3319
    %3321 = vrot.lane.b32.xlu0 %v2750, 72
    %v3322 = vpop.permute.xlu0 %3321
    %3323 = vrot.lane.b32.xlu0 %v2751, 72
    %v3324 = vpop.permute.xlu0 %3323
    %3325 = vrot.lane.b32.xlu0 %v2752, 72
    %v3326 = vpop.permute.xlu0 %3325
    %3327 = vrot.lane.b32.xlu0 %v2753, 72
    %v3328 = vpop.permute.xlu0 %3327
    %3329 = vrot.lane.b32.xlu0 %v2754, 72
    %v3330 = vpop.permute.xlu0 %3329
    %3331 = vrot.lane.b32.xlu0 %v2755, 72
    %v3332 = vpop.permute.xlu0 %3331
    %3333 = vrot.lane.b32.xlu0 %v2756, 72
    %v3334 = vpop.permute.xlu0 %3333
    %3335 = vrot.lane.b32.xlu0 %v2757, 72
    %v3336 = vpop.permute.xlu0 %3335
    %3337 = vrot.lane.b32.xlu0 %v2758, 72
    %v3338 = vpop.permute.xlu0 %3337
    %3339 = vrot.lane.b32.xlu0 %v2759, 72
    %v3340 = vpop.permute.xlu0 %3339
    %3341 = vrot.lane.b32.xlu0 %v2760, 72
    %v3342 = vpop.permute.xlu0 %3341
    %v3391 = vrot.slane %v2731, 1
    %v3392 = vrot.slane %v2732, 1
    %v3393 = vsel %vm607, %v3391, %v3392
    %v3394 = vrot.slane %v2759, 1
    %v3395 = vrot.slane %v2760, 1
    %v3396 = vsel %vm607, %v3394, %v3395
    %3397 = vrot.lane.b32.xlu0 %v2816, 96
    %v3398 = vpop.permute.xlu0 %3397
    %3399 = vrot.lane.b32.xlu0 %v2815, 96
    %v3400 = vpop.permute.xlu0 %3399
    %3401 = vrot.lane.b32.xlu0 %v2819, 96
    %v3402 = vpop.permute.xlu0 %3401
    %3403 = vrot.lane.b32.xlu0 %v2818, 96
    %v3404 = vpop.permute.xlu0 %3403
    %3405 = vrot.lane.b32.xlu0 %v2822, 96
    %v3406 = vpop.permute.xlu0 %3405
    %3407 = vrot.lane.b32.xlu0 %v2821, 96
    %v3408 = vpop.permute.xlu0 %3407
    %3409 = vrot.lane.b32.xlu0 %v2825, 96
    %v3410 = vpop.permute.xlu0 %3409
    %3411 = vrot.lane.b32.xlu0 %v2824, 96
    %v3412 = vpop.permute.xlu0 %3411
    %3413 = vrot.lane.b32.xlu0 %v2828, 96
    %v3414 = vpop.permute.xlu0 %3413
    %3415 = vrot.lane.b32.xlu0 %v2827, 96
    %v3416 = vpop.permute.xlu0 %3415
    %3417 = vrot.lane.b32.xlu0 %v2831, 96
    %v3418 = vpop.permute.xlu0 %3417
    %3419 = vrot.lane.b32.xlu0 %v2830, 96
    %v3420 = vpop.permute.xlu0 %3419
    %3421 = vrot.lane.b32.xlu0 %v2834, 96
    %v3422 = vpop.permute.xlu0 %3421
    %3423 = vrot.lane.b32.xlu0 %v2833, 96
    %v3424 = vpop.permute.xlu0 %3423
    %3425 = vrot.lane.b32.xlu0 %v2837, 96
    %v3426 = vpop.permute.xlu0 %3425
    %3427 = vrot.lane.b32.xlu0 %v2836, 96
    %v3428 = vpop.permute.xlu0 %3427
    %3429 = vrot.lane.b32.xlu0 %v2840, 96
    %v3430 = vpop.permute.xlu0 %3429
    %3431 = vrot.lane.b32.xlu0 %v2839, 96
    %v3432 = vpop.permute.xlu0 %3431
    %3433 = vrot.lane.b32.xlu0 %v2843, 96
    %v3434 = vpop.permute.xlu0 %3433
    %3435 = vrot.lane.b32.xlu0 %v2842, 96
    %v3436 = vpop.permute.xlu0 %3435
    %3437 = vrot.lane.b32.xlu0 %v2846, 96
    %v3438 = vpop.permute.xlu0 %3437
    %3439 = vrot.lane.b32.xlu0 %v2845, 96
    %v3440 = vpop.permute.xlu0 %3439
    %3441 = vrot.lane.b32.xlu0 %v3393, 96
    %v3442 = vpop.permute.xlu0 %3441
    %3443 = vrot.lane.b32.xlu0 %v3392, 96
    %v3444 = vpop.permute.xlu0 %3443
    %3445 = vrot.lane.b32.xlu0 %v2852, 96
    %v3446 = vpop.permute.xlu0 %3445
    %3447 = vrot.lane.b32.xlu0 %v2851, 96
    %v3448 = vpop.permute.xlu0 %3447
    %3449 = vrot.lane.b32.xlu0 %v2855, 96
    %v3450 = vpop.permute.xlu0 %3449
    %3451 = vrot.lane.b32.xlu0 %v2854, 96
    %v3452 = vpop.permute.xlu0 %3451
    %3453 = vrot.lane.b32.xlu0 %v2858, 96
    %v3454 = vpop.permute.xlu0 %3453
    %3455 = vrot.lane.b32.xlu0 %v2857, 96
    %v3456 = vpop.permute.xlu0 %3455
    %3457 = vrot.lane.b32.xlu0 %v2861, 96
    %v3458 = vpop.permute.xlu0 %3457
    %3459 = vrot.lane.b32.xlu0 %v2860, 96
    %v3460 = vpop.permute.xlu0 %3459
    %3461 = vrot.lane.b32.xlu0 %v2864, 96
    %v3462 = vpop.permute.xlu0 %3461
    %3463 = vrot.lane.b32.xlu0 %v2863, 96
    %v3464 = vpop.permute.xlu0 %3463
    %3465 = vrot.lane.b32.xlu0 %v2867, 96
    %v3466 = vpop.permute.xlu0 %3465
    %3467 = vrot.lane.b32.xlu0 %v2866, 96
    %v3468 = vpop.permute.xlu0 %3467
    %3469 = vrot.lane.b32.xlu0 %v2870, 96
    %v3470 = vpop.permute.xlu0 %3469
    %3471 = vrot.lane.b32.xlu0 %v2869, 96
    %v3472 = vpop.permute.xlu0 %3471
    %3473 = vrot.lane.b32.xlu0 %v2873, 96
    %v3474 = vpop.permute.xlu0 %3473
    %3475 = vrot.lane.b32.xlu0 %v2872, 96
    %v3476 = vpop.permute.xlu0 %3475
    %3477 = vrot.lane.b32.xlu0 %v2876, 96
    %v3478 = vpop.permute.xlu0 %3477
    %3479 = vrot.lane.b32.xlu0 %v2875, 96
    %v3480 = vpop.permute.xlu0 %3479
    %3481 = vrot.lane.b32.xlu0 %v2879, 96
    %v3482 = vpop.permute.xlu0 %3481
    %3483 = vrot.lane.b32.xlu0 %v2878, 96
    %v3484 = vpop.permute.xlu0 %3483
    %3485 = vrot.lane.b32.xlu0 %v2882, 96
    %v3486 = vpop.permute.xlu0 %3485
    %3487 = vrot.lane.b32.xlu0 %v2881, 96
    %v3488 = vpop.permute.xlu0 %3487
    %3489 = vrot.lane.b32.xlu0 %v3396, 96
    %v3490 = vpop.permute.xlu0 %3489
    %3491 = vrot.lane.b32.xlu0 %v3395, 96
    %v3492 = vpop.permute.xlu0 %3491
    %v3541 = vrot.slane %v2731, 2
    %v3542 = vrot.slane %v2732, 2
    %v3543 = vsel %vm921, %v3541, %v3542
    %v3544 = vrot.slane %v2759, 2
    %v3545 = vrot.slane %v2760, 2
    %v3546 = vsel %vm921, %v3544, %v3545
    %3547 = vrot.lane.b32.xlu0 %v3032, 120
    %v3548 = vpop.permute.xlu0 %3547
    %3549 = vrot.lane.b32.xlu0 %v3031, 120
    %v3550 = vpop.permute.xlu0 %3549
    %3551 = vrot.lane.b32.xlu0 %v3035, 120
    %v3552 = vpop.permute.xlu0 %3551
    %3553 = vrot.lane.b32.xlu0 %v3034, 120
    %v3554 = vpop.permute.xlu0 %3553
    %3555 = vrot.lane.b32.xlu0 %v3038, 120
    %v3556 = vpop.permute.xlu0 %3555
    %3557 = vrot.lane.b32.xlu0 %v3037, 120
    %v3558 = vpop.permute.xlu0 %3557
    %3559 = vrot.lane.b32.xlu0 %v3041, 120
    %v3560 = vpop.permute.xlu0 %3559
    %3561 = vrot.lane.b32.xlu0 %v3040, 120
    %v3562 = vpop.permute.xlu0 %3561
    %3563 = vrot.lane.b32.xlu0 %v3044, 120
    %v3564 = vpop.permute.xlu0 %3563
    %3565 = vrot.lane.b32.xlu0 %v3043, 120
    %v3566 = vpop.permute.xlu0 %3565
    %3567 = vrot.lane.b32.xlu0 %v3047, 120
    %v3568 = vpop.permute.xlu0 %3567
    %3569 = vrot.lane.b32.xlu0 %v3046, 120
    %v3570 = vpop.permute.xlu0 %3569
    %3571 = vrot.lane.b32.xlu0 %v3050, 120
    %v3572 = vpop.permute.xlu0 %3571
    %3573 = vrot.lane.b32.xlu0 %v3049, 120
    %v3574 = vpop.permute.xlu0 %3573
    %3575 = vrot.lane.b32.xlu0 %v3053, 120
    %v3576 = vpop.permute.xlu0 %3575
    %3577 = vrot.lane.b32.xlu0 %v3052, 120
    %v3578 = vpop.permute.xlu0 %3577
    %3579 = vrot.lane.b32.xlu0 %v3056, 120
    %v3580 = vpop.permute.xlu0 %3579
    %3581 = vrot.lane.b32.xlu0 %v3055, 120
    %v3582 = vpop.permute.xlu0 %3581
    %3583 = vrot.lane.b32.xlu0 %v3059, 120
    %v3584 = vpop.permute.xlu0 %3583
    %3585 = vrot.lane.b32.xlu0 %v3058, 120
    %v3586 = vpop.permute.xlu0 %3585
    %3587 = vrot.lane.b32.xlu0 %v3062, 120
    %v3588 = vpop.permute.xlu0 %3587
    %3589 = vrot.lane.b32.xlu0 %v3061, 120
    %v3590 = vpop.permute.xlu0 %3589
    %3591 = vrot.lane.b32.xlu0 %v3543, 120
    %v3592 = vpop.permute.xlu0 %3591
    %3593 = vrot.lane.b32.xlu0 %v3542, 120
    %v3594 = vpop.permute.xlu0 %3593
    %3595 = vrot.lane.b32.xlu0 %v3068, 120
    %v3596 = vpop.permute.xlu0 %3595
    %3597 = vrot.lane.b32.xlu0 %v3067, 120
    %v3598 = vpop.permute.xlu0 %3597
    %3599 = vrot.lane.b32.xlu0 %v3071, 120
    %v3600 = vpop.permute.xlu0 %3599
    %3601 = vrot.lane.b32.xlu0 %v3070, 120
    %v3602 = vpop.permute.xlu0 %3601
    %3603 = vrot.lane.b32.xlu0 %v3074, 120
    %v3604 = vpop.permute.xlu0 %3603
    %3605 = vrot.lane.b32.xlu0 %v3073, 120
    %v3606 = vpop.permute.xlu0 %3605
    %3607 = vrot.lane.b32.xlu0 %v3077, 120
    %v3608 = vpop.permute.xlu0 %3607
    %3609 = vrot.lane.b32.xlu0 %v3076, 120
    %v3610 = vpop.permute.xlu0 %3609
    %3611 = vrot.lane.b32.xlu0 %v3080, 120
    %v3612 = vpop.permute.xlu0 %3611
    %3613 = vrot.lane.b32.xlu0 %v3079, 120
    %v3614 = vpop.permute.xlu0 %3613
    %3615 = vrot.lane.b32.xlu0 %v3083, 120
    %v3616 = vpop.permute.xlu0 %3615
    %3617 = vrot.lane.b32.xlu0 %v3082, 120
    %v3618 = vpop.permute.xlu0 %3617
    %3619 = vrot.lane.b32.xlu0 %v3086, 120
    %v3620 = vpop.permute.xlu0 %3619
    %3621 = vrot.lane.b32.xlu0 %v3085, 120
    %v3622 = vpop.permute.xlu0 %3621
    %3623 = vrot.lane.b32.xlu0 %v3089, 120
    %v3624 = vpop.permute.xlu0 %3623
    %3625 = vrot.lane.b32.xlu0 %v3088, 120
    %v3626 = vpop.permute.xlu0 %3625
    %3627 = vrot.lane.b32.xlu0 %v3092, 120
    %v3628 = vpop.permute.xlu0 %3627
    %3629 = vrot.lane.b32.xlu0 %v3091, 120
    %v3630 = vpop.permute.xlu0 %3629
    %3631 = vrot.lane.b32.xlu0 %v3095, 120
    %v3632 = vpop.permute.xlu0 %3631
    %3633 = vrot.lane.b32.xlu0 %v3094, 120
    %v3634 = vpop.permute.xlu0 %3633
    %3635 = vrot.lane.b32.xlu0 %v3098, 120
    %v3636 = vpop.permute.xlu0 %3635
    %3637 = vrot.lane.b32.xlu0 %v3097, 120
    %v3638 = vpop.permute.xlu0 %3637
    %3639 = vrot.lane.b32.xlu0 %v3546, 120
    %v3640 = vpop.permute.xlu0 %3639
    %3641 = vrot.lane.b32.xlu0 %v3545, 120
    %v3642 = vpop.permute.xlu0 %3641
    %3695 = vrot.lane.b32.xlu0 %v2711, 16
    %v3696 = vpop.permute.xlu0 %3695
    %3697 = vrot.lane.b32.xlu0 %v2712, 16
    %v3698 = vpop.permute.xlu0 %3697
    %3699 = vrot.lane.b32.xlu0 %v2713, 16
    %v3700 = vpop.permute.xlu0 %3699
    %3701 = vrot.lane.b32.xlu0 %v2714, 16
    %v3702 = vpop.permute.xlu0 %3701
    %3703 = vrot.lane.b32.xlu0 %v2715, 16
    %v3704 = vpop.permute.xlu0 %3703
    %3705 = vrot.lane.b32.xlu0 %v2716, 16
    %v3706 = vpop.permute.xlu0 %3705
    %3707 = vrot.lane.b32.xlu0 %v2717, 16
    %v3708 = vpop.permute.xlu0 %3707
    %3709 = vrot.lane.b32.xlu0 %v2718, 16
    %v3710 = vpop.permute.xlu0 %3709
    %3711 = vrot.lane.b32.xlu0 %v2719, 16
    %v3712 = vpop.permute.xlu0 %3711
    %3713 = vrot.lane.b32.xlu0 %v2720, 16
    %v3714 = vpop.permute.xlu0 %3713
    %3715 = vrot.lane.b32.xlu0 %v2721, 16
    %v3716 = vpop.permute.xlu0 %3715
    %3717 = vrot.lane.b32.xlu0 %v2722, 16
    %v3718 = vpop.permute.xlu0 %3717
    %3719 = vrot.lane.b32.xlu0 %v2723, 16
    %v3720 = vpop.permute.xlu0 %3719
    %3721 = vrot.lane.b32.xlu0 %v2724, 16
    %v3722 = vpop.permute.xlu0 %3721
    %3723 = vrot.lane.b32.xlu0 %v2725, 16
    %v3724 = vpop.permute.xlu0 %3723
    %3725 = vrot.lane.b32.xlu0 %v2726, 16
    %v3726 = vpop.permute.xlu0 %3725
    %3727 = vrot.lane.b32.xlu0 %v2727, 16
    %v3728 = vpop.permute.xlu0 %3727
    %3729 = vrot.lane.b32.xlu0 %v2728, 16
    %v3730 = vpop.permute.xlu0 %3729
    %3731 = vrot.lane.b32.xlu0 %v2729, 16
    %v3732 = vpop.permute.xlu0 %3731
    %3733 = vrot.lane.b32.xlu0 %v2730, 16
    %v3734 = vpop.permute.xlu0 %3733
    %3735 = vrot.lane.b32.xlu0 %v2731, 16
    %v3736 = vpop.permute.xlu0 %3735
    %3737 = vrot.lane.b32.xlu0 %v2732, 16
    %v3738 = vpop.permute.xlu0 %3737
    %3739 = vrot.lane.b32.xlu0 %v2733, 16
    %v3740 = vpop.permute.xlu0 %3739
    %3741 = vrot.lane.b32.xlu0 %v2734, 16
    %v3742 = vpop.permute.xlu0 %3741
    %3743 = vrot.lane.b32.xlu0 %v2739, 16
    %v3744 = vpop.permute.xlu0 %3743
    %3745 = vrot.lane.b32.xlu0 %v2740, 16
    %v3746 = vpop.permute.xlu0 %3745
    %3747 = vrot.lane.b32.xlu0 %v2741, 16
    %v3748 = vpop.permute.xlu0 %3747
    %3749 = vrot.lane.b32.xlu0 %v2742, 16
    %v3750 = vpop.permute.xlu0 %3749
    %3751 = vrot.lane.b32.xlu0 %v2743, 16
    %v3752 = vpop.permute.xlu0 %3751
    %3753 = vrot.lane.b32.xlu0 %v2744, 16
    %v3754 = vpop.permute.xlu0 %3753
    %3755 = vrot.lane.b32.xlu0 %v2745, 16
    %v3756 = vpop.permute.xlu0 %3755
    %3757 = vrot.lane.b32.xlu0 %v2746, 16
    %v3758 = vpop.permute.xlu0 %3757
    %3759 = vrot.lane.b32.xlu0 %v2747, 16
    %v3760 = vpop.permute.xlu0 %3759
    %3761 = vrot.lane.b32.xlu0 %v2748, 16
    %v3762 = vpop.permute.xlu0 %3761
    %3763 = vrot.lane.b32.xlu0 %v2749, 16
    %v3764 = vpop.permute.xlu0 %3763
    %3765 = vrot.lane.b32.xlu0 %v2750, 16
    %v3766 = vpop.permute.xlu0 %3765
    %3767 = vrot.lane.b32.xlu0 %v2751, 16
    %v3768 = vpop.permute.xlu0 %3767
    %3769 = vrot.lane.b32.xlu0 %v2752, 16
    %v3770 = vpop.permute.xlu0 %3769
    %3771 = vrot.lane.b32.xlu0 %v2753, 16
    %v3772 = vpop.permute.xlu0 %3771
    %3773 = vrot.lane.b32.xlu0 %v2754, 16
    %v3774 = vpop.permute.xlu0 %3773
    %3775 = vrot.lane.b32.xlu0 %v2755, 16
    %v3776 = vpop.permute.xlu0 %3775
    %3777 = vrot.lane.b32.xlu0 %v2756, 16
    %v3778 = vpop.permute.xlu0 %3777
    %3779 = vrot.lane.b32.xlu0 %v2757, 16
    %v3780 = vpop.permute.xlu0 %3779
    %3781 = vrot.lane.b32.xlu0 %v2758, 16
    %v3782 = vpop.permute.xlu0 %3781
    %3783 = vrot.lane.b32.xlu0 %v2759, 16
    %v3784 = vpop.permute.xlu0 %3783
    %3785 = vrot.lane.b32.xlu0 %v2760, 16
    %v3786 = vpop.permute.xlu0 %3785
    %3787 = vrot.lane.b32.xlu0 %v2761, 16
    %v3788 = vpop.permute.xlu0 %3787
    %3789 = vrot.lane.b32.xlu0 %v2762, 16
    %v3790 = vpop.permute.xlu0 %3789
    %v3839 = vrot.slane %v2733, 1
    %v3840 = vrot.slane %v2734, 1
    %v3841 = vsel %vm607, %v3839, %v3840
    %v3842 = vrot.slane %v2761, 1
    %v3843 = vrot.slane %v2762, 1
    %v3844 = vsel %vm607, %v3842, %v3843
    %3845 = vrot.lane.b32.xlu0 %v2819, 40
    %v3846 = vpop.permute.xlu0 %3845
    %3847 = vrot.lane.b32.xlu0 %v2818, 40
    %v3848 = vpop.permute.xlu0 %3847
    %3849 = vrot.lane.b32.xlu0 %v2822, 40
    %v3850 = vpop.permute.xlu0 %3849
    %3851 = vrot.lane.b32.xlu0 %v2821, 40
    %v3852 = vpop.permute.xlu0 %3851
    %3853 = vrot.lane.b32.xlu0 %v2825, 40
    %v3854 = vpop.permute.xlu0 %3853
    %3855 = vrot.lane.b32.xlu0 %v2824, 40
    %v3856 = vpop.permute.xlu0 %3855
    %3857 = vrot.lane.b32.xlu0 %v2828, 40
    %v3858 = vpop.permute.xlu0 %3857
    %3859 = vrot.lane.b32.xlu0 %v2827, 40
    %v3860 = vpop.permute.xlu0 %3859
    %3861 = vrot.lane.b32.xlu0 %v2831, 40
    %v3862 = vpop.permute.xlu0 %3861
    %3863 = vrot.lane.b32.xlu0 %v2830, 40
    %v3864 = vpop.permute.xlu0 %3863
    %3865 = vrot.lane.b32.xlu0 %v2834, 40
    %v3866 = vpop.permute.xlu0 %3865
    %3867 = vrot.lane.b32.xlu0 %v2833, 40
    %v3868 = vpop.permute.xlu0 %3867
    %3869 = vrot.lane.b32.xlu0 %v2837, 40
    %v3870 = vpop.permute.xlu0 %3869
    %3871 = vrot.lane.b32.xlu0 %v2836, 40
    %v3872 = vpop.permute.xlu0 %3871
    %3873 = vrot.lane.b32.xlu0 %v2840, 40
    %v3874 = vpop.permute.xlu0 %3873
    %3875 = vrot.lane.b32.xlu0 %v2839, 40
    %v3876 = vpop.permute.xlu0 %3875
    %3877 = vrot.lane.b32.xlu0 %v2843, 40
    %v3878 = vpop.permute.xlu0 %3877
    %3879 = vrot.lane.b32.xlu0 %v2842, 40
    %v3880 = vpop.permute.xlu0 %3879
    %3881 = vrot.lane.b32.xlu0 %v2846, 40
    %v3882 = vpop.permute.xlu0 %3881
    %3883 = vrot.lane.b32.xlu0 %v2845, 40
    %v3884 = vpop.permute.xlu0 %3883
    %3885 = vrot.lane.b32.xlu0 %v3393, 40
    %v3886 = vpop.permute.xlu0 %3885
    %3887 = vrot.lane.b32.xlu0 %v3392, 40
    %v3888 = vpop.permute.xlu0 %3887
    %3889 = vrot.lane.b32.xlu0 %v3841, 40
    %v3890 = vpop.permute.xlu0 %3889
    %3891 = vrot.lane.b32.xlu0 %v3840, 40
    %v3892 = vpop.permute.xlu0 %3891
    %3893 = vrot.lane.b32.xlu0 %v2855, 40
    %v3894 = vpop.permute.xlu0 %3893
    %3895 = vrot.lane.b32.xlu0 %v2854, 40
    %v3896 = vpop.permute.xlu0 %3895
    %3897 = vrot.lane.b32.xlu0 %v2858, 40
    %v3898 = vpop.permute.xlu0 %3897
    %3899 = vrot.lane.b32.xlu0 %v2857, 40
    %v3900 = vpop.permute.xlu0 %3899
    %3901 = vrot.lane.b32.xlu0 %v2861, 40
    %v3902 = vpop.permute.xlu0 %3901
    %3903 = vrot.lane.b32.xlu0 %v2860, 40
    %v3904 = vpop.permute.xlu0 %3903
    %3905 = vrot.lane.b32.xlu0 %v2864, 40
    %v3906 = vpop.permute.xlu0 %3905
    %3907 = vrot.lane.b32.xlu0 %v2863, 40
    %v3908 = vpop.permute.xlu0 %3907
    %3909 = vrot.lane.b32.xlu0 %v2867, 40
    %v3910 = vpop.permute.xlu0 %3909
    %3911 = vrot.lane.b32.xlu0 %v2866, 40
    %v3912 = vpop.permute.xlu0 %3911
    %3913 = vrot.lane.b32.xlu0 %v2870, 40
    %v3914 = vpop.permute.xlu0 %3913
    %3915 = vrot.lane.b32.xlu0 %v2869, 40
    %v3916 = vpop.permute.xlu0 %3915
    %3917 = vrot.lane.b32.xlu0 %v2873, 40
    %v3918 = vpop.permute.xlu0 %3917
    %3919 = vrot.lane.b32.xlu0 %v2872, 40
    %v3920 = vpop.permute.xlu0 %3919
    %3921 = vrot.lane.b32.xlu0 %v2876, 40
    %v3922 = vpop.permute.xlu0 %3921
    %3923 = vrot.lane.b32.xlu0 %v2875, 40
    %v3924 = vpop.permute.xlu0 %3923
    %3925 = vrot.lane.b32.xlu0 %v2879, 40
    %v3926 = vpop.permute.xlu0 %3925
    %3927 = vrot.lane.b32.xlu0 %v2878, 40
    %v3928 = vpop.permute.xlu0 %3927
    %3929 = vrot.lane.b32.xlu0 %v2882, 40
    %v3930 = vpop.permute.xlu0 %3929
    %3931 = vrot.lane.b32.xlu0 %v2881, 40
    %v3932 = vpop.permute.xlu0 %3931
    %3933 = vrot.lane.b32.xlu0 %v3396, 40
    %v3934 = vpop.permute.xlu0 %3933
    %3935 = vrot.lane.b32.xlu0 %v3395, 40
    %v3936 = vpop.permute.xlu0 %3935
    %3937 = vrot.lane.b32.xlu0 %v3844, 40
    %v3938 = vpop.permute.xlu0 %3937
    %3939 = vrot.lane.b32.xlu0 %v3843, 40
    %v3940 = vpop.permute.xlu0 %3939
    %v3989 = vrot.slane %v2733, 2
    %v3990 = vrot.slane %v2734, 2
    %v3991 = vsel %vm921, %v3989, %v3990
    %v3992 = vrot.slane %v2761, 2
    %v3993 = vrot.slane %v2762, 2
    %v3994 = vsel %vm921, %v3992, %v3993
    %3995 = vrot.lane.b32.xlu0 %v3035, 64
    %v3996 = vpop.permute.xlu0 %3995
    %3997 = vrot.lane.b32.xlu0 %v3034, 64
    %v3998 = vpop.permute.xlu0 %3997
    %3999 = vrot.lane.b32.xlu0 %v3038, 64
    %v4000 = vpop.permute.xlu0 %3999
    %4001 = vrot.lane.b32.xlu0 %v3037, 64
    %v4002 = vpop.permute.xlu0 %4001
    %4003 = vrot.lane.b32.xlu0 %v3041, 64
    %v4004 = vpop.permute.xlu0 %4003
    %4005 = vrot.lane.b32.xlu0 %v3040, 64
    %v4006 = vpop.permute.xlu0 %4005
    %4007 = vrot.lane.b32.xlu0 %v3044, 64
    %v4008 = vpop.permute.xlu0 %4007
    %4009 = vrot.lane.b32.xlu0 %v3043, 64
    %v4010 = vpop.permute.xlu0 %4009
    %4011 = vrot.lane.b32.xlu0 %v3047, 64
    %v4012 = vpop.permute.xlu0 %4011
    %4013 = vrot.lane.b32.xlu0 %v3046, 64
    %v4014 = vpop.permute.xlu0 %4013
    %4015 = vrot.lane.b32.xlu0 %v3050, 64
    %v4016 = vpop.permute.xlu0 %4015
    %4017 = vrot.lane.b32.xlu0 %v3049, 64
    %v4018 = vpop.permute.xlu0 %4017
    %4019 = vrot.lane.b32.xlu0 %v3053, 64
    %v4020 = vpop.permute.xlu0 %4019
    %4021 = vrot.lane.b32.xlu0 %v3052, 64
    %v4022 = vpop.permute.xlu0 %4021
    %4023 = vrot.lane.b32.xlu0 %v3056, 64
    %v4024 = vpop.permute.xlu0 %4023
    %4025 = vrot.lane.b32.xlu0 %v3055, 64
    %v4026 = vpop.permute.xlu0 %4025
    %4027 = vrot.lane.b32.xlu0 %v3059, 64
    %v4028 = vpop.permute.xlu0 %4027
    %4029 = vrot.lane.b32.xlu0 %v3058, 64
    %v4030 = vpop.permute.xlu0 %4029
    %4031 = vrot.lane.b32.xlu0 %v3062, 64
    %v4032 = vpop.permute.xlu0 %4031
    %4033 = vrot.lane.b32.xlu0 %v3061, 64
    %v4034 = vpop.permute.xlu0 %4033
    %4035 = vrot.lane.b32.xlu0 %v3543, 64
    %v4036 = vpop.permute.xlu0 %4035
    %4037 = vrot.lane.b32.xlu0 %v3542, 64
    %v4038 = vpop.permute.xlu0 %4037
    %4039 = vrot.lane.b32.xlu0 %v3991, 64
    %v4040 = vpop.permute.xlu0 %4039
    %4041 = vrot.lane.b32.xlu0 %v3990, 64
    %v4042 = vpop.permute.xlu0 %4041
    %4043 = vrot.lane.b32.xlu0 %v3071, 64
    %v4044 = vpop.permute.xlu0 %4043
    %4045 = vrot.lane.b32.xlu0 %v3070, 64
    %v4046 = vpop.permute.xlu0 %4045
    %4047 = vrot.lane.b32.xlu0 %v3074, 64
    %v4048 = vpop.permute.xlu0 %4047
    %4049 = vrot.lane.b32.xlu0 %v3073, 64
    %v4050 = vpop.permute.xlu0 %4049
    %4051 = vrot.lane.b32.xlu0 %v3077, 64
    %v4052 = vpop.permute.xlu0 %4051
    %4053 = vrot.lane.b32.xlu0 %v3076, 64
    %v4054 = vpop.permute.xlu0 %4053
    %4055 = vrot.lane.b32.xlu0 %v3080, 64
    %v4056 = vpop.permute.xlu0 %4055
    %4057 = vrot.lane.b32.xlu0 %v3079, 64
    %v4058 = vpop.permute.xlu0 %4057
    %4059 = vrot.lane.b32.xlu0 %v3083, 64
    %v4060 = vpop.permute.xlu0 %4059
    %4061 = vrot.lane.b32.xlu0 %v3082, 64
    %v4062 = vpop.permute.xlu0 %4061
    %4063 = vrot.lane.b32.xlu0 %v3086, 64
    %v4064 = vpop.permute.xlu0 %4063
    %4065 = vrot.lane.b32.xlu0 %v3085, 64
    %v4066 = vpop.permute.xlu0 %4065
    %4067 = vrot.lane.b32.xlu0 %v3089, 64
    %v4068 = vpop.permute.xlu0 %4067
    %4069 = vrot.lane.b32.xlu0 %v3088, 64
    %v4070 = vpop.permute.xlu0 %4069
    %4071 = vrot.lane.b32.xlu0 %v3092, 64
    %v4072 = vpop.permute.xlu0 %4071
    %4073 = vrot.lane.b32.xlu0 %v3091, 64
    %v4074 = vpop.permute.xlu0 %4073
    %4075 = vrot.lane.b32.xlu0 %v3095, 64
    %v4076 = vpop.permute.xlu0 %4075
    %4077 = vrot.lane.b32.xlu0 %v3094, 64
    %v4078 = vpop.permute.xlu0 %4077
    %4079 = vrot.lane.b32.xlu0 %v3098, 64
    %v4080 = vpop.permute.xlu0 %4079
    %4081 = vrot.lane.b32.xlu0 %v3097, 64
    %v4082 = vpop.permute.xlu0 %4081
    %4083 = vrot.lane.b32.xlu0 %v3546, 64
    %v4084 = vpop.permute.xlu0 %4083
    %4085 = vrot.lane.b32.xlu0 %v3545, 64
    %v4086 = vpop.permute.xlu0 %4085
    %4087 = vrot.lane.b32.xlu0 %v3994, 64
    %v4088 = vpop.permute.xlu0 %4087
    %4089 = vrot.lane.b32.xlu0 %v3993, 64
    %v4090 = vpop.permute.xlu0 %4089
    %vm4139 = vcmask 195584
    %v4140 = vsel %vm4139, %v2707, %v2884
    %v4141 = vsel %vm4139, %v2708, %v2886
    %v4142 = vsel %vm4139, %v2709, %v2888
    %v4143 = vsel %vm4139, %v2710, %v2890
    %v4144 = vsel %vm4139, %v2711, %v2892
    %v4145 = vsel %vm4139, %v2712, %v2894
    %v4146 = vsel %vm4139, %v2713, %v2896
    %v4147 = vsel %vm4139, %v2714, %v2898
    %v4148 = vsel %vm4139, %v2715, %v2900
    %v4149 = vsel %vm4139, %v2716, %v2902
    %v4150 = vsel %vm4139, %v2717, %v2904
    %v4151 = vsel %vm4139, %v2718, %v2906
    %v4152 = vsel %vm4139, %v2719, %v2908
    %v4153 = vsel %vm4139, %v2720, %v2910
    %v4154 = vsel %vm4139, %v2721, %v2912
    %v4155 = vsel %vm4139, %v2722, %v2914
    %v4156 = vsel %vm4139, %v2723, %v2916
    %v4157 = vsel %vm4139, %v2724, %v2918
    %v4158 = vsel %vm4139, %v2725, %v2920
    %v4159 = vsel %vm4139, %v2726, %v2922
    %v4160 = vsel %vm4139, %v2727, %v2924
    %v4161 = vsel %vm4139, %v2728, %v2926
    %v4162 = vsel %vm4139, %v2729, %v2928
    %v4163 = vsel %vm4139, %v2730, %v2930
    %v4164 = vsel %vm4139, %v2735, %v2932
    %v4165 = vsel %vm4139, %v2736, %v2934
    %v4166 = vsel %vm4139, %v2737, %v2936
    %v4167 = vsel %vm4139, %v2738, %v2938
    %v4168 = vsel %vm4139, %v2739, %v2940
    %v4169 = vsel %vm4139, %v2740, %v2942
    %v4170 = vsel %vm4139, %v2741, %v2944
    %v4171 = vsel %vm4139, %v2742, %v2946
    %v4172 = vsel %vm4139, %v2743, %v2948
    %v4173 = vsel %vm4139, %v2744, %v2950
    %v4174 = vsel %vm4139, %v2745, %v2952
    %v4175 = vsel %vm4139, %v2746, %v2954
    %v4176 = vsel %vm4139, %v2747, %v2956
    %v4177 = vsel %vm4139, %v2748, %v2958
    %v4178 = vsel %vm4139, %v2749, %v2960
    %v4179 = vsel %vm4139, %v2750, %v2962
    %v4180 = vsel %vm4139, %v2751, %v2964
    %v4181 = vsel %vm4139, %v2752, %v2966
    %v4182 = vsel %vm4139, %v2753, %v2968
    %v4183 = vsel %vm4139, %v2754, %v2970
    %v4184 = vsel %vm4139, %v2755, %v2972
    %v4185 = vsel %vm4139, %v2756, %v2974
    %v4186 = vsel %vm4139, %v2757, %v2976
    %v4187 = vsel %vm4139, %v2758, %v2978
    %vm4188 = vcmask 392192
    %v4189 = vsel %vm4188, %v4140, %v3100
    %v4190 = vsel %vm4188, %v4141, %v3102
    %v4191 = vsel %vm4188, %v4142, %v3104
    %v4192 = vsel %vm4188, %v4143, %v3106
    %v4193 = vsel %vm4188, %v4144, %v3108
    %v4194 = vsel %vm4188, %v4145, %v3110
    %v4195 = vsel %vm4188, %v4146, %v3112
    %v4196 = vsel %vm4188, %v4147, %v3114
    %v4197 = vsel %vm4188, %v4148, %v3116
    %v4198 = vsel %vm4188, %v4149, %v3118
    %v4199 = vsel %vm4188, %v4150, %v3120
    %v4200 = vsel %vm4188, %v4151, %v3122
    %v4201 = vsel %vm4188, %v4152, %v3124
    %v4202 = vsel %vm4188, %v4153, %v3126
    %v4203 = vsel %vm4188, %v4154, %v3128
    %v4204 = vsel %vm4188, %v4155, %v3130
    %v4205 = vsel %vm4188, %v4156, %v3132
    %v4206 = vsel %vm4188, %v4157, %v3134
    %v4207 = vsel %vm4188, %v4158, %v3136
    %v4208 = vsel %vm4188, %v4159, %v3138
    %v4209 = vsel %vm4188, %v4160, %v3140
    %v4210 = vsel %vm4188, %v4161, %v3142
    %v4211 = vsel %vm4188, %v4162, %v3144
    %v4212 = vsel %vm4188, %v4163, %v3146
    %v4213 = vsel %vm4188, %v4164, %v3148
    %v4214 = vsel %vm4188, %v4165, %v3150
    %v4215 = vsel %vm4188, %v4166, %v3152
    %v4216 = vsel %vm4188, %v4167, %v3154
    %v4217 = vsel %vm4188, %v4168, %v3156
    %v4218 = vsel %vm4188, %v4169, %v3158
    %v4219 = vsel %vm4188, %v4170, %v3160
    %v4220 = vsel %vm4188, %v4171, %v3162
    %v4221 = vsel %vm4188, %v4172, %v3164
    %v4222 = vsel %vm4188, %v4173, %v3166
    %v4223 = vsel %vm4188, %v4174, %v3168
    %v4224 = vsel %vm4188, %v4175, %v3170
    %v4225 = vsel %vm4188, %v4176, %v3172
    %v4226 = vsel %vm4188, %v4177, %v3174
    %v4227 = vsel %vm4188, %v4178, %v3176
    %v4228 = vsel %vm4188, %v4179, %v3178
    %v4229 = vsel %vm4188, %v4180, %v3180
    %v4230 = vsel %vm4188, %v4181, %v3182
    %v4231 = vsel %vm4188, %v4182, %v3184
    %v4232 = vsel %vm4188, %v4183, %v3186
    %v4233 = vsel %vm4188, %v4184, %v3188
    %v4234 = vsel %vm4188, %v4185, %v3190
    %v4235 = vsel %vm4188, %v4186, %v3192
    %v4236 = vsel %vm4188, %v4187, %v3194
    %vm4237 = vcmask 588800
    %v4238 = vsel %vm4237, %v4189, %v3248
    %v4239 = vsel %vm4237, %v4190, %v3250
    %v4240 = vsel %vm4237, %v4191, %v3252
    %v4241 = vsel %vm4237, %v4192, %v3254
    %v4242 = vsel %vm4237, %v4193, %v3256
    %v4243 = vsel %vm4237, %v4194, %v3258
    %v4244 = vsel %vm4237, %v4195, %v3260
    %v4245 = vsel %vm4237, %v4196, %v3262
    %v4246 = vsel %vm4237, %v4197, %v3264
    %v4247 = vsel %vm4237, %v4198, %v3266
    %v4248 = vsel %vm4237, %v4199, %v3268
    %v4249 = vsel %vm4237, %v4200, %v3270
    %v4250 = vsel %vm4237, %v4201, %v3272
    %v4251 = vsel %vm4237, %v4202, %v3274
    %v4252 = vsel %vm4237, %v4203, %v3276
    %v4253 = vsel %vm4237, %v4204, %v3278
    %v4254 = vsel %vm4237, %v4205, %v3280
    %v4255 = vsel %vm4237, %v4206, %v3282
    %v4256 = vsel %vm4237, %v4207, %v3284
    %v4257 = vsel %vm4237, %v4208, %v3286
    %v4258 = vsel %vm4237, %v4209, %v3288
    %v4259 = vsel %vm4237, %v4210, %v3290
    %v4260 = vsel %vm4237, %v4211, %v3292
    %v4261 = vsel %vm4237, %v4212, %v3294
    %v4262 = vsel %vm4237, %v4213, %v3296
    %v4263 = vsel %vm4237, %v4214, %v3298
    %v4264 = vsel %vm4237, %v4215, %v3300
    %v4265 = vsel %vm4237, %v4216, %v3302
    %v4266 = vsel %vm4237, %v4217, %v3304
    %v4267 = vsel %vm4237, %v4218, %v3306
    %v4268 = vsel %vm4237, %v4219, %v3308
    %v4269 = vsel %vm4237, %v4220, %v3310
    %v4270 = vsel %vm4237, %v4221, %v3312
    %v4271 = vsel %vm4237, %v4222, %v3314
    %v4272 = vsel %vm4237, %v4223, %v3316
    %v4273 = vsel %vm4237, %v4224, %v3318
    %v4274 = vsel %vm4237, %v4225, %v3320
    %v4275 = vsel %vm4237, %v4226, %v3322
    %v4276 = vsel %vm4237, %v4227, %v3324
    %v4277 = vsel %vm4237, %v4228, %v3326
    %v4278 = vsel %vm4237, %v4229, %v3328
    %v4279 = vsel %vm4237, %v4230, %v3330
    %v4280 = vsel %vm4237, %v4231, %v3332
    %v4281 = vsel %vm4237, %v4232, %v3334
    %v4282 = vsel %vm4237, %v4233, %v3336
    %v4283 = vsel %vm4237, %v4234, %v3338
    %v4284 = vsel %vm4237, %v4235, %v3340
    %v4285 = vsel %vm4237, %v4236, %v3342
    %vm4286 = vcmask 785408
    %v4287 = vsel %vm4286, %v4238, %v3398
    %v4288 = vsel %vm4286, %v4239, %v3400
    %v4289 = vsel %vm4286, %v4240, %v3402
    %v4290 = vsel %vm4286, %v4241, %v3404
    %v4291 = vsel %vm4286, %v4242, %v3406
    %v4292 = vsel %vm4286, %v4243, %v3408
    %v4293 = vsel %vm4286, %v4244, %v3410
    %v4294 = vsel %vm4286, %v4245, %v3412
    %v4295 = vsel %vm4286, %v4246, %v3414
    %v4296 = vsel %vm4286, %v4247, %v3416
    %v4297 = vsel %vm4286, %v4248, %v3418
    %v4298 = vsel %vm4286, %v4249, %v3420
    %v4299 = vsel %vm4286, %v4250, %v3422
    %v4300 = vsel %vm4286, %v4251, %v3424
    %v4301 = vsel %vm4286, %v4252, %v3426
    %v4302 = vsel %vm4286, %v4253, %v3428
    %v4303 = vsel %vm4286, %v4254, %v3430
    %v4304 = vsel %vm4286, %v4255, %v3432
    %v4305 = vsel %vm4286, %v4256, %v3434
    %v4306 = vsel %vm4286, %v4257, %v3436
    %v4307 = vsel %vm4286, %v4258, %v3438
    %v4308 = vsel %vm4286, %v4259, %v3440
    %v4309 = vsel %vm4286, %v4260, %v3442
    %v4310 = vsel %vm4286, %v4261, %v3444
    %v4311 = vsel %vm4286, %v4262, %v3446
    %v4312 = vsel %vm4286, %v4263, %v3448
    %v4313 = vsel %vm4286, %v4264, %v3450
    %v4314 = vsel %vm4286, %v4265, %v3452
    %v4315 = vsel %vm4286, %v4266, %v3454
    %v4316 = vsel %vm4286, %v4267, %v3456
    %v4317 = vsel %vm4286, %v4268, %v3458
    %v4318 = vsel %vm4286, %v4269, %v3460
    %v4319 = vsel %vm4286, %v4270, %v3462
    %v4320 = vsel %vm4286, %v4271, %v3464
    %v4321 = vsel %vm4286, %v4272, %v3466
    %v4322 = vsel %vm4286, %v4273, %v3468
    %v4323 = vsel %vm4286, %v4274, %v3470
    %v4324 = vsel %vm4286, %v4275, %v3472
    %v4325 = vsel %vm4286, %v4276, %v3474
    %v4326 = vsel %vm4286, %v4277, %v3476
    %v4327 = vsel %vm4286, %v4278, %v3478
    %v4328 = vsel %vm4286, %v4279, %v3480
    %v4329 = vsel %vm4286, %v4280, %v3482
    %v4330 = vsel %vm4286, %v4281, %v3484
    %v4331 = vsel %vm4286, %v4282, %v3486
    %v4332 = vsel %vm4286, %v4283, %v3488
    %v4333 = vsel %vm4286, %v4284, %v3490
    %v4334 = vsel %vm4286, %v4285, %v3492
    %vm4335 = vcmask 982016
    %v4336 = vsel %vm4335, %v4287, %v3548
    %v4337 = vsel %vm4335, %v4288, %v3550
    %v4338 = vsel %vm4335, %v4289, %v3552
    %v4339 = vsel %vm4335, %v4290, %v3554
    %v4340 = vsel %vm4335, %v4291, %v3556
    %v4341 = vsel %vm4335, %v4292, %v3558
    %v4342 = vsel %vm4335, %v4293, %v3560
    %v4343 = vsel %vm4335, %v4294, %v3562
    %v4344 = vsel %vm4335, %v4295, %v3564
    %v4345 = vsel %vm4335, %v4296, %v3566
    %v4346 = vsel %vm4335, %v4297, %v3568
    %v4347 = vsel %vm4335, %v4298, %v3570
    %v4348 = vsel %vm4335, %v4299, %v3572
    %v4349 = vsel %vm4335, %v4300, %v3574
    %v4350 = vsel %vm4335, %v4301, %v3576
    %v4351 = vsel %vm4335, %v4302, %v3578
    %v4352 = vsel %vm4335, %v4303, %v3580
    %v4353 = vsel %vm4335, %v4304, %v3582
    %v4354 = vsel %vm4335, %v4305, %v3584
    %v4355 = vsel %vm4335, %v4306, %v3586
    %v4356 = vsel %vm4335, %v4307, %v3588
    %v4357 = vsel %vm4335, %v4308, %v3590
    %v4358 = vsel %vm4335, %v4309, %v3592
    %v4359 = vsel %vm4335, %v4310, %v3594
    %v4360 = vsel %vm4335, %v4311, %v3596
    %v4361 = vsel %vm4335, %v4312, %v3598
    %v4362 = vsel %vm4335, %v4313, %v3600
    %v4363 = vsel %vm4335, %v4314, %v3602
    %v4364 = vsel %vm4335, %v4315, %v3604
    %v4365 = vsel %vm4335, %v4316, %v3606
    %v4366 = vsel %vm4335, %v4317, %v3608
    %v4367 = vsel %vm4335, %v4318, %v3610
    %v4368 = vsel %vm4335, %v4319, %v3612
    %v4369 = vsel %vm4335, %v4320, %v3614
    %v4370 = vsel %vm4335, %v4321, %v3616
    %v4371 = vsel %vm4335, %v4322, %v3618
    %v4372 = vsel %vm4335, %v4323, %v3620
    %v4373 = vsel %vm4335, %v4324, %v3622
    %v4374 = vsel %vm4335, %v4325, %v3624
    %v4375 = vsel %vm4335, %v4326, %v3626
    %v4376 = vsel %vm4335, %v4327, %v3628
    %v4377 = vsel %vm4335, %v4328, %v3630
    %v4378 = vsel %vm4335, %v4329, %v3632
    %v4379 = vsel %vm4335, %v4330, %v3634
    %v4380 = vsel %vm4335, %v4331, %v3636
    %v4381 = vsel %vm4335, %v4332, %v3638
    %v4382 = vsel %vm4335, %v4333, %v3640
    %v4383 = vsel %vm4335, %v4334, %v3642
    %vm4384 = vcmask 130048
    %v4385 = vsel %vm4384, %v3548, %v3696
    %v4386 = vsel %vm4384, %v3550, %v3698
    %v4387 = vsel %vm4384, %v3552, %v3700
    %v4388 = vsel %vm4384, %v3554, %v3702
    %v4389 = vsel %vm4384, %v3556, %v3704
    %v4390 = vsel %vm4384, %v3558, %v3706
    %v4391 = vsel %vm4384, %v3560, %v3708
    %v4392 = vsel %vm4384, %v3562, %v3710
    %v4393 = vsel %vm4384, %v3564, %v3712
    %v4394 = vsel %vm4384, %v3566, %v3714
    %v4395 = vsel %vm4384, %v3568, %v3716
    %v4396 = vsel %vm4384, %v3570, %v3718
    %v4397 = vsel %vm4384, %v3572, %v3720
    %v4398 = vsel %vm4384, %v3574, %v3722
    %v4399 = vsel %vm4384, %v3576, %v3724
    %v4400 = vsel %vm4384, %v3578, %v3726
    %v4401 = vsel %vm4384, %v3580, %v3728
    %v4402 = vsel %vm4384, %v3582, %v3730
    %v4403 = vsel %vm4384, %v3584, %v3732
    %v4404 = vsel %vm4384, %v3586, %v3734
    %v4405 = vsel %vm4384, %v3588, %v3736
    %v4406 = vsel %vm4384, %v3590, %v3738
    %v4407 = vsel %vm4384, %v3592, %v3740
    %v4408 = vsel %vm4384, %v3594, %v3742
    %v4409 = vsel %vm4384, %v3596, %v3744
    %v4410 = vsel %vm4384, %v3598, %v3746
    %v4411 = vsel %vm4384, %v3600, %v3748
    %v4412 = vsel %vm4384, %v3602, %v3750
    %v4413 = vsel %vm4384, %v3604, %v3752
    %v4414 = vsel %vm4384, %v3606, %v3754
    %v4415 = vsel %vm4384, %v3608, %v3756
    %v4416 = vsel %vm4384, %v3610, %v3758
    %v4417 = vsel %vm4384, %v3612, %v3760
    %v4418 = vsel %vm4384, %v3614, %v3762
    %v4419 = vsel %vm4384, %v3616, %v3764
    %v4420 = vsel %vm4384, %v3618, %v3766
    %v4421 = vsel %vm4384, %v3620, %v3768
    %v4422 = vsel %vm4384, %v3622, %v3770
    %v4423 = vsel %vm4384, %v3624, %v3772
    %v4424 = vsel %vm4384, %v3626, %v3774
    %v4425 = vsel %vm4384, %v3628, %v3776
    %v4426 = vsel %vm4384, %v3630, %v3778
    %v4427 = vsel %vm4384, %v3632, %v3780
    %v4428 = vsel %vm4384, %v3634, %v3782
    %v4429 = vsel %vm4384, %v3636, %v3784
    %v4430 = vsel %vm4384, %v3638, %v3786
    %v4431 = vsel %vm4384, %v3640, %v3788
    %v4432 = vsel %vm4384, %v3642, %v3790
    %vm4433 = vcmask 326656
    %v4434 = vsel %vm4433, %v4385, %v3846
    %v4435 = vsel %vm4433, %v4386, %v3848
    %v4436 = vsel %vm4433, %v4387, %v3850
    %v4437 = vsel %vm4433, %v4388, %v3852
    %v4438 = vsel %vm4433, %v4389, %v3854
    %v4439 = vsel %vm4433, %v4390, %v3856
    %v4440 = vsel %vm4433, %v4391, %v3858
    %v4441 = vsel %vm4433, %v4392, %v3860
    %v4442 = vsel %vm4433, %v4393, %v3862
    %v4443 = vsel %vm4433, %v4394, %v3864
    %v4444 = vsel %vm4433, %v4395, %v3866
    %v4445 = vsel %vm4433, %v4396, %v3868
    %v4446 = vsel %vm4433, %v4397, %v3870
    %v4447 = vsel %vm4433, %v4398, %v3872
    %v4448 = vsel %vm4433, %v4399, %v3874
    %v4449 = vsel %vm4433, %v4400, %v3876
    %v4450 = vsel %vm4433, %v4401, %v3878
    %v4451 = vsel %vm4433, %v4402, %v3880
    %v4452 = vsel %vm4433, %v4403, %v3882
    %v4453 = vsel %vm4433, %v4404, %v3884
    %v4454 = vsel %vm4433, %v4405, %v3886
    %v4455 = vsel %vm4433, %v4406, %v3888
    %v4456 = vsel %vm4433, %v4407, %v3890
    %v4457 = vsel %vm4433, %v4408, %v3892
    %v4458 = vsel %vm4433, %v4409, %v3894
    %v4459 = vsel %vm4433, %v4410, %v3896
    %v4460 = vsel %vm4433, %v4411, %v3898
    %v4461 = vsel %vm4433, %v4412, %v3900
    %v4462 = vsel %vm4433, %v4413, %v3902
    %v4463 = vsel %vm4433, %v4414, %v3904
    %v4464 = vsel %vm4433, %v4415, %v3906
    %v4465 = vsel %vm4433, %v4416, %v3908
    %v4466 = vsel %vm4433, %v4417, %v3910
    %v4467 = vsel %vm4433, %v4418, %v3912
    %v4468 = vsel %vm4433, %v4419, %v3914
    %v4469 = vsel %vm4433, %v4420, %v3916
    %v4470 = vsel %vm4433, %v4421, %v3918
    %v4471 = vsel %vm4433, %v4422, %v3920
    %v4472 = vsel %vm4433, %v4423, %v3922
    %v4473 = vsel %vm4433, %v4424, %v3924
    %v4474 = vsel %vm4433, %v4425, %v3926
    %v4475 = vsel %vm4433, %v4426, %v3928
    %v4476 = vsel %vm4433, %v4427, %v3930
    %v4477 = vsel %vm4433, %v4428, %v3932
    %v4478 = vsel %vm4433, %v4429, %v3934
    %v4479 = vsel %vm4433, %v4430, %v3936
    %v4480 = vsel %vm4433, %v4431, %v3938
    %v4481 = vsel %vm4433, %v4432, %v3940
    %vm4482 = vcmask 523264
    %v4483 = vsel %vm4482, %v4434, %v3996
    %v4484 = vsel %vm4482, %v4435, %v3998
    %v4485 = vsel %vm4482, %v4436, %v4000
    %v4486 = vsel %vm4482, %v4437, %v4002
    %v4487 = vsel %vm4482, %v4438, %v4004
    %v4488 = vsel %vm4482, %v4439, %v4006
    %v4489 = vsel %vm4482, %v4440, %v4008
    %v4490 = vsel %vm4482, %v4441, %v4010
    %v4491 = vsel %vm4482, %v4442, %v4012
    %v4492 = vsel %vm4482, %v4443, %v4014
    %v4493 = vsel %vm4482, %v4444, %v4016
    %v4494 = vsel %vm4482, %v4445, %v4018
    %v4495 = vsel %vm4482, %v4446, %v4020
    %v4496 = vsel %vm4482, %v4447, %v4022
    %v4497 = vsel %vm4482, %v4448, %v4024
    %v4498 = vsel %vm4482, %v4449, %v4026
    %v4499 = vsel %vm4482, %v4450, %v4028
    %v4500 = vsel %vm4482, %v4451, %v4030
    %v4501 = vsel %vm4482, %v4452, %v4032
    %v4502 = vsel %vm4482, %v4453, %v4034
    %v4503 = vsel %vm4482, %v4454, %v4036
    %v4504 = vsel %vm4482, %v4455, %v4038
    %v4505 = vsel %vm4482, %v4456, %v4040
    %v4506 = vsel %vm4482, %v4457, %v4042
    %v4507 = vsel %vm4482, %v4458, %v4044
    %v4508 = vsel %vm4482, %v4459, %v4046
    %v4509 = vsel %vm4482, %v4460, %v4048
    %v4510 = vsel %vm4482, %v4461, %v4050
    %v4511 = vsel %vm4482, %v4462, %v4052
    %v4512 = vsel %vm4482, %v4463, %v4054
    %v4513 = vsel %vm4482, %v4464, %v4056
    %v4514 = vsel %vm4482, %v4465, %v4058
    %v4515 = vsel %vm4482, %v4466, %v4060
    %v4516 = vsel %vm4482, %v4467, %v4062
    %v4517 = vsel %vm4482, %v4468, %v4064
    %v4518 = vsel %vm4482, %v4469, %v4066
    %v4519 = vsel %vm4482, %v4470, %v4068
    %v4520 = vsel %vm4482, %v4471, %v4070
    %v4521 = vsel %vm4482, %v4472, %v4072
    %v4522 = vsel %vm4482, %v4473, %v4074
    %v4523 = vsel %vm4482, %v4474, %v4076
    %v4524 = vsel %vm4482, %v4475, %v4078
    %v4525 = vsel %vm4482, %v4476, %v4080
    %v4526 = vsel %vm4482, %v4477, %v4082
    %v4527 = vsel %vm4482, %v4478, %v4084
    %v4528 = vsel %vm4482, %v4479, %v4086
    %v4529 = vsel %vm4482, %v4480, %v4088
    %v4530 = vsel %vm4482, %v4481, %v4090
    %v4627 = vcombine.low %v4336, %v4483
    %v4628 = vcombine.high %v4336, %v4483
    %v4629 = vcombine.low %v4337, %v4484
    %v4630 = vcombine.low %v4338, %v4485
    %v4631 = vcombine.high %v4338, %v4485
    %v4632 = vcombine.low %v4339, %v4486
    %v4633 = vcombine.low %v4340, %v4487
    %v4634 = vcombine.high %v4340, %v4487
    %v4635 = vcombine.low %v4341, %v4488
    %v4636 = vcombine.low %v4342, %v4489
    %v4637 = vcombine.high %v4342, %v4489
    %v4638 = vcombine.low %v4343, %v4490
    %v4639 = vcombine.low %v4344, %v4491
    %v4640 = vcombine.high %v4344, %v4491
    %v4641 = vcombine.low %v4345, %v4492
    %v4642 = vcombine.low %v4346, %v4493
    %v4643 = vcombine.high %v4346, %v4493
    %v4644 = vcombine.low %v4347, %v4494
    %v4645 = vcombine.low %v4348, %v4495
    %v4646 = vcombine.high %v4348, %v4495
    %v4647 = vcombine.low %v4349, %v4496
    %v4648 = vcombine.low %v4350, %v4497
    %v4649 = vcombine.high %v4350, %v4497
    %v4650 = vcombine.low %v4351, %v4498
    %v4651 = vcombine.low %v4352, %v4499
    %v4652 = vcombine.high %v4352, %v4499
    %v4653 = vcombine.low %v4353, %v4500
    %v4654 = vcombine.low %v4354, %v4501
    %v4655 = vcombine.high %v4354, %v4501
    %v4656 = vcombine.low %v4355, %v4502
    %v4657 = vcombine.low %v4356, %v4503
    %v4658 = vcombine.high %v4356, %v4503
    %v4659 = vcombine.low %v4357, %v4504
    %v4660 = vcombine.low %v4358, %v4505
    %v4661 = vcombine.high %v4358, %v4505
    %v4662 = vcombine.low %v4359, %v4506
    %v4663 = vcombine.low %v4360, %v4507
    %v4664 = vcombine.high %v4360, %v4507
    %v4665 = vcombine.low %v4361, %v4508
    %v4666 = vcombine.low %v4362, %v4509
    %v4667 = vcombine.high %v4362, %v4509
    %v4668 = vcombine.low %v4363, %v4510
    %v4669 = vcombine.low %v4364, %v4511
    %v4670 = vcombine.high %v4364, %v4511
    %v4671 = vcombine.low %v4365, %v4512
    %v4672 = vcombine.low %v4366, %v4513
    %v4673 = vcombine.high %v4366, %v4513
    %v4674 = vcombine.low %v4367, %v4514
    %v4675 = vcombine.low %v4368, %v4515
    %v4676 = vcombine.high %v4368, %v4515
    %v4677 = vcombine.low %v4369, %v4516
    %v4678 = vcombine.low %v4370, %v4517
    %v4679 = vcombine.high %v4370, %v4517
    %v4680 = vcombine.low %v4371, %v4518
    %v4681 = vcombine.low %v4372, %v4519
    %v4682 = vcombine.high %v4372, %v4519
    %v4683 = vcombine.low %v4373, %v4520
    %v4684 = vcombine.low %v4374, %v4521
    %v4685 = vcombine.high %v4374, %v4521
    %v4686 = vcombine.low %v4375, %v4522
    %v4687 = vcombine.low %v4376, %v4523
    %v4688 = vcombine.high %v4376, %v4523
    %v4689 = vcombine.low %v4377, %v4524
    %v4690 = vcombine.low %v4378, %v4525
    %v4691 = vcombine.high %v4378, %v4525
    %v4692 = vcombine.low %v4379, %v4526
    %v4693 = vcombine.low %v4380, %v4527
    %v4694 = vcombine.high %v4380, %v4527
    %v4695 = vcombine.low %v4381, %v4528
    %v4696 = vcombine.low %v4382, %v4529
    %v4697 = vcombine.high %v4382, %v4529
    %v4698 = vcombine.low %v4383, %v4530
    %v4699 = vld [vmem:[%s3] sm:$0xff]
    %v4700 = vld [vmem:[%s3 + $0x8] sm:$0xff]
    %v4701 = vld [vmem:[%s3 + $0x10] sm:$0xff]
    %v4702 = vld [vmem:[%s3 + $0x18] sm:$0xff]
    %v4703 = vld [vmem:[%s3 + $0x20] sm:$0xff]
    %v4704 = vld [vmem:[%s3 + $0x28] sm:$0xff]
    %v4705 = vld [vmem:[%s3 + $0x30] sm:$0xff]
    %v4706 = vld [vmem:[%s3 + $0x38] sm:$0xff]
    %v4707 = vld [vmem:[%s3 + $0x40] sm:$0xff]
    %v4708 = vld [vmem:[%s3 + $0x48] sm:$0xff]
    %v4709 = vld [vmem:[%s3 + $0x50] sm:$0xff]
    %v4710 = vld [vmem:[%s3 + $0x58] sm:$0xff]
    %v4711 = vld [vmem:[%s3 + $0x60] sm:$0xff]
    %v4712 = vld [vmem:[%s3 + $0x68] sm:$0xff]
    %v4713 = vld [vmem:[%s3 + $0x70] sm:$0xff]
    %v4714 = vld [vmem:[%s3 + $0x78] sm:$0xff]
    %v4715 = vld [vmem:[%s3 + $0x80] sm:$0xff]
    %v4716 = vld [vmem:[%s3 + $0x88] sm:$0xff]
    %v4717 = vld [vmem:[%s3 + $0x90] sm:$0xff]
    %v4718 = vld [vmem:[%s3 + $0x98] sm:$0xff]
    %v4719 = vld [vmem:[%s3 + $0xa0] sm:$0xff]
    %v4720 = vld [vmem:[%s3 + $0xa8] sm:$0xff]
    %v4721 = vld [vmem:[%s3 + $0xb0] sm:$0xff]
    %v4722 = vld [vmem:[%s3 + $0xb8] sm:$0xff]
    %v4723 = vld [vmem:[%s3 + $0xc0] sm:$0xff]
    %v4724 = vld [vmem:[%s3 + $0xc8] sm:$0xff]
    %v4725 = vld [vmem:[%s3 + $0xd0] sm:$0xff]
    %v4726 = vld [vmem:[%s4] sm:$0x1]
    %v4728 = vlaneseq
    %v4729 = vshrl.u32 %v4728, 7
    %v4730 = vsub.s32 0, %v4729
    %v4731 = vrot.slane %v4726, %v4730
    %v4733 = vcombine.low %v4627, %v4628
    %v4734 = vcombine.high %v4627, %v4628
    %v4735 = vcombine.low %v4629, %v4630
    %v4736 = vcombine.high %v4629, %v4630
    %v4737 = vcombine.low %v4631, %v4632
    %v4738 = vcombine.high %v4631, %v4632
    %v4739 = vcombine.low %v4633, %v4634
    %v4740 = vcombine.high %v4633, %v4634
    %v4741 = vcombine.low %v4635, %v4636
    %v4742 = vcombine.high %v4635, %v4636
    %v4743 = vcombine.low %v4637, %v4638
    %v4744 = vcombine.high %v4637, %v4638
    %v4745 = vcombine.low %v4639, %v4640
    %v4746 = vcombine.high %v4639, %v4640
    %v4747 = vcombine.low %v4641, %v4642
    %v4748 = vcombine.high %v4641, %v4642
    %v4749 = vcombine.low %v4643, %v4644
    %v4750 = vcombine.high %v4643, %v4644
    %v4751 = vcombine.low %v4645, %v4646
    %v4752 = vcombine.high %v4645, %v4646
    %v4753 = vcombine.low %v4647, %v4648
    %v4754 = vcombine.high %v4647, %v4648
    %v4755 = vcombine.low %v4649, %v4650
    %v4756 = vcombine.high %v4649, %v4650
    %v4757 = vcombine.low %v4651, %v4652
    %v4758 = vcombine.high %v4651, %v4652
    %v4759 = vcombine.low %v4653, %v4654
    %v4760 = vcombine.high %v4653, %v4654
    %v4761 = vcombine.low %v4655, %v4656
    %v4762 = vcombine.high %v4655, %v4656
    %v4763 = vcombine.low %v4657, %v4658
    %v4764 = vcombine.high %v4657, %v4658
    %v4765 = vcombine.low %v4659, %v4660
    %v4766 = vcombine.high %v4659, %v4660
    %v4767 = vcombine.low %v4661, %v4662
    %v4768 = vcombine.high %v4661, %v4662
    %v4769 = vcombine.low %v4663, %v4664
    %v4770 = vcombine.high %v4663, %v4664
    %v4771 = vcombine.low %v4665, %v4666
    %v4772 = vcombine.high %v4665, %v4666
    %v4773 = vcombine.low %v4667, %v4668
    %v4774 = vcombine.high %v4667, %v4668
    %v4775 = vcombine.low %v4669, %v4670
    %v4776 = vcombine.high %v4669, %v4670
    %v4777 = vcombine.low %v4671, %v4672
    %v4778 = vcombine.high %v4671, %v4672
    %v4779 = vcombine.low %v4673, %v4674
    %v4780 = vcombine.high %v4673, %v4674
    %v4781 = vcombine.low %v4675, %v4676
    %v4782 = vcombine.high %v4675, %v4676
    %v4783 = vcombine.low %v4677, %v4678
    %v4784 = vcombine.high %v4677, %v4678
    %v4785 = vcombine.low %v4679, %v4680
    %v4786 = vcombine.high %v4679, %v4680
    %v4787 = vcombine.low %v4681, %v4682
    %v4788 = vcombine.high %v4681, %v4682
    %v4789 = vcombine.low %v4683, %v4684
    %v4790 = vcombine.high %v4683, %v4684
    %v4791 = vcombine.low %v4685, %v4686
    %v4792 = vcombine.high %v4685, %v4686
    %v4793 = vcombine.low %v4687, %v4688
    %v4794 = vcombine.high %v4687, %v4688
    %v4795 = vcombine.low %v4689, %v4690
    %v4796 = vcombine.high %v4689, %v4690
    %v4797 = vcombine.low %v4691, %v4692
    %v4798 = vcombine.high %v4691, %v4692
    %v4799 = vcombine.low %v4693, %v4694
    %v4800 = vcombine.high %v4693, %v4694
    %v4801 = vcombine.low %v4695, %v4696
    %v4802 = vcombine.high %v4695, %v4696
    %v4803 = vcombine.low %v4697, %v4698
    %v4804 = vcombine.high %v4697, %v4698
    %vm4841 = vcmask 719872
    %v4842 = vsel %vm4841, %v4734, 0
    %v4844 = vsel %vm4841, %v4736, 0
    %v4846 = vsel %vm4841, %v4738, 0
    %v4848 = vsel %vm4841, %v4740, 0
    %v4850 = vsel %vm4841, %v4742, 0
    %v4852 = vsel %vm4841, %v4744, 0
    %v4854 = vsel %vm4841, %v4746, 0
    %v4856 = vsel %vm4841, %v4748, 0
    %v4858 = vsel %vm4841, %v4750, 0
    %v4860 = vsel %vm4841, %v4752, 0
    %v4862 = vsel %vm4841, %v4754, 0
    %v4864 = vsel %vm4841, %v4756, 0
    %v4866 = vsel %vm4841, %v4758, 0
    %v4868 = vsel %vm4841, %v4760, 0
    %v4870 = vsel %vm4841, %v4762, 0
    %v4872 = vsel %vm4841, %v4764, 0
    %v4874 = vsel %vm4841, %v4766, 0
    %v4876 = vsel %vm4841, %v4768, 0
    %v4878 = vsel %vm4841, %v4770, 0
    %v4880 = vsel %vm4841, %v4772, 0
    %v4882 = vsel %vm4841, %v4774, 0
    %v4884 = vsel %vm4841, %v4776, 0
    %v4886 = vsel %vm4841, %v4778, 0
    %v4888 = vsel %vm4841, %v4780, 0
    %v4890 = vsel %vm4841, %v4782, 0
    %v4892 = vsel %vm4841, %v4784, 0
    %v4894 = vsel %vm4841, %v4786, 0
    %v4896 = vsel %vm4841, %v4788, 0
    %v4898 = vsel %vm4841, %v4790, 0
    %v4900 = vsel %vm4841, %v4792, 0
    %v4902 = vsel %vm4841, %v4794, 0
    %v4904 = vsel %vm4841, %v4796, 0
    %v4906 = vsel %vm4841, %v4798, 0
    %v4908 = vsel %vm4841, %v4800, 0
    %v4910 = vsel %vm4841, %v4802, 0
    %v4912 = vsel %vm4841, %v4804, 0
    %4914 = vmatprep.subr.mxu0 0.0
    %4915 = vmatpush1.msra.mxu0 %v4714
    %4916 = vmatprep.subr.mxu0 0.0
    %4917 = vmatpush1.msra.mxu0 %v4713
    %4918 = vmatprep.subr.mxu0 0.0
    %4919 = vmatpush1.msra.mxu0 %v4712
    %4920 = vmatprep.subr.mxu0 0.0
    %4921 = vmatpush1.msra.mxu0 %v4711
    %4922 = vmatprep.subr.mxu0 0.0
    %4923 = vmatpush1.msra.mxu0 %v4710
    %4924 = vmatprep.subr.mxu0 0.0
    %4925 = vmatpush1.msra.mxu0 %v4709
    %4926 = vmatprep.subr.mxu0 0.0
    %4927 = vmatpush1.msra.mxu0 %v4708
    %4928 = vmatprep.subr.mxu0 0.0
    %4929 = vmatpush1.msra.mxu0 %v4707
    %4930 = vmatprep.subr.mxu0 0.0
    %4931 = vmatpush1.msra.mxu0 %v4706
    %4932 = vmatprep.subr.mxu0 0.0
    %4933 = vmatpush1.msra.mxu0 %v4705
    %4934 = vmatprep.subr.mxu0 0.0
    %4935 = vmatpush1.msra.mxu0 %v4704
    %4936 = vmatprep.subr.mxu0 0.0
    %4937 = vmatpush1.msra.mxu0 %v4703
    %4938 = vmatprep.subr.mxu0 0.0
    %4939 = vmatpush1.msra.mxu0 %v4702
    %4940 = vmatprep.subr.mxu0 0.0
    %4941 = vmatpush1.msra.mxu0 %v4701
    %4942 = vmatprep.subr.mxu0 0.0
    %4943 = vmatpush1.msra.mxu0 %v4700
    %4944 = vmatprep.subr.mxu0 0.0
    %4945 = vmatpush1.msra.mxu0 %v4699
    %4946 = vmatprep.subr.mxu0 0.0
    %4947 = vmatpush2.msra.mxu0 0.0
    %4948 = vmatprep.subr.mxu0 0.0
    %4949 = vmatpush2.msra.mxu0 0.0
    %4950 = vmatprep.subr.mxu0 0.0
    %4951 = vmatpush2.msra.mxu0 0.0
    %4952 = vmatprep.subr.mxu0 0.0
    %4953 = vmatpush2.msra.mxu0 0.0
    %4954 = vmatprep.subr.mxu0 0.0
    %4955 = vmatpush2.msra.mxu0 0.0
    %4956 = vmatprep.subr.mxu0 0.0
    %4957 = vmatpush2.msra.mxu0 %v4725
    %4958 = vmatprep.subr.mxu0 0.0
    %4959 = vmatpush2.msra.mxu0 %v4724
    %4960 = vmatprep.subr.mxu0 0.0
    %4961 = vmatpush2.msra.mxu0 %v4723
    %4962 = vmatprep.subr.mxu0 0.0
    %4963 = vmatpush2.msra.mxu0 %v4722
    %4964 = vmatprep.subr.mxu0 0.0
    %4965 = vmatpush2.msra.mxu0 %v4721
    %4966 = vmatprep.subr.mxu0 0.0
    %4967 = vmatpush2.msra.mxu0 %v4720
    %4968 = vmatprep.subr.mxu0 0.0
    %4969 = vmatpush2.msra.mxu0 %v4719
    %4970 = vmatprep.subr.mxu0 0.0
    %4971 = vmatpush2.msra.mxu0 %v4718
    %4972 = vmatprep.subr.mxu0 0.0
    %4973 = vmatpush2.msra.mxu0 %v4717
    %4974 = vmatprep.subr.mxu0 0.0
    %4975 = vmatpush2.msra.mxu0 %v4716
    %4976 = vmatprep.subr.mxu0 0.0
    %4977 = vmatpush2.msra.mxu0 %v4715
    %4978 = vmatprep.mubr.f32.mxu0 %v4842
    %4979 = vmatmul.mubr.f32.gmra.mxu0 %v4733
    %v4980 = vpop.f32.mrf.mxu0
    %v4981 = vadd.f32 %v4731, %v4980
    %v4982 = vpop.f32.mrf.mxu0
    %4983 = vmatprep.mubr.f32.mxu0 %v4844
    %4984 = vmatmul.mubr.f32.gmra.mxu0 %v4735
    %v4985 = vpop.f32.mrf.mxu0
    %v4986 = vadd.f32 %v4731, %v4985
    %v4987 = vpop.f32.mrf.mxu0
    %4988 = vmatprep.mubr.f32.mxu0 %v4846
    %4989 = vmatmul.mubr.f32.gmra.mxu0 %v4737
    %v4990 = vpop.f32.mrf.mxu0
    %v4991 = vadd.f32 %v4731, %v4990
    %v4992 = vpop.f32.mrf.mxu0
    %4993 = vmatprep.mubr.f32.mxu0 %v4848
    %4994 = vmatmul.mubr.f32.gmra.mxu0 %v4739
    %v4995 = vpop.f32.mrf.mxu0
    %v4996 = vadd.f32 %v4731, %v4995
    %v4997 = vpop.f32.mrf.mxu0
    %4998 = vmatprep.mubr.f32.mxu0 %v4850
    %4999 = vmatmul.mubr.f32.gmra.mxu0 %v4741
    %v5000 = vpop.f32.mrf.mxu0
    %v5001 = vadd.f32 %v4731, %v5000
    %v5002 = vpop.f32.mrf.mxu0
    %5003 = vmatprep.mubr.f32.mxu0 %v4852
    %5004 = vmatmul.mubr.f32.gmra.mxu0 %v4743
    %v5005 = vpop.f32.mrf.mxu0
    %v5006 = vadd.f32 %v4731, %v5005
    %v5007 = vpop.f32.mrf.mxu0
    %5008 = vmatprep.mubr.f32.mxu0 %v4854
    %5009 = vmatmul.mubr.f32.gmra.mxu0 %v4745
    %v5010 = vpop.f32.mrf.mxu0
    %v5011 = vadd.f32 %v4731, %v5010
    %v5012 = vpop.f32.mrf.mxu0
    %5013 = vmatprep.mubr.f32.mxu0 %v4856
    %5014 = vmatmul.mubr.f32.gmra.mxu0 %v4747
    %v5015 = vpop.f32.mrf.mxu0
    %v5016 = vadd.f32 %v4731, %v5015
    %v5017 = vpop.f32.mrf.mxu0
    %5018 = vmatprep.mubr.f32.mxu0 %v4858
    %5019 = vmatmul.mubr.f32.gmra.mxu0 %v4749
    %v5020 = vpop.f32.mrf.mxu0
    %v5021 = vadd.f32 %v4731, %v5020
    %v5022 = vpop.f32.mrf.mxu0
    %5023 = vmatprep.mubr.f32.mxu0 %v4860
    %5024 = vmatmul.mubr.f32.gmra.mxu0 %v4751
    %v5025 = vpop.f32.mrf.mxu0
    %v5026 = vadd.f32 %v4731, %v5025
    %v5027 = vpop.f32.mrf.mxu0
    %5028 = vmatprep.mubr.f32.mxu0 %v4862
    %5029 = vmatmul.mubr.f32.gmra.mxu0 %v4753
    %v5030 = vpop.f32.mrf.mxu0
    %v5031 = vadd.f32 %v4731, %v5030
    %v5032 = vpop.f32.mrf.mxu0
    %5033 = vmatprep.mubr.f32.mxu0 %v4864
    %5034 = vmatmul.mubr.f32.gmra.mxu0 %v4755
    %v5035 = vpop.f32.mrf.mxu0
    %v5036 = vadd.f32 %v4731, %v5035
    %v5037 = vpop.f32.mrf.mxu0
    %5038 = vmatprep.mubr.f32.mxu0 %v4866
    %5039 = vmatmul.mubr.f32.gmra.mxu0 %v4757
    %v5040 = vpop.f32.mrf.mxu0
    %v5041 = vadd.f32 %v4731, %v5040
    %v5042 = vpop.f32.mrf.mxu0
    %5043 = vmatprep.mubr.f32.mxu0 %v4868
    %5044 = vmatmul.mubr.f32.gmra.mxu0 %v4759
    %v5045 = vpop.f32.mrf.mxu0
    %v5046 = vadd.f32 %v4731, %v5045
    %v5047 = vpop.f32.mrf.mxu0
    %5048 = vmatprep.mubr.f32.mxu0 %v4870
    %5049 = vmatmul.mubr.f32.gmra.mxu0 %v4761
    %v5050 = vpop.f32.mrf.mxu0
    %v5051 = vadd.f32 %v4731, %v5050
    %v5052 = vpop.f32.mrf.mxu0
    %5053 = vmatprep.mubr.f32.mxu0 %v4872
    %5054 = vmatmul.mubr.f32.gmra.mxu0 %v4763
    %v5055 = vpop.f32.mrf.mxu0
    %v5056 = vadd.f32 %v4731, %v5055
    %v5057 = vpop.f32.mrf.mxu0
    %5058 = vmatprep.mubr.f32.mxu0 %v4874
    %5059 = vmatmul.mubr.f32.gmra.mxu0 %v4765
    %v5060 = vpop.f32.mrf.mxu0
    %v5061 = vadd.f32 %v4731, %v5060
    %v5062 = vpop.f32.mrf.mxu0
    %5063 = vmatprep.mubr.f32.mxu0 %v4876
    %5064 = vmatmul.mubr.f32.gmra.mxu0 %v4767
    %v5065 = vpop.f32.mrf.mxu0
    %v5066 = vadd.f32 %v4731, %v5065
    %v5067 = vpop.f32.mrf.mxu0
    %5068 = vmatprep.mubr.f32.mxu0 %v4878
    %5069 = vmatmul.mubr.f32.gmra.mxu0 %v4769
    %v5070 = vpop.f32.mrf.mxu0
    %v5071 = vadd.f32 %v4731, %v5070
    %v5072 = vpop.f32.mrf.mxu0
    %5073 = vmatprep.mubr.f32.mxu0 %v4880
    %5074 = vmatmul.mubr.f32.gmra.mxu0 %v4771
    %v5075 = vpop.f32.mrf.mxu0
    %v5076 = vadd.f32 %v4731, %v5075
    %v5077 = vpop.f32.mrf.mxu0
    %5078 = vmatprep.mubr.f32.mxu0 %v4882
    %5079 = vmatmul.mubr.f32.gmra.mxu0 %v4773
    %v5080 = vpop.f32.mrf.mxu0
    %v5081 = vadd.f32 %v4731, %v5080
    %v5082 = vpop.f32.mrf.mxu0
    %5083 = vmatprep.mubr.f32.mxu0 %v4884
    %5084 = vmatmul.mubr.f32.gmra.mxu0 %v4775
    %v5085 = vpop.f32.mrf.mxu0
    %v5086 = vadd.f32 %v4731, %v5085
    %v5087 = vpop.f32.mrf.mxu0
    %5088 = vmatprep.mubr.f32.mxu0 %v4886
    %5089 = vmatmul.mubr.f32.gmra.mxu0 %v4777
    %v5090 = vpop.f32.mrf.mxu0
    %v5091 = vadd.f32 %v4731, %v5090
    %v5092 = vpop.f32.mrf.mxu0
    %5093 = vmatprep.mubr.f32.mxu0 %v4888
    %5094 = vmatmul.mubr.f32.gmra.mxu0 %v4779
    %v5095 = vpop.f32.mrf.mxu0
    %v5096 = vadd.f32 %v4731, %v5095
    %v5097 = vpop.f32.mrf.mxu0
    %5098 = vmatprep.mubr.f32.mxu0 %v4890
    %5099 = vmatmul.mubr.f32.gmra.mxu0 %v4781
    %v5100 = vpop.f32.mrf.mxu0
    %v5101 = vadd.f32 %v4731, %v5100
    %v5102 = vpop.f32.mrf.mxu0
    %5103 = vmatprep.mubr.f32.mxu0 %v4892
    %5104 = vmatmul.mubr.f32.gmra.mxu0 %v4783
    %v5105 = vpop.f32.mrf.mxu0
    %v5106 = vadd.f32 %v4731, %v5105
    %v5107 = vpop.f32.mrf.mxu0
    %5108 = vmatprep.mubr.f32.mxu0 %v4894
    %5109 = vmatmul.mubr.f32.gmra.mxu0 %v4785
    %v5110 = vpop.f32.mrf.mxu0
    %v5111 = vadd.f32 %v4731, %v5110
    %v5112 = vpop.f32.mrf.mxu0
    %5113 = vmatprep.mubr.f32.mxu0 %v4896
    %5114 = vmatmul.mubr.f32.gmra.mxu0 %v4787
    %v5115 = vpop.f32.mrf.mxu0
    %v5116 = vadd.f32 %v4731, %v5115
    %v5117 = vpop.f32.mrf.mxu0
    %5118 = vmatprep.mubr.f32.mxu0 %v4898
    %5119 = vmatmul.mubr.f32.gmra.mxu0 %v4789
    %v5120 = vpop.f32.mrf.mxu0
    %v5121 = vadd.f32 %v4731, %v5120
    %v5122 = vpop.f32.mrf.mxu0
    %5123 = vmatprep.mubr.f32.mxu0 %v4900
    %5124 = vmatmul.mubr.f32.gmra.mxu0 %v4791
    %v5125 = vpop.f32.mrf.mxu0
    %v5126 = vadd.f32 %v4731, %v5125
    %v5127 = vpop.f32.mrf.mxu0
    %5128 = vmatprep.mubr.f32.mxu0 %v4902
    %5129 = vmatmul.mubr.f32.gmra.mxu0 %v4793
    %v5130 = vpop.f32.mrf.mxu0
    %v5131 = vadd.f32 %v4731, %v5130
    %v5132 = vpop.f32.mrf.mxu0
    %5133 = vmatprep.mubr.f32.mxu0 %v4904
    %5134 = vmatmul.mubr.f32.gmra.mxu0 %v4795
    %v5135 = vpop.f32.mrf.mxu0
    %v5136 = vadd.f32 %v4731, %v5135
    %v5137 = vpop.f32.mrf.mxu0
    %5138 = vmatprep.mubr.f32.mxu0 %v4906
    %5139 = vmatmul.mubr.f32.gmra.mxu0 %v4797
    %v5140 = vpop.f32.mrf.mxu0
    %v5141 = vadd.f32 %v4731, %v5140
    %v5142 = vpop.f32.mrf.mxu0
    %5143 = vmatprep.mubr.f32.mxu0 %v4908
    %5144 = vmatmul.mubr.f32.gmra.mxu0 %v4799
    %v5145 = vpop.f32.mrf.mxu0
    %v5146 = vadd.f32 %v4731, %v5145
    %v5147 = vpop.f32.mrf.mxu0
    %5148 = vmatprep.mubr.f32.mxu0 %v4910
    %5149 = vmatmul.mubr.f32.gmra.mxu0 %v4801
    %v5150 = vpop.f32.mrf.mxu0
    %v5151 = vadd.f32 %v4731, %v5150
    %v5152 = vpop.f32.mrf.mxu0
    %5153 = vmatprep.mubr.f32.mxu0 %v4912
    %5154 = vmatmul.mubr.f32.gmra.mxu0 %v4803
    %v5155 = vpop.f32.mrf.mxu0
    %v5156 = vadd.f32 %v4731, %v5155
    %v5157 = vpop.f32.mrf.mxu0
    %5158 = vdwg.mxu0
    %v5159 = vmax.f32 %v4981, 0.0
    %v5160 = vmax.f32 %v4986, 0.0
    %v5161 = vmax.f32 %v4991, 0.0
    %v5162 = vmax.f32 %v4996, 0.0
    %v5163 = vmax.f32 %v5001, 0.0
    %v5164 = vmax.f32 %v5006, 0.0
    %v5165 = vmax.f32 %v5011, 0.0
    %v5166 = vmax.f32 %v5016, 0.0
    %v5167 = vmax.f32 %v5021, 0.0
    %v5168 = vmax.f32 %v5026, 0.0
    %v5169 = vmax.f32 %v5031, 0.0
    %v5170 = vmax.f32 %v5036, 0.0
    %v5171 = vmax.f32 %v5041, 0.0
    %v5172 = vmax.f32 %v5046, 0.0
    %v5173 = vmax.f32 %v5051, 0.0
    %v5174 = vmax.f32 %v5056, 0.0
    %v5175 = vmax.f32 %v5061, 0.0
    %v5176 = vmax.f32 %v5066, 0.0
    %v5177 = vmax.f32 %v5071, 0.0
    %v5178 = vmax.f32 %v5076, 0.0
    %v5179 = vmax.f32 %v5081, 0.0
    %v5180 = vmax.f32 %v5086, 0.0
    %v5181 = vmax.f32 %v5091, 0.0
    %v5182 = vmax.f32 %v5096, 0.0
    %v5183 = vmax.f32 %v5101, 0.0
    %v5184 = vmax.f32 %v5106, 0.0
    %v5185 = vmax.f32 %v5111, 0.0
    %v5186 = vmax.f32 %v5116, 0.0
    %v5187 = vmax.f32 %v5121, 0.0
    %v5188 = vmax.f32 %v5126, 0.0
    %v5189 = vmax.f32 %v5131, 0.0
    %v5190 = vmax.f32 %v5136, 0.0
    %v5191 = vmax.f32 %v5141, 0.0
    %v5192 = vmax.f32 %v5146, 0.0
    %v5193 = vmax.f32 %v5151, 0.0
    %v5194 = vmax.f32 %v5156, 0.0
    %v5195 = vsel %vm4188, %v5159, 0.0
    %v5196 = vsel %vm4188, %v5160, 0.0
    %v5197 = vadd.f32 %v5195, %v5196
    %v5198 = vsel %vm4188, %v5161, 0.0
    %v5199 = vadd.f32 %v5197, %v5198
    %v5200 = vsel %vm4188, %v5162, 0.0
    %v5201 = vadd.f32 %v5199, %v5200
    %v5202 = vsel %vm4188, %v5163, 0.0
    %v5203 = vadd.f32 %v5201, %v5202
    %v5204 = vsel %vm4188, %v5164, 0.0
    %v5205 = vadd.f32 %v5203, %v5204
    %v5206 = vsel %vm4188, %v5165, 0.0
    %v5207 = vadd.f32 %v5205, %v5206
    %v5208 = vsel %vm4188, %v5166, 0.0
    %v5209 = vadd.f32 %v5207, %v5208
    %v5210 = vsel %vm4188, %v5167, 0.0
    %v5211 = vadd.f32 %v5209, %v5210
    %v5212 = vsel %vm4188, %v5168, 0.0
    %v5213 = vadd.f32 %v5211, %v5212
    %v5214 = vsel %vm4188, %v5169, 0.0
    %v5215 = vadd.f32 %v5213, %v5214
    %v5216 = vsel %vm4188, %v5170, 0.0
    %v5217 = vadd.f32 %v5215, %v5216
    %v5218 = vsel %vm4188, %v5171, 0.0
    %v5219 = vadd.f32 %v5217, %v5218
    %v5220 = vsel %vm4188, %v5172, 0.0
    %v5221 = vadd.f32 %v5219, %v5220
    %v5222 = vsel %vm4188, %v5173, 0.0
    %v5223 = vadd.f32 %v5221, %v5222
    %v5224 = vsel %vm4188, %v5174, 0.0
    %v5225 = vadd.f32 %v5223, %v5224
    %v5226 = vsel %vm4188, %v5175, 0.0
    %v5227 = vadd.f32 %v5225, %v5226
    %v5228 = vsel %vm4188, %v5176, 0.0
    %v5229 = vadd.f32 %v5227, %v5228
    %v5230 = vrot.slane %v5229, 4
    %v5231 = vadd.f32 %v5229, %v5230
    %v5232 = vrot.slane %v5231, 2
    %v5233 = vadd.f32 %v5231, %v5232
    %v5234 = vrot.slane %v5233, 1
    %v5235 = vadd.f32 %v5233, %v5234
    %v5236 = vsel %vm4188, %v5177, 0.0
    %v5237 = vsel %vm4188, %v5178, 0.0
    %v5238 = vadd.f32 %v5236, %v5237
    %v5239 = vsel %vm4188, %v5179, 0.0
    %v5240 = vadd.f32 %v5238, %v5239
    %v5241 = vsel %vm4188, %v5180, 0.0
    %v5242 = vadd.f32 %v5240, %v5241
    %v5243 = vsel %vm4188, %v5181, 0.0
    %v5244 = vadd.f32 %v5242, %v5243
    %v5245 = vsel %vm4188, %v5182, 0.0
    %v5246 = vadd.f32 %v5244, %v5245
    %v5247 = vsel %vm4188, %v5183, 0.0
    %v5248 = vadd.f32 %v5246, %v5247
    %v5249 = vsel %vm4188, %v5184, 0.0
    %v5250 = vadd.f32 %v5248, %v5249
    %v5251 = vsel %vm4188, %v5185, 0.0
    %v5252 = vadd.f32 %v5250, %v5251
    %v5253 = vsel %vm4188, %v5186, 0.0
    %v5254 = vadd.f32 %v5252, %v5253
    %v5255 = vsel %vm4188, %v5187, 0.0
    %v5256 = vadd.f32 %v5254, %v5255
    %v5257 = vsel %vm4188, %v5188, 0.0
    %v5258 = vadd.f32 %v5256, %v5257
    %v5259 = vsel %vm4188, %v5189, 0.0
    %v5260 = vadd.f32 %v5258, %v5259
    %v5261 = vsel %vm4188, %v5190, 0.0
    %v5262 = vadd.f32 %v5260, %v5261
    %v5263 = vsel %vm4188, %v5191, 0.0
    %v5264 = vadd.f32 %v5262, %v5263
    %v5265 = vsel %vm4188, %v5192, 0.0
    %v5266 = vadd.f32 %v5264, %v5265
    %v5267 = vsel %vm4188, %v5193, 0.0
    %v5268 = vadd.f32 %v5266, %v5267
    %v5269 = vsel %vm4188, %v5194, 0.0
    %v5270 = vadd.f32 %v5268, %v5269
    %v5271 = vrot.slane %v5270, 4
    %v5272 = vadd.f32 %v5270, %v5271
    %v5273 = vrot.slane %v5272, 2
    %v5274 = vadd.f32 %v5272, %v5273
    %v5275 = vrot.slane %v5274, 1
    %v5276 = vadd.f32 %v5274, %v5275
    %v5277 = vrcp.pop 144.0
    %v5278 = vmul.f32 %v5235, %v5277
    %v5279 = vmul.f32 %v5276, %v5277
    %v5280 = vld [vmem:[%s5] sm:$0xff]
    %v5281 = vld [vmem:[%s5 + $0x8] sm:$0xff]
    %v5282 = vld [vmem:[%s5 + $0x10] sm:$0xff]
    %v5283 = vld [vmem:[%s5 + $0x18] sm:$0xff]
    %v5284 = vld [vmem:[%s5 + $0x20] sm:$0xff]
    %v5285 = vld [vmem:[%s5 + $0x28] sm:$0xff]
    %v5286 = vld [vmem:[%s6] sm:$0x1]
    %v5288 = vlaneseq
    %v5289 = vshrl.u32 %v5288, 7
    %v5290 = vsub.s32 0, %v5289
    %v5291 = vrot.slane %v5286, %v5290
    %vm5295 = vcmask 1041409
    %v5296 = vsel %vm5295, %v5279, %v5278
    %v5297 = vsel %vm4188, %v5296, 0
    %5299 = vmatprep.subr.mxu0 0.0
    %5300 = vmatpush1.msra.mxu0 0.0
    %5301 = vmatprep.subr.mxu0 0.0
    %5302 = vmatpush1.msra.mxu0 0.0
    %5303 = vmatprep.subr.mxu0 0.0
    %5304 = vmatpush1.msra.mxu0 0.0
    %5305 = vmatprep.subr.mxu0 0.0
    %5306 = vmatpush1.msra.mxu0 0.0
    %5307 = vmatprep.subr.mxu0 0.0
    %5308 = vmatpush1.msra.mxu0 0.0
    %5309 = vmatprep.subr.mxu0 0.0
    %5310 = vmatpush1.msra.mxu0 0.0
    %5311 = vmatprep.subr.mxu0 0.0
    %5312 = vmatpush1.msra.mxu0 0.0
    %5313 = vmatprep.subr.mxu0 0.0
    %5314 = vmatpush1.msra.mxu0 0.0
    %5315 = vmatprep.subr.mxu0 0.0
    %5316 = vmatpush1.msra.mxu0 0.0
    %5317 = vmatprep.subr.mxu0 0.0
    %5318 = vmatpush1.msra.mxu0 0.0
    %5319 = vmatprep.subr.mxu0 0.0
    %5320 = vmatpush1.msra.mxu0 %v5285
    %5321 = vmatprep.subr.mxu0 0.0
    %5322 = vmatpush1.msra.mxu0 %v5284
    %5323 = vmatprep.subr.mxu0 0.0
    %5324 = vmatpush1.msra.mxu0 %v5283
    %5325 = vmatprep.subr.mxu0 0.0
    %5326 = vmatpush1.msra.mxu0 %v5282
    %5327 = vmatprep.subr.mxu0 0.0
    %5328 = vmatpush1.msra.mxu0 %v5281
    %5329 = vmatprep.subr.mxu0 0.0
    %5330 = vmatpush1.msra.mxu0 %v5280
    %5331 = vmatprep.subr.mxu0 0.0
    %5332 = vmatpush2.msra.mxu0 0.0
    %5333 = vmatprep.subr.mxu0 0.0
    %5334 = vmatpush2.msra.mxu0 0.0
    %5335 = vmatprep.subr.mxu0 0.0
    %5336 = vmatpush2.msra.mxu0 0.0
    %5337 = vmatprep.subr.mxu0 0.0
    %5338 = vmatpush2.msra.mxu0 0.0
    %5339 = vmatprep.subr.mxu0 0.0
    %5340 = vmatpush2.msra.mxu0 0.0
    %5341 = vmatprep.subr.mxu0 0.0
    %5342 = vmatpush2.msra.mxu0 0.0
    %5343 = vmatprep.subr.mxu0 0.0
    %5344 = vmatpush2.msra.mxu0 0.0
    %5345 = vmatprep.subr.mxu0 0.0
    %5346 = vmatpush2.msra.mxu0 0.0
    %5347 = vmatprep.subr.mxu0 0.0
    %5348 = vmatpush2.msra.mxu0 0.0
    %5349 = vmatprep.subr.mxu0 0.0
    %5350 = vmatpush2.msra.mxu0 0.0
    %5351 = vmatprep.subr.mxu0 0.0
    %5352 = vmatpush2.msra.mxu0 0.0
    %5353 = vmatprep.subr.mxu0 0.0
    %5354 = vmatpush2.msra.mxu0 0.0
    %5355 = vmatprep.subr.mxu0 0.0
    %5356 = vmatpush2.msra.mxu0 0.0
    %5357 = vmatprep.subr.mxu0 0.0
    %5358 = vmatpush2.msra.mxu0 0.0
    %5359 = vmatprep.subr.mxu0 0.0
    %5360 = vmatpush2.msra.mxu0 0.0
    %5361 = vmatprep.subr.mxu0 0.0
    %5362 = vmatpush2.msra.mxu0 0.0
    %5363 = vmatprep.mubr.f32.mxu0 0.0
    %5364 = vmatmul.mubr.f32.gmra.mxu0 %v5297
    %v5365 = vpop.f32.mrf.mxu0
    %v5366 = vadd.f32 %v5291, %v5365
    %v5367 = vpop.f32.mrf.mxu0
    %5368 = vdwg.mxu0
    %v5369 = vlaneseq
    %v5370 = vand.u32 %v5369, 127
    %vm5371 = vcmask 25600
    %v5372 = vsel %vm5371, %v5366, -inf
    %5373 = vmax.xlane.f32.xlu0 %v5372
    %v5374 = vpop.xlane.xlu0 %5373
    %vm5375 = vcmp.ge.f32.partialorder %v5366, %v5374
    %v5376 = vsel %vm5375, %v5370, 4
    %v5377 = vsel %vm5371, %v5376, 2147483647
    %v5378 = vand.u32 %v5377, 65535
    %v5379 = vshra.s32 %v5377, 16
    %v5380 = vcvt.s32.f32 %v5378
    %v5381 = vcvt.s32.f32 %v5379
    %5382 = vmin.xlane.f32.xlu0 %v5381
    %v5383 = vpop.xlane.xlu0 %5382
    %vm5384 = vcmp.eq.f32.partialorder %v5381, %v5383
    %v5385 = vsel %vm5384, %v5380, inf
    %5386 = vmin.xlane.f32.xlu0 %v5385
    %v5387 = vpop.xlane.xlu0 %5386
    %v5388 = vcvt.f32.s32 %v5387
    %v5389 = vcvt.f32.s32 %v5383
    %v5390 = vshll.u32 %v5389, 16
    %v5391 = vadd.s32 %v5390, %v5388
    %vm5392 = vcmask 58400
    %v5393 = vsel %vm5392, %v5366, -inf
    %5394 = vmax.xlane.f32.xlu0 %v5393
    %v5395 = vpop.xlane.xlu0 %5394
    %vm5396 = vcmp.ge.f32.partialorder %v5366, %v5395
    %5397 = vrot.lane.b32.xlu0 %v5370, 4
    %v5398 = vpop.permute.xlu0 %5397
    %v5399 = vsel %vm5396, %v5398, 4
    %v5400 = vsel %vm5392, %v5399, 2147483647
    %v5401 = vand.u32 %v5400, 65535
    %v5402 = vshra.s32 %v5400, 16
    %v5403 = vcvt.s32.f32 %v5401
    %v5404 = vcvt.s32.f32 %v5402
    %5405 = vmin.xlane.f32.xlu0 %v5404
    %v5406 = vpop.xlane.xlu0 %5405
    %vm5407 = vcmp.eq.f32.partialorder %v5404, %v5406
    %v5408 = vsel %vm5407, %v5403, inf
    %5409 = vmin.xlane.f32.xlu0 %v5408
    %v5410 = vpop.xlane.xlu0 %5409
    %v5411 = vcvt.f32.s32 %v5410
    %v5412 = vcvt.f32.s32 %v5406
    %v5413 = vshll.u32 %v5412, 16
    %v5414 = vadd.s32 %v5413, %v5411
    %vm5415 = vcmask 91200
    %v5416 = vsel %vm5415, %v5366, -inf
    %5417 = vmax.xlane.f32.xlu0 %v5416
    %v5418 = vpop.xlane.xlu0 %5417
    %vm5419 = vcmp.ge.f32.partialorder %v5366, %v5418
    %5420 = vrot.lane.b32.xlu0 %v5370, 8
    %v5421 = vpop.permute.xlu0 %5420
    %v5422 = vsel %vm5419, %v5421, 4
    %v5423 = vsel %vm5415, %v5422, 2147483647
    %v5424 = vand.u32 %v5423, 65535
    %v5425 = vshra.s32 %v5423, 16
    %v5426 = vcvt.s32.f32 %v5424
    %v5427 = vcvt.s32.f32 %v5425
    %5428 = vmin.xlane.f32.xlu0 %v5427
    %v5429 = vpop.xlane.xlu0 %5428
    %vm5430 = vcmp.eq.f32.partialorder %v5427, %v5429
    %v5431 = vsel %vm5430, %v5426, inf
    %5432 = vmin.xlane.f32.xlu0 %v5431
    %v5433 = vpop.xlane.xlu0 %5432
    %v5434 = vcvt.f32.s32 %v5433
    %v5435 = vcvt.f32.s32 %v5429
    %v5436 = vshll.u32 %v5435, 16
    %v5437 = vadd.s32 %v5436, %v5434
    %vm5438 = vcmask 7168
    %v5439 = vsel %vm5438, %v5391, %v5414
    %vm5440 = vcmask 15360
    %v5441 = vsel %vm5440, %v5439, %v5437
    %5442 = vst [vmem:[%s7] sm:$0xff] 0.0
    %vm5443 = vcmask 91136
    %5444 = vst.msk [vmem:[%s7] sm:$0x3] %vm5443, %v5366
    %vm5445 = vcmask 17408
    %5446 = vst.msk [vmem:[#allocation2] sm:$0x3] %vm5445, %v5441
    // Predicated region
    $region30: #{device_forward.1} parent=1 // pred_check
      _
    $region31: #{device_forward.1} parent=1 // pred_check_branch
      %5448 = sbr.rel (0) target = $region33
    $region32: #{device_forward.1} parent=1 // pred_region
      _
    $region33: #{device_forward.1} parent=1 // pred_fallthru
      _
    // Predicated region
    $region34: #{device_forward.1} parent=1 // pred_check
      _
    $region35: #{device_forward.1} parent=1 // pred_check_branch
      %5450 = sbr.rel (0) target = $region37
    $region36: #{device_forward.1} parent=1 // pred_region
      %s5452 = ssub.s32 32, 32
      %5453 = vsyncadd [#allocation3], %s5452
      %s5455 = sshll.u32 [#allocation2], 4
      %s5456 = int_to_ptr.vmem [resolvable:$true] %s5455
      %5458 = dma.vmem_to_hbm [thread:$0]  %s5456, 32, %s8, [#allocation3]
    $region37: #{device_forward.1} parent=1 // pred_fallthru
      _
    // Predicated region
    $region38: #{device_forward.1} parent=1 // pred_check
      _
    $region39: #{device_forward.1} parent=1 // pred_check_branch
      %5460 = sbr.rel (0) target = $region41
    $region40: #{device_forward.1} parent=1 // pred_region
      _
    $region41: #{device_forward.1} parent=1 // pred_fallthru
      _
    // Predicated region
    $region42: #{device_forward.1} parent=1 // pred_check
      _
    $region43: #{device_forward.1} parent=1 // pred_check_branch
      %5462 = sbr.rel (0) target = $region45
    $region44: #{device_forward.1} parent=1 // pred_region
      %5463 = dma.done [#allocation3], 32
    $region45: #{device_forward.1} parent=1 // pred_fallthru
      _
    %5464 = vsyncpa [#allocation3], 1

</llo_original>
